<compile_context>
chip_gen: v7x
topology: tpu7x:2x2x1
jax: 0.10.0
libtpu: 0.0.40
codegen_flags: <defaults>
</compile_context>

<pallas_src>
import jax
import jax.numpy as jnp
from jax import lax
from jax.experimental import pallas as pl
from jax.experimental.pallas import tpu as pltpu


def basic_block_kernel(x_ref, w1_ref, s1_ref, b1_ref, w2_ref, s2_ref, b2_ref,
                       out_ref, xpad_ref, mid_ref):
    """One batch element per grid step (NHWC, channel = lane dim).

    x_ref   : (1, H, W, C)      input block (also re-read for the skip add)
    w1_ref  : (9*C, C)          conv1 weights, bf16, rows ordered (dh, dw, cin)
    w2_ref  : (9*C, C)          conv2 weights, bf16
    s*_ref  : (1, C)            folded BN scale (f32)
    b*_ref  : (1, C)            folded BN shift (f32)
    out_ref : (1, H, W, C)
    xpad_ref: (H+2, W+2, C)     bf16 VMEM scratch: zero-padded input
    mid_ref : (H+2, W+2, C)     bf16 VMEM scratch: zero-padded bn1/relu output
    """
    H, W, C = out_ref.shape[1], out_ref.shape[2], out_ref.shape[3]

    zrow = jnp.zeros((W + 2, C), jnp.bfloat16)
    zcol = jnp.zeros((H, 1, C), jnp.bfloat16)

    def store_padded(dst_ref, img_bf16):
        """Write a zero-padded copy of img (H, W, C) into dst (H+2, W+2, C).

        Left/right zero columns are folded into the interior row-slab store;
        only the top/bottom rows need separate zero stores."""
        dst_ref[0] = zrow
        dst_ref[H + 1] = zrow
        dst_ref[1:1 + H] = jnp.concatenate([zcol, img_bf16, zcol], axis=1)

    def conv3x3(src_ref, w_ref):
        """3x3 conv as a single MXU dot: im2col patch (H*W, 9C) built once per
        conv from nine shifted views of the padded bf16 slab, contracted
        against (9C, C) bf16 weights with f32 accumulation."""
        taps = []
        for dh in range(3):
            rows = src_ref[dh:dh + H]                  # (H, W+2, C) bf16
            for dw in range(3):
                taps.append(rows[:, dw:dw + W, :])     # (H, W, C) shifted view
        patch = jnp.concatenate(taps, axis=-1)         # (H, W, 9C) — one relayout
        patch = patch.reshape(H * W, 9 * C)
        return jnp.dot(patch, w_ref[...],
                       preferred_element_type=jnp.float32)   # (H*W, C) f32

    # --- stage the zero-padded bf16 input (single HBM read of x) -----------
    store_padded(xpad_ref, x_ref[0].astype(jnp.bfloat16))

    # --- conv1 -> bn1 -> relu (f32 elementwise epilogue) --------------------
    y = jnp.maximum(conv3x3(xpad_ref, w1_ref) * s1_ref[0] + b1_ref[0], 0.0)
    store_padded(mid_ref, y.reshape(H, W, C).astype(jnp.bfloat16))

    # --- conv2 -> bn2 -> +identity -> relu ----------------------------------
    # Identity re-read here from the resident x block (short live range).
    z = conv3x3(mid_ref, w2_ref) * s2_ref[0] + b2_ref[0]
    out_ref[0] = jnp.maximum(z.reshape(H, W, C) + x_ref[0], 0.0)


def fold_bn(gamma, beta, mean, var, eps=1e-5):
    scale = gamma / jnp.sqrt(var + eps)
    shift = beta - mean * scale
    return scale, shift


def basic_block_forward_nhwc(x_nhwc, w1, bn1, w2, bn2):
    """Core entry point, NHWC in / NHWC out (no layout transposes).

    x_nhwc : (N, H, W, C) float32
    w1, w2 : (3, 3, C, C) HWIO conv weights
    bn*    : dict(gamma, beta, mean, var) inference BatchNorm params
    """
    N, H, W, C = x_nhwc.shape
    Cout = w1.shape[-1]
    assert w1.shape == (3, 3, C, Cout) and w2.shape == (3, 3, Cout, Cout)
    assert Cout == C, "identity path requires inplanes == planes (no downsample)"

    s1, b1 = fold_bn(**bn1)
    s2, b2 = fold_bn(**bn2)
    s1 = s1.reshape(1, C).astype(jnp.float32)
    b1 = b1.reshape(1, C).astype(jnp.float32)
    s2 = s2.reshape(1, C).astype(jnp.float32)
    b2 = b2.reshape(1, C).astype(jnp.float32)

    # (dh, dw, cin, cout) -> (9*cin, cout): row order (dh, dw, cin) matches the
    # kernel's im2col lane order; bf16 halves weight DMA bytes, MXU-native.
    w1_k = w1.reshape(9 * C, C).astype(jnp.bfloat16)
    w2_k = w2.reshape(9 * C, C).astype(jnp.bfloat16)

    # --- VMEM budget: blocks, weights, scratch AND in-kernel temporaries ----
    lane = 128
    cpad = ((C + lane - 1) // lane) * lane
    k9pad = ((9 * C + lane - 1) // lane) * lane
    f32b, bf16b = 4, 2
    vmem_bytes = (
        2 * 2 * H * W * cpad * f32b              # x + out blocks, double-buffered
        + 2 * 2 * 9 * C * cpad * bf16b           # w1 + w2 blocks, double-buffered
        + 2 * (H + 2) * (W + 2) * cpad * bf16b   # xpad + mid bf16 scratch
        + H * W * k9pad * bf16b                  # im2col patch (one conv live at a time)
        + 2 * H * W * cpad * f32b                # f32 accumulator + epilogue temps
    )
    # Floor at 32 MiB (>= every generation's default scoped limit); cap at
    # 48 MiB so the same request leaves headroom on v7x's 64 MiB physical VMEM.
    vmem_limit = int(min(max(2 * vmem_bytes, 32 * 1024 * 1024),
                         48 * 1024 * 1024))

    cost = pl.CostEstimate(
        flops=2 * 2 * N * H * W * (9 * C) * C,          # two 3x3 convs, 2 flops/MAC
        transcendentals=0,
        bytes_accessed=(x_nhwc.size * 4 + N * H * W * C * 4
                        + (w1_k.size + w2_k.size) * 2 + 4 * 2 * C * 4))

    out = pl.pallas_call(
        basic_block_kernel,
        out_shape=jax.ShapeDtypeStruct((N, H, W, C), jnp.float32),
        grid_spec=pltpu.PrefetchScalarGridSpec(
            num_scalar_prefetch=0,
            grid=(N,),
            in_specs=[
                pl.BlockSpec((1, H, W, C), lambda b: (b, 0, 0, 0)),   # x (also skip)
                pl.BlockSpec((9 * C, C), lambda b: (0, 0)),           # w1 (K = 9*Cin)
                pl.BlockSpec((1, C), lambda b: (0, 0)),               # bn1 scale
                pl.BlockSpec((1, C), lambda b: (0, 0)),               # bn1 shift
                pl.BlockSpec((9 * C, C), lambda b: (0, 0)),           # w2
                pl.BlockSpec((1, C), lambda b: (0, 0)),               # bn2 scale
                pl.BlockSpec((1, C), lambda b: (0, 0)),               # bn2 shift
            ],
            out_specs=pl.BlockSpec((1, H, W, C), lambda b: (b, 0, 0, 0)),
            scratch_shapes=[
                pltpu.VMEM((H + 2, W + 2, C), jnp.bfloat16),   # padded input
                pltpu.VMEM((H + 2, W + 2, C), jnp.bfloat16),   # padded bn1/relu out
            ],
        ),
        compiler_params=pltpu.CompilerParams(
            dimension_semantics=("parallel",),
            vmem_limit_bytes=vmem_limit),
        cost_estimate=cost,
    )(x_nhwc, w1_k, s1, b1, w2_k, s2, b2)
    return out


def basic_block_forward(x_nchw, w1, bn1, w2, bn2):
    """PyTorch-parity wrapper: NCHW in / NCHW out."""
    x_nhwc = jnp.transpose(x_nchw, (0, 2, 3, 1)).astype(jnp.float32)
    out_nhwc = basic_block_forward_nhwc(x_nhwc, w1, bn1, w2, bn2)
    return jnp.transpose(out_nhwc, (0, 3, 1, 2))


def reference_forward(x_nchw, w1, bn1, w2, bn2):
    """Pure-JAX reference (bf16 matmul inputs, f32 accumulate — mirrors kernel)."""
    x = jnp.transpose(x_nchw, (0, 2, 3, 1)).astype(jnp.float32)
    dn = lax.conv_dimension_numbers(x.shape, w1.shape, ("NHWC", "HWIO", "NHWC"))
    s1, b1 = fold_bn(**bn1)
    s2, b2 = fold_bn(**bn2)
    y = lax.conv_general_dilated(x.astype(jnp.bfloat16), w1.astype(jnp.bfloat16),
                                 (1, 1), ((1, 1), (1, 1)), dimension_numbers=dn,
                                 preferred_element_type=jnp.float32)
    y = jnp.maximum(y * s1 + b1, 0.0)
    z = lax.conv_general_dilated(y.astype(jnp.bfloat16), w2.astype(jnp.bfloat16),
                                 (1, 1), ((1, 1), (1, 1)), dimension_numbers=dn,
                                 preferred_element_type=jnp.float32)
    z = jnp.maximum(z * s2 + b2 + x, 0.0)
    return jnp.transpose(z, (0, 3, 1, 2))


if __name__ == "__main__":
    key = jax.random.PRNGKey(0)
    N, C, H, W = 2, 4, 16, 16          # inplanes = planes = 4, stride = 1
    planes = C

    keys = jax.random.split(key, 8)
    x = jax.random.normal(keys[0], (N, C, H, W), jnp.float32)

    # deterministic parameter init (HWIO conv weights, BN params)
    w1 = jax.random.normal(keys[1], (3, 3, C, planes), jnp.float32) * 0.1
    w2 = jax.random.normal(keys[2], (3, 3, planes, planes), jnp.float32) * 0.1
    bn1 = dict(
        gamma=1.0 + 0.1 * jax.random.normal(keys[3], (planes,), jnp.float32),
        beta=0.1 * jax.random.normal(keys[4], (planes,), jnp.float32),
        mean=0.05 * jax.random.normal(keys[5], (planes,), jnp.float32),
        var=jnp.abs(1.0 + 0.1 * jax.random.normal(keys[6], (planes,), jnp.float32)),
    )
    bn2 = dict(
        gamma=1.0 + 0.1 * jax.random.normal(keys[7], (planes,), jnp.float32),
        beta=jnp.zeros((planes,), jnp.float32),
        mean=jnp.zeros((planes,), jnp.float32),
        var=jnp.ones((planes,), jnp.float32),
    )

    out = basic_block_forward(x, w1, bn1, w2, bn2)
    out = jax.block_until_ready(out)

    ref = jax.block_until_ready(reference_forward(x, w1, bn1, w2, bn2))
    assert out.shape == (N, C, H, W)
    # bf16 matmul inputs -> tolerance loosened vs a pure-f32 BasicBlock
    assert jnp.allclose(out, ref, atol=1e-2, rtol=1e-2)

    print("KERNEL_OK")
</pallas_src>

<mosaic_0001>
module attributes {stable_mosaic.version = 11 : i64} {
  func.func @basic_block_kernel(%arg0: i32, %arg1: memref<1x16x16x4xf32, #tpu.memory_space<vmem>>, %arg2: memref<36x4xbf16, #tpu.memory_space<vmem>>, %arg3: memref<1x4xf32, #tpu.memory_space<vmem>>, %arg4: memref<1x4xf32, #tpu.memory_space<vmem>>, %arg5: memref<36x4xbf16, #tpu.memory_space<vmem>>, %arg6: memref<1x4xf32, #tpu.memory_space<vmem>>, %arg7: memref<1x4xf32, #tpu.memory_space<vmem>>, %arg8: memref<1x16x16x4xf32, #tpu.memory_space<vmem>>, %arg9: memref<18x18x4xbf16, #tpu.memory_space<vmem>>, %arg10: memref<18x18x4xbf16, #tpu.memory_space<vmem>>) attributes {dimension_semantics = [#tpu.dimension_semantics<parallel>], iteration_bounds = array<i64: 2>, scalar_prefetch = 0 : i64, scratch_operands = 2 : i64, tpu.core_type = #tpu.core_type<tc>, window_params = [{transform_indices = @transform_0, window_bounds = array<i64: 1, 16, 16, 4>}, {pipeline_mode = #tpu.pipeline_mode<synchronous>, transform_indices = @transform_1, window_bounds = array<i64: 36, 4>}, {pipeline_mode = #tpu.pipeline_mode<synchronous>, transform_indices = @transform_2, window_bounds = array<i64: 1, 4>}, {pipeline_mode = #tpu.pipeline_mode<synchronous>, transform_indices = @transform_3, window_bounds = array<i64: 1, 4>}, {pipeline_mode = #tpu.pipeline_mode<synchronous>, transform_indices = @transform_4, window_bounds = array<i64: 36, 4>}, {pipeline_mode = #tpu.pipeline_mode<synchronous>, transform_indices = @transform_5, window_bounds = array<i64: 1, 4>}, {pipeline_mode = #tpu.pipeline_mode<synchronous>, transform_indices = @transform_6, window_bounds = array<i64: 1, 4>}, {transform_indices = @transform_7, window_bounds = array<i64: 1, 16, 16, 4>}]} {
    %cst = arith.constant 0.000000e+00 : bf16
    %0 = vector.broadcast %cst : bf16 to vector<18x4xbf16>
    %cst_0 = arith.constant 0.000000e+00 : bf16
    %1 = vector.broadcast %cst_0 : bf16 to vector<16x1x4xbf16>
    %c0 = arith.constant 0 : index
    %c0_1 = arith.constant 0 : index
    %c0_2 = arith.constant 0 : index
    %c0_3 = arith.constant 0 : index
    %2 = vector.load %arg1[%c0, %c0_1, %c0_2, %c0_3] : memref<1x16x16x4xf32, #tpu.memory_space<vmem>>, vector<1x16x16x4xf32>
    %3 = vector.shape_cast %2 : vector<1x16x16x4xf32> to vector<16x16x4xf32>
    %4 = arith.truncf %3 : vector<16x16x4xf32> to vector<16x16x4xbf16>
    %c0_4 = arith.constant 0 : index
    %c0_5 = arith.constant 0 : index
    %c0_6 = arith.constant 0 : index
    %5 = vector.load %arg9[%c0_4, %c0_5, %c0_6] : memref<18x18x4xbf16, #tpu.memory_space<vmem>>, vector<1x18x4xbf16>
    %6 = vector.shape_cast %5 : vector<1x18x4xbf16> to vector<18x4xbf16>
    %7 = vector.shape_cast %0 : vector<18x4xbf16> to vector<1x18x4xbf16>
    tpu.vector_store %arg9[%c0_4, %c0_5, %c0_6], %7 {strides = array<i32>} : memref<18x18x4xbf16, #tpu.memory_space<vmem>>, vector<1x18x4xbf16>,
    %c17 = arith.constant 17 : index
    %c0_7 = arith.constant 0 : index
    %c0_8 = arith.constant 0 : index
    %8 = vector.load %arg9[%c17, %c0_7, %c0_8] : memref<18x18x4xbf16, #tpu.memory_space<vmem>>, vector<1x18x4xbf16>
    %9 = vector.shape_cast %8 : vector<1x18x4xbf16> to vector<18x4xbf16>
    %10 = vector.shape_cast %0 : vector<18x4xbf16> to vector<1x18x4xbf16>
    tpu.vector_store %arg9[%c17, %c0_7, %c0_8], %10 {strides = array<i32>} : memref<18x18x4xbf16, #tpu.memory_space<vmem>>, vector<1x18x4xbf16>,
    %11 = tpu.concatenate %1, %4, %1 in 1 : vector<16x1x4xbf16>, vector<16x16x4xbf16>, vector<16x1x4xbf16> -> vector<16x18x4xbf16>
    %c1 = arith.constant 1 : index
    %c0_9 = arith.constant 0 : index
    %c0_10 = arith.constant 0 : index
    %12 = vector.load %arg9[%c1, %c0_9, %c0_10] : memref<18x18x4xbf16, #tpu.memory_space<vmem>>, vector<16x18x4xbf16>
    tpu.vector_store %arg9[%c1, %c0_9, %c0_10], %11 {strides = array<i32>} : memref<18x18x4xbf16, #tpu.memory_space<vmem>>, vector<16x18x4xbf16>,
    %c0_11 = arith.constant 0 : index
    %c0_12 = arith.constant 0 : index
    %c0_13 = arith.constant 0 : index
    %13 = vector.load %arg9[%c0_11, %c0_12, %c0_13] : memref<18x18x4xbf16, #tpu.memory_space<vmem>>, vector<16x18x4xbf16>
    %14 = vector.extract_strided_slice %13 {offsets = [0, 0, 0], sizes = [16, 16, 4], strides = [1, 1, 1]} : vector<16x18x4xbf16> to vector<16x16x4xbf16>
    %15 = vector.extract_strided_slice %13 {offsets = [0, 1, 0], sizes = [16, 16, 4], strides = [1, 1, 1]} : vector<16x18x4xbf16> to vector<16x16x4xbf16>
    %16 = vector.extract_strided_slice %13 {offsets = [0, 2, 0], sizes = [16, 16, 4], strides = [1, 1, 1]} : vector<16x18x4xbf16> to vector<16x16x4xbf16>
    %c1_14 = arith.constant 1 : index
    %c0_15 = arith.constant 0 : index
    %c0_16 = arith.constant 0 : index
    %17 = vector.load %arg9[%c1_14, %c0_15, %c0_16] : memref<18x18x4xbf16, #tpu.memory_space<vmem>>, vector<16x18x4xbf16>
    %18 = vector.extract_strided_slice %17 {offsets = [0, 0, 0], sizes = [16, 16, 4], strides = [1, 1, 1]} : vector<16x18x4xbf16> to vector<16x16x4xbf16>
    %19 = vector.extract_strided_slice %17 {offsets = [0, 1, 0], sizes = [16, 16, 4], strides = [1, 1, 1]} : vector<16x18x4xbf16> to vector<16x16x4xbf16>
    %20 = vector.extract_strided_slice %17 {offsets = [0, 2, 0], sizes = [16, 16, 4], strides = [1, 1, 1]} : vector<16x18x4xbf16> to vector<16x16x4xbf16>
    %c2 = arith.constant 2 : index
    %c0_17 = arith.constant 0 : index
    %c0_18 = arith.constant 0 : index
    %21 = vector.load %arg9[%c2, %c0_17, %c0_18] : memref<18x18x4xbf16, #tpu.memory_space<vmem>>, vector<16x18x4xbf16>
    %22 = vector.extract_strided_slice %21 {offsets = [0, 0, 0], sizes = [16, 16, 4], strides = [1, 1, 1]} : vector<16x18x4xbf16> to vector<16x16x4xbf16>
    %23 = vector.extract_strided_slice %21 {offsets = [0, 1, 0], sizes = [16, 16, 4], strides = [1, 1, 1]} : vector<16x18x4xbf16> to vector<16x16x4xbf16>
    %24 = vector.extract_strided_slice %21 {offsets = [0, 2, 0], sizes = [16, 16, 4], strides = [1, 1, 1]} : vector<16x18x4xbf16> to vector<16x16x4xbf16>
    %25 = tpu.concatenate %14, %15, %16, %18, %19, %20, %22, %23, %24 in 2 : vector<16x16x4xbf16>, vector<16x16x4xbf16>, vector<16x16x4xbf16>, vector<16x16x4xbf16>, vector<16x16x4xbf16>, vector<16x16x4xbf16>, vector<16x16x4xbf16>, vector<16x16x4xbf16>, vector<16x16x4xbf16> -> vector<16x16x36xbf16>
    %26 = vector.shape_cast %25 : vector<16x16x36xbf16> to vector<256x36xbf16>
    %c0_19 = arith.constant 0 : index
    %c0_20 = arith.constant 0 : index
    %27 = vector.load %arg2[%c0_19, %c0_20] : memref<36x4xbf16, #tpu.memory_space<vmem>>, vector<36x4xbf16>
    %cst_21 = arith.constant dense<0.000000e+00> : vector<256x4xf32>
    %28 = tpu.matmul %26, %27, %cst_21 {dimension_numbers = #tpu.dot_dimension_numbers<[1], [0], [0], [1], [0, 0, 1, 1], [], []>} : vector<256x36xbf16>, vector<36x4xbf16>, vector<256x4xf32> -> vector<256x4xf32>
    %c0_22 = arith.constant 0 : index
    %c0_23 = arith.constant 0 : index
    %29 = vector.load %arg3[%c0_22, %c0_23] : memref<1x4xf32, #tpu.memory_space<vmem>>, vector<1x4xf32>
    %30 = vector.shape_cast %29 : vector<1x4xf32> to vector<4xf32>
    %31 = vector.shape_cast %30 : vector<4xf32> to vector<1x4xf32>
    %32 = vector.broadcast %31 : vector<1x4xf32> to vector<256x4xf32>
    %33 = arith.mulf %28, %32 : vector<256x4xf32>
    %c0_24 = arith.constant 0 : index
    %c0_25 = arith.constant 0 : index
    %34 = vector.load %arg4[%c0_24, %c0_25] : memref<1x4xf32, #tpu.memory_space<vmem>>, vector<1x4xf32>
    %35 = vector.shape_cast %34 : vector<1x4xf32> to vector<4xf32>
    %36 = vector.shape_cast %35 : vector<4xf32> to vector<1x4xf32>
    %37 = vector.broadcast %36 : vector<1x4xf32> to vector<256x4xf32>
    %38 = arith.addf %33, %37 : vector<256x4xf32>
    %cst_26 = arith.constant 0.000000e+00 : f32
    %39 = vector.broadcast %cst_26 : f32 to vector<256x4xf32>
    %40 = arith.maximumf %38, %39 : vector<256x4xf32>
    %41 = vector.shape_cast %40 : vector<256x4xf32> to vector<16x16x4xf32>
    %42 = arith.truncf %41 : vector<16x16x4xf32> to vector<16x16x4xbf16>
    %c0_27 = arith.constant 0 : index
    %c0_28 = arith.constant 0 : index
    %c0_29 = arith.constant 0 : index
    %43 = vector.load %arg10[%c0_27, %c0_28, %c0_29] : memref<18x18x4xbf16, #tpu.memory_space<vmem>>, vector<1x18x4xbf16>
    %44 = vector.shape_cast %43 : vector<1x18x4xbf16> to vector<18x4xbf16>
    %45 = vector.shape_cast %0 : vector<18x4xbf16> to vector<1x18x4xbf16>
    tpu.vector_store %arg10[%c0_27, %c0_28, %c0_29], %45 {strides = array<i32>} : memref<18x18x4xbf16, #tpu.memory_space<vmem>>, vector<1x18x4xbf16>,
    %c17_30 = arith.constant 17 : index
    %c0_31 = arith.constant 0 : index
    %c0_32 = arith.constant 0 : index
    %46 = vector.load %arg10[%c17_30, %c0_31, %c0_32] : memref<18x18x4xbf16, #tpu.memory_space<vmem>>, vector<1x18x4xbf16>
    %47 = vector.shape_cast %46 : vector<1x18x4xbf16> to vector<18x4xbf16>
    %48 = vector.shape_cast %0 : vector<18x4xbf16> to vector<1x18x4xbf16>
    tpu.vector_store %arg10[%c17_30, %c0_31, %c0_32], %48 {strides = array<i32>} : memref<18x18x4xbf16, #tpu.memory_space<vmem>>, vector<1x18x4xbf16>,
    %49 = tpu.concatenate %1, %42, %1 in 1 : vector<16x1x4xbf16>, vector<16x16x4xbf16>, vector<16x1x4xbf16> -> vector<16x18x4xbf16>
    %c1_33 = arith.constant 1 : index
    %c0_34 = arith.constant 0 : index
    %c0_35 = arith.constant 0 : index
    %50 = vector.load %arg10[%c1_33, %c0_34, %c0_35] : memref<18x18x4xbf16, #tpu.memory_space<vmem>>, vector<16x18x4xbf16>
    tpu.vector_store %arg10[%c1_33, %c0_34, %c0_35], %49 {strides = array<i32>} : memref<18x18x4xbf16, #tpu.memory_space<vmem>>, vector<16x18x4xbf16>,
    %c0_36 = arith.constant 0 : index
    %c0_37 = arith.constant 0 : index
    %c0_38 = arith.constant 0 : index
    %51 = vector.load %arg10[%c0_36, %c0_37, %c0_38] : memref<18x18x4xbf16, #tpu.memory_space<vmem>>, vector<16x18x4xbf16>
    %52 = vector.extract_strided_slice %51 {offsets = [0, 0, 0], sizes = [16, 16, 4], strides = [1, 1, 1]} : vector<16x18x4xbf16> to vector<16x16x4xbf16>
    %53 = vector.extract_strided_slice %51 {offsets = [0, 1, 0], sizes = [16, 16, 4], strides = [1, 1, 1]} : vector<16x18x4xbf16> to vector<16x16x4xbf16>
    %54 = vector.extract_strided_slice %51 {offsets = [0, 2, 0], sizes = [16, 16, 4], strides = [1, 1, 1]} : vector<16x18x4xbf16> to vector<16x16x4xbf16>
    %c1_39 = arith.constant 1 : index
    %c0_40 = arith.constant 0 : index
    %c0_41 = arith.constant 0 : index
    %55 = vector.load %arg10[%c1_39, %c0_40, %c0_41] : memref<18x18x4xbf16, #tpu.memory_space<vmem>>, vector<16x18x4xbf16>
    %56 = vector.extract_strided_slice %55 {offsets = [0, 0, 0], sizes = [16, 16, 4], strides = [1, 1, 1]} : vector<16x18x4xbf16> to vector<16x16x4xbf16>
    %57 = vector.extract_strided_slice %55 {offsets = [0, 1, 0], sizes = [16, 16, 4], strides = [1, 1, 1]} : vector<16x18x4xbf16> to vector<16x16x4xbf16>
    %58 = vector.extract_strided_slice %55 {offsets = [0, 2, 0], sizes = [16, 16, 4], strides = [1, 1, 1]} : vector<16x18x4xbf16> to vector<16x16x4xbf16>
    %c2_42 = arith.constant 2 : index
    %c0_43 = arith.constant 0 : index
    %c0_44 = arith.constant 0 : index
    %59 = vector.load %arg10[%c2_42, %c0_43, %c0_44] : memref<18x18x4xbf16, #tpu.memory_space<vmem>>, vector<16x18x4xbf16>
    %60 = vector.extract_strided_slice %59 {offsets = [0, 0, 0], sizes = [16, 16, 4], strides = [1, 1, 1]} : vector<16x18x4xbf16> to vector<16x16x4xbf16>
    %61 = vector.extract_strided_slice %59 {offsets = [0, 1, 0], sizes = [16, 16, 4], strides = [1, 1, 1]} : vector<16x18x4xbf16> to vector<16x16x4xbf16>
    %62 = vector.extract_strided_slice %59 {offsets = [0, 2, 0], sizes = [16, 16, 4], strides = [1, 1, 1]} : vector<16x18x4xbf16> to vector<16x16x4xbf16>
    %63 = tpu.concatenate %52, %53, %54, %56, %57, %58, %60, %61, %62 in 2 : vector<16x16x4xbf16>, vector<16x16x4xbf16>, vector<16x16x4xbf16>, vector<16x16x4xbf16>, vector<16x16x4xbf16>, vector<16x16x4xbf16>, vector<16x16x4xbf16>, vector<16x16x4xbf16>, vector<16x16x4xbf16> -> vector<16x16x36xbf16>
    %64 = vector.shape_cast %63 : vector<16x16x36xbf16> to vector<256x36xbf16>
    %c0_45 = arith.constant 0 : index
    %c0_46 = arith.constant 0 : index
    %65 = vector.load %arg5[%c0_45, %c0_46] : memref<36x4xbf16, #tpu.memory_space<vmem>>, vector<36x4xbf16>
    %cst_47 = arith.constant dense<0.000000e+00> : vector<256x4xf32>
    %66 = tpu.matmul %64, %65, %cst_47 {dimension_numbers = #tpu.dot_dimension_numbers<[1], [0], [0], [1], [0, 0, 1, 1], [], []>} : vector<256x36xbf16>, vector<36x4xbf16>, vector<256x4xf32> -> vector<256x4xf32>
    %c0_48 = arith.constant 0 : index
    %c0_49 = arith.constant 0 : index
    %67 = vector.load %arg6[%c0_48, %c0_49] : memref<1x4xf32, #tpu.memory_space<vmem>>, vector<1x4xf32>
    %68 = vector.shape_cast %67 : vector<1x4xf32> to vector<4xf32>
    %69 = vector.shape_cast %68 : vector<4xf32> to vector<1x4xf32>
    %70 = vector.broadcast %69 : vector<1x4xf32> to vector<256x4xf32>
    %71 = arith.mulf %66, %70 : vector<256x4xf32>
    %c0_50 = arith.constant 0 : index
    %c0_51 = arith.constant 0 : index
    %72 = vector.load %arg7[%c0_50, %c0_51] : memref<1x4xf32, #tpu.memory_space<vmem>>, vector<1x4xf32>
    %73 = vector.shape_cast %72 : vector<1x4xf32> to vector<4xf32>
    %74 = vector.shape_cast %73 : vector<4xf32> to vector<1x4xf32>
    %75 = vector.broadcast %74 : vector<1x4xf32> to vector<256x4xf32>
    %76 = arith.addf %71, %75 : vector<256x4xf32>
    %77 = vector.shape_cast %76 : vector<256x4xf32> to vector<16x16x4xf32>
    %c0_52 = arith.constant 0 : index
    %c0_53 = arith.constant 0 : index
    %c0_54 = arith.constant 0 : index
    %c0_55 = arith.constant 0 : index
    %78 = vector.load %arg1[%c0_52, %c0_53, %c0_54, %c0_55] : memref<1x16x16x4xf32, #tpu.memory_space<vmem>>, vector<1x16x16x4xf32>
    %79 = vector.shape_cast %78 : vector<1x16x16x4xf32> to vector<16x16x4xf32>
    %80 = arith.addf %77, %79 : vector<16x16x4xf32>
    %cst_56 = arith.constant 0.000000e+00 : f32
    %81 = vector.broadcast %cst_56 : f32 to vector<16x16x4xf32>
    %82 = arith.maximumf %80, %81 : vector<16x16x4xf32>
    %c0_57 = arith.constant 0 : index
    %c0_58 = arith.constant 0 : index
    %c0_59 = arith.constant 0 : index
    %c0_60 = arith.constant 0 : index
    %83 = vector.load %arg8[%c0_57, %c0_58, %c0_59, %c0_60] : memref<1x16x16x4xf32, #tpu.memory_space<vmem>>, vector<1x16x16x4xf32>
    %84 = vector.shape_cast %83 : vector<1x16x16x4xf32> to vector<16x16x4xf32>
    %85 = vector.shape_cast %82 : vector<16x16x4xf32> to vector<1x16x16x4xf32>
    tpu.vector_store %arg8[%c0_57, %c0_58, %c0_59, %c0_60], %85 {strides = array<i32>} : memref<1x16x16x4xf32, #tpu.memory_space<vmem>>, vector<1x16x16x4xf32>,
    return
  }
  func.func @transform_0(%arg0: i32) -> (i32, i32, i32, i32) {
    %c0_i32 = arith.constant 0 : i32
    %c0_i32_0 = arith.constant 0 : i32
    %c0_i32_1 = arith.constant 0 : i32
    %c0_i32_2 = arith.constant 0 : i32
    return %arg0, %c0_i32, %c0_i32_0, %c0_i32_1 : i32, i32, i32, i32
  }
  func.func @transform_1(%arg0: i32) -> (i32, i32) {
    %c0_i32 = arith.constant 0 : i32
    %c0_i32_0 = arith.constant 0 : i32
    %c0_i32_1 = arith.constant 0 : i32
    return %c0_i32, %c0_i32_0 : i32, i32
  }
  func.func @transform_2(%arg0: i32) -> (i32, i32) {
    %c0_i32 = arith.constant 0 : i32
    %c0_i32_0 = arith.constant 0 : i32
    %c0_i32_1 = arith.constant 0 : i32
    return %c0_i32, %c0_i32_0 : i32, i32
  }
  func.func @transform_3(%arg0: i32) -> (i32, i32) {
    %c0_i32 = arith.constant 0 : i32
    %c0_i32_0 = arith.constant 0 : i32
    %c0_i32_1 = arith.constant 0 : i32
    return %c0_i32, %c0_i32_0 : i32, i32
  }
  func.func @transform_4(%arg0: i32) -> (i32, i32) {
    %c0_i32 = arith.constant 0 : i32
    %c0_i32_0 = arith.constant 0 : i32
    %c0_i32_1 = arith.constant 0 : i32
    return %c0_i32, %c0_i32_0 : i32, i32
  }
  func.func @transform_5(%arg0: i32) -> (i32, i32) {
    %c0_i32 = arith.constant 0 : i32
    %c0_i32_0 = arith.constant 0 : i32
    %c0_i32_1 = arith.constant 0 : i32
    return %c0_i32, %c0_i32_0 : i32, i32
  }
  func.func @transform_6(%arg0: i32) -> (i32, i32) {
    %c0_i32 = arith.constant 0 : i32
    %c0_i32_0 = arith.constant 0 : i32
    %c0_i32_1 = arith.constant 0 : i32
    return %c0_i32, %c0_i32_0 : i32, i32
  }
  func.func @transform_7(%arg0: i32) -> (i32, i32, i32, i32) {
    %c0_i32 = arith.constant 0 : i32
    %c0_i32_0 = arith.constant 0 : i32
    %c0_i32_1 = arith.constant 0 : i32
    %c0_i32_2 = arith.constant 0 : i32
    return %arg0, %c0_i32, %c0_i32_0, %c0_i32_1 : i32, i32, i32, i32
  }
}

</mosaic_0001>

<llo_original>
// kernel: tpu_custom_call.1
$region0: #{tpu_custom_call.1}
  #allocation0 [shape = 'u32[]', space=smem, size = 0x4, offset = 0x4, fixed_abs, tag = 'smem constant byte address 0x4 - core index']
  #allocation1 [shape = 'u32[144,128]{1,0:T(1,128)}', space=vmem, size = 0x12000, scoped, tag = 'internal scratch']
  #allocation2 [shape = 'bf16[18,18,4]{2,1,0:T(8,128)(2,1)}', space=vmem, size = 0x1b000, scoped, tag = 'scratch operand']
  #allocation3 [shape = 'bf16[18,18,4]{2,1,0:T(8,128)(2,1)}', space=vmem, size = 0x1b000, scoped, tag = 'scratch operand']
  %s0 = inlined_call_operand.vmem [shape: f32[2,16,16,4], index: 0, kind: input, shape index: {}]
  %s1 = inlined_call_operand.vmem [shape: bf16[36,4], index: 1, kind: input, shape index: {}]
  %s2 = inlined_call_operand.vmem [shape: f32[1,4], index: 2, kind: input, shape index: {}]
  %s3 = inlined_call_operand.vmem [shape: f32[1,4], index: 3, kind: input, shape index: {}]
  %s4 = inlined_call_operand.vmem [shape: bf16[36,4], index: 4, kind: input, shape index: {}]
  %s5 = inlined_call_operand.vmem [shape: f32[1,4], index: 5, kind: input, shape index: {}]
  %s6 = inlined_call_operand.vmem [shape: f32[1,4], index: 6, kind: input, shape index: {}]
  %s7 = inlined_call_operand.vmem [shape: f32[2,16,16,4], index: 7, kind: output, shape index: {}]
  %s8 = sld [smem:[#allocation0]]
  $region61: #{tpu_custom_call.1} parent=0
    _
  %s10 = ssub.s32 1, %s8
  %s11 = scalar_select 0, %s10, %s8
  loop: start=0, step=1, limit=4
  $region2: #{tpu_custom_call.1} parent=0 // loop_pre_header
    _
  $region3: #{tpu_custom_call.1} parent=0 // loop_header
    %s13 = sphi 0, %s17
    %p14 = scmp.ge.s32.totalorder %s13, 4
    %s23 = sphi 0, %s25
    %s26 = sphi 0, %s23
    %s27 = sphi 0, %s26
    %s43 = sphi 0, %s27
    %s47 = sphi 0, %s47
    %s49 = sphi 0, %s47
    %s50 = sphi 0, %s49
    %s64 = sphi 0, %s50
    %s68 = sphi 0, %s68
    %s70 = sphi 0, %s68
    %s71 = sphi 0, %s70
    %s85 = sphi 0, %s71
    %s89 = sphi 0, %s89
    %s91 = sphi 0, %s89
    %s92 = sphi 0, %s91
    %s106 = sphi 0, %s92
    %s110 = sphi 0, %s110
    %s112 = sphi 0, %s110
    %s113 = sphi 0, %s112
    %s127 = sphi 0, %s113
    %s131 = sphi 0, %s131
    %s133 = sphi 0, %s131
    %s134 = sphi 0, %s133
    %s148 = sphi 0, %s134
    %s152 = sphi 0, %s152
    %s154 = sphi 0, %s152
    %s155 = sphi 0, %s154
    %s169 = sphi 0, %s155
    %s175 = sphi 0, %s177
    %s178 = sphi 0, %s175
    %s179 = sphi 0, %s178
    %s195 = sphi 0, %s179
  $region4: #{tpu_custom_call.1} parent=0 // loop_header_branch
    %16 = sbr.rel (%p14) target = $region8
  $region5: #{tpu_custom_call.1} parent=0 // loop_body
    %s18 = ssub.s32 %s13, 1
    %s19 = ssub.s32 %s13, 2
    %s20 = sadd.s32 %s13, 1
    %s21 = ssub.s32 %s13, %s20
    %p22 = scmp.eq.s32.totalorder %s21, 0
    %s24 = sadd.s32 %s23, 1
    %s25 = scalar_select %p22, %s23, %s24
    %p28 = pneg %p22
    %p29 = scmp.eq.s32.totalorder %s13, 1
    %p30 = por %p28, %p29
    %p31 = scmp.ne.s32.totalorder %s23, %s26
    %p32 = scmp.eq.s32.totalorder %s13, 0
    %p33 = por %p31, %p32
    %p34 = scmp.ne.s32.totalorder %s23, %s26
    %p35 = scmp.eq.s32.totalorder %s18, 1
    %p36 = por %p34, %p35
    %p37 = scmp.ne.s32.totalorder %s26, %s27
    %p38 = scmp.eq.s32.totalorder %s18, 0
    %p39 = por %p37, %p38
    %p40 = scmp.ne.s32.totalorder %s26, %s27
    %p41 = scmp.eq.s32.totalorder %s19, 1
    %p42 = por %p40, %p41
    %p44 = scmp.ne.s32.totalorder %s27, %s43
    %p45 = scmp.eq.s32.totalorder %s19, 0
    %p46 = por %p44, %p45
    %s48 = sadd.s32 %s47, 1
    %p51 = scmp.eq.s32.totalorder %s13, 1
    %p52 = scmp.ne.s32.totalorder %s47, %s49
    %p53 = scmp.eq.s32.totalorder %s13, 0
    %p54 = por %p52, %p53
    %p55 = scmp.ne.s32.totalorder %s47, %s49
    %p56 = scmp.eq.s32.totalorder %s18, 1
    %p57 = por %p55, %p56
    %p58 = scmp.ne.s32.totalorder %s49, %s50
    %p59 = scmp.eq.s32.totalorder %s18, 0
    %p60 = por %p58, %p59
    %p61 = scmp.ne.s32.totalorder %s49, %s50
    %p62 = scmp.eq.s32.totalorder %s19, 1
    %p63 = por %p61, %p62
    %p65 = scmp.ne.s32.totalorder %s50, %s64
    %p66 = scmp.eq.s32.totalorder %s19, 0
    %p67 = por %p65, %p66
    %s69 = sadd.s32 %s68, 1
    %p72 = scmp.eq.s32.totalorder %s13, 1
    %p73 = scmp.ne.s32.totalorder %s68, %s70
    %p74 = scmp.eq.s32.totalorder %s13, 0
    %p75 = por %p73, %p74
    %p76 = scmp.ne.s32.totalorder %s68, %s70
    %p77 = scmp.eq.s32.totalorder %s18, 1
    %p78 = por %p76, %p77
    %p79 = scmp.ne.s32.totalorder %s70, %s71
    %p80 = scmp.eq.s32.totalorder %s18, 0
    %p81 = por %p79, %p80
    %p82 = scmp.ne.s32.totalorder %s70, %s71
    %p83 = scmp.eq.s32.totalorder %s19, 1
    %p84 = por %p82, %p83
    %p86 = scmp.ne.s32.totalorder %s71, %s85
    %p87 = scmp.eq.s32.totalorder %s19, 0
    %p88 = por %p86, %p87
    %s90 = sadd.s32 %s89, 1
    %p93 = scmp.eq.s32.totalorder %s13, 1
    %p94 = scmp.ne.s32.totalorder %s89, %s91
    %p95 = scmp.eq.s32.totalorder %s13, 0
    %p96 = por %p94, %p95
    %p97 = scmp.ne.s32.totalorder %s89, %s91
    %p98 = scmp.eq.s32.totalorder %s18, 1
    %p99 = por %p97, %p98
    %p100 = scmp.ne.s32.totalorder %s91, %s92
    %p101 = scmp.eq.s32.totalorder %s18, 0
    %p102 = por %p100, %p101
    %p103 = scmp.ne.s32.totalorder %s91, %s92
    %p104 = scmp.eq.s32.totalorder %s19, 1
    %p105 = por %p103, %p104
    %p107 = scmp.ne.s32.totalorder %s92, %s106
    %p108 = scmp.eq.s32.totalorder %s19, 0
    %p109 = por %p107, %p108
    %s111 = sadd.s32 %s110, 1
    %p114 = scmp.eq.s32.totalorder %s13, 1
    %p115 = scmp.ne.s32.totalorder %s110, %s112
    %p116 = scmp.eq.s32.totalorder %s13, 0
    %p117 = por %p115, %p116
    %p118 = scmp.ne.s32.totalorder %s110, %s112
    %p119 = scmp.eq.s32.totalorder %s18, 1
    %p120 = por %p118, %p119
    %p121 = scmp.ne.s32.totalorder %s112, %s113
    %p122 = scmp.eq.s32.totalorder %s18, 0
    %p123 = por %p121, %p122
    %p124 = scmp.ne.s32.totalorder %s112, %s113
    %p125 = scmp.eq.s32.totalorder %s19, 1
    %p126 = por %p124, %p125
    %p128 = scmp.ne.s32.totalorder %s113, %s127
    %p129 = scmp.eq.s32.totalorder %s19, 0
    %p130 = por %p128, %p129
    %s132 = sadd.s32 %s131, 1
    %p135 = scmp.eq.s32.totalorder %s13, 1
    %p136 = scmp.ne.s32.totalorder %s131, %s133
    %p137 = scmp.eq.s32.totalorder %s13, 0
    %p138 = por %p136, %p137
    %p139 = scmp.ne.s32.totalorder %s131, %s133
    %p140 = scmp.eq.s32.totalorder %s18, 1
    %p141 = por %p139, %p140
    %p142 = scmp.ne.s32.totalorder %s133, %s134
    %p143 = scmp.eq.s32.totalorder %s18, 0
    %p144 = por %p142, %p143
    %p145 = scmp.ne.s32.totalorder %s133, %s134
    %p146 = scmp.eq.s32.totalorder %s19, 1
    %p147 = por %p145, %p146
    %p149 = scmp.ne.s32.totalorder %s134, %s148
    %p150 = scmp.eq.s32.totalorder %s19, 0
    %p151 = por %p149, %p150
    %s153 = sadd.s32 %s152, 1
    %p156 = scmp.eq.s32.totalorder %s13, 1
    %p157 = scmp.ne.s32.totalorder %s152, %s154
    %p158 = scmp.eq.s32.totalorder %s13, 0
    %p159 = por %p157, %p158
    %p160 = scmp.ne.s32.totalorder %s152, %s154
    %p161 = scmp.eq.s32.totalorder %s18, 1
    %p162 = por %p160, %p161
    %p163 = scmp.ne.s32.totalorder %s154, %s155
    %p164 = scmp.eq.s32.totalorder %s18, 0
    %p165 = por %p163, %p164
    %p166 = scmp.ne.s32.totalorder %s154, %s155
    %p167 = scmp.eq.s32.totalorder %s19, 1
    %p168 = por %p166, %p167
    %p170 = scmp.ne.s32.totalorder %s155, %s169
    %p171 = scmp.eq.s32.totalorder %s19, 0
    %p172 = por %p170, %p171
    %s173 = ssub.s32 %s13, %s20
    %p174 = scmp.eq.s32.totalorder %s173, 0
    %s176 = sadd.s32 %s175, 1
    %s177 = scalar_select %p174, %s175, %s176
    %p180 = pneg %p174
    %p181 = scmp.eq.s32.totalorder %s13, 1
    %p182 = por %p180, %p181
    %p183 = scmp.ne.s32.totalorder %s175, %s178
    %p184 = scmp.eq.s32.totalorder %s13, 0
    %p185 = por %p183, %p184
    %p186 = scmp.ne.s32.totalorder %s175, %s178
    %p187 = scmp.eq.s32.totalorder %s18, 1
    %p188 = por %p186, %p187
    %p189 = scmp.ne.s32.totalorder %s178, %s179
    %p190 = scmp.eq.s32.totalorder %s18, 0
    %p191 = por %p189, %p190
    %p192 = scmp.ne.s32.totalorder %s178, %s179
    %p193 = scmp.eq.s32.totalorder %s19, 1
    %p194 = por %p192, %p193
    %p196 = scmp.ne.s32.totalorder %s179, %s195
    %p197 = scmp.eq.s32.totalorder %s19, 0
    %p198 = por %p196, %p197
    %p199 = scmp.le.s32.totalorder 1, %s13
    %p200 = scmp.lt.s32.totalorder %s13, 3
    %p201 = pnand %p199, %p200
    %p202 = pneg %p201
    // Predicated region
    $region9: #{tpu_custom_call.1} parent=5 // pred_check
      _
    $region10: #{tpu_custom_call.1} parent=5 // pred_check_branch
      %204 = sbr.rel (%p201) target = $region12
    $region11: #{tpu_custom_call.1} parent=5 // pred_region
      %s205 = ssub.s32 %s13, 1
      // Predicated region
      $region13: #{tpu_custom_call.1} parent=11 // pred_check
        %p206 = pneg %p60
      $region14: #{tpu_custom_call.1} parent=11 // pred_check_branch
        %208 = sbr.rel (%p206) target = $region16
      $region15: #{tpu_custom_call.1} parent=11 // pred_region
        _
      $region16: #{tpu_custom_call.1} parent=11 // pred_fallthru
        _
      // Predicated region
      $region17: #{tpu_custom_call.1} parent=11 // pred_check
        %p209 = pneg %p81
      $region18: #{tpu_custom_call.1} parent=11 // pred_check_branch
        %211 = sbr.rel (%p209) target = $region20
      $region19: #{tpu_custom_call.1} parent=11 // pred_region
        _
      $region20: #{tpu_custom_call.1} parent=11 // pred_fallthru
        _
      // Predicated region
      $region21: #{tpu_custom_call.1} parent=11 // pred_check
        %p212 = pneg %p102
      $region22: #{tpu_custom_call.1} parent=11 // pred_check_branch
        %214 = sbr.rel (%p212) target = $region24
      $region23: #{tpu_custom_call.1} parent=11 // pred_region
        _
      $region24: #{tpu_custom_call.1} parent=11 // pred_fallthru
        _
      // Predicated region
      $region25: #{tpu_custom_call.1} parent=11 // pred_check
        %p215 = pneg %p123
      $region26: #{tpu_custom_call.1} parent=11 // pred_check_branch
        %217 = sbr.rel (%p215) target = $region28
      $region27: #{tpu_custom_call.1} parent=11 // pred_region
        _
      $region28: #{tpu_custom_call.1} parent=11 // pred_fallthru
        _
      // Predicated region
      $region29: #{tpu_custom_call.1} parent=11 // pred_check
        %p218 = pneg %p144
      $region30: #{tpu_custom_call.1} parent=11 // pred_check_branch
        %220 = sbr.rel (%p218) target = $region32
      $region31: #{tpu_custom_call.1} parent=11 // pred_region
        _
      $region32: #{tpu_custom_call.1} parent=11 // pred_fallthru
        _
      // Predicated region
      $region33: #{tpu_custom_call.1} parent=11 // pred_check
        %p221 = pneg %p165
      $region34: #{tpu_custom_call.1} parent=11 // pred_check_branch
        %223 = sbr.rel (%p221) target = $region36
      $region35: #{tpu_custom_call.1} parent=11 // pred_region
        _
      $region36: #{tpu_custom_call.1} parent=11 // pred_fallthru
        _
    $region12: #{tpu_custom_call.1} parent=5 // pred_fallthru
      _
    %p224 = scmp.lt.s32.totalorder %s13, 2
    // Predicated region
    $region37: #{tpu_custom_call.1} parent=5 // pred_check
      %p225 = pneg %p224
    $region38: #{tpu_custom_call.1} parent=5 // pred_check_branch
      %227 = sbr.rel (%p225) target = $region40
    $region39: #{tpu_custom_call.1} parent=5 // pred_region
      // Predicated region
      $region41: #{tpu_custom_call.1} parent=39 // pred_check
        %p228 = pneg %p33
      $region42: #{tpu_custom_call.1} parent=39 // pred_check_branch
        %230 = sbr.rel (%p228) target = $region44
      $region43: #{tpu_custom_call.1} parent=39 // pred_region
        %p231 = scmp.lt.s32.totalorder %s13, 1
        %s232 = scalar_select %p231, %s13, 1
        %s233 = smul.addr %s232, 32
        %s234 = smul.addr %s233, 8
        %s235 = scalar_lea.vmem %s0, %s234
      $region44: #{tpu_custom_call.1} parent=39 // pred_fallthru
        _
    $region40: #{tpu_custom_call.1} parent=5 // pred_fallthru
      _
    %p236 = scmp.le.s32.totalorder 1, %s13
    %p237 = scmp.lt.s32.totalorder %s13, 3
    %p238 = pnand %p236, %p237
    %p239 = pneg %p238
    // Predicated region
    $region45: #{tpu_custom_call.1} parent=5 // pred_check
      _
    $region46: #{tpu_custom_call.1} parent=5 // pred_check_branch
      %241 = sbr.rel (%p238) target = $region48
    $region47: #{tpu_custom_call.1} parent=5 // pred_region
      %s242 = ssub.s32 %s13, 1
      %p243 = scmp.lt.s32.totalorder %s18, 1
      %s244 = scalar_select %p243, %s18, 1
      %s245 = smul.addr %s244, 32
      %s246 = smul.addr %s245, 8
      %s247 = scalar_lea.vmem %s0, %s246
      %p248 = pneg %p39
      %p249 = pneg %p36
      %p250 = pneg %p60
      %p251 = pneg %p57
      %p252 = pneg %p81
      %p253 = pneg %p78
      %p254 = pneg %p102
      %p255 = pneg %p99
      %p256 = pneg %p123
      %p257 = pneg %p120
      %p258 = pneg %p144
      %p259 = pneg %p141
      %p260 = pneg %p165
      %p261 = pneg %p162
      %p262 = pneg %p191
      %p263 = pneg %p188
      %p264 = scmp.lt.s32.totalorder %s18, 1
      %s265 = scalar_select %p264, %s18, 1
      %s266 = smul.addr %s265, 32
      %s267 = smul.addr %s266, 8
      %s268 = scalar_lea.vmem %s7, %s267
      %p269 = scmp.lt.s32.totalorder %s18, 1
      %s270 = scalar_select %p269, %s18, 1
      %s271 = smul.addr %s270, 32
      %s272 = smul.addr %s271, 8
      %s273 = scalar_lea.vmem %s0, %s272
      %p274 = scmp.lt.s32.totalorder %s18, 1
      %s275 = scalar_select %p274, %s18, 1
      %s276 = smul.addr %s275, 32
      %s277 = smul.addr %s276, 8
      %s278 = scalar_lea.vmem %s7, %s277
      %v280 = vld [vmem:[%s273] sm:$0xff]
      %v281 = vld [vmem:[%s273 + $0x8] sm:$0xff]
      %v282 = vld [vmem:[%s273 + $0x10] sm:$0xff]
      %v283 = vld [vmem:[%s273 + $0x18] sm:$0xff]
      %v284 = vld [vmem:[%s273 + $0x20] sm:$0xff]
      %v285 = vld [vmem:[%s273 + $0x28] sm:$0xff]
      %v286 = vld [vmem:[%s273 + $0x30] sm:$0xff]
      %v287 = vld [vmem:[%s273 + $0x38] sm:$0xff]
      %v288 = vld [vmem:[%s273 + $0x40] sm:$0xff]
      %v289 = vld [vmem:[%s273 + $0x48] sm:$0xff]
      %v290 = vld [vmem:[%s273 + $0x50] sm:$0xff]
      %v291 = vld [vmem:[%s273 + $0x58] sm:$0xff]
      %v292 = vld [vmem:[%s273 + $0x60] sm:$0xff]
      %v293 = vld [vmem:[%s273 + $0x68] sm:$0xff]
      %v294 = vld [vmem:[%s273 + $0x70] sm:$0xff]
      %v295 = vld [vmem:[%s273 + $0x78] sm:$0xff]
      %v296 = vld [vmem:[%s273 + $0x80] sm:$0xff]
      %v297 = vld [vmem:[%s273 + $0x88] sm:$0xff]
      %v298 = vld [vmem:[%s273 + $0x90] sm:$0xff]
      %v299 = vld [vmem:[%s273 + $0x98] sm:$0xff]
      %v300 = vld [vmem:[%s273 + $0xa0] sm:$0xff]
      %v301 = vld [vmem:[%s273 + $0xa8] sm:$0xff]
      %v302 = vld [vmem:[%s273 + $0xb0] sm:$0xff]
      %v303 = vld [vmem:[%s273 + $0xb8] sm:$0xff]
      %v304 = vld [vmem:[%s273 + $0xc0] sm:$0xff]
      %v305 = vld [vmem:[%s273 + $0xc8] sm:$0xff]
      %v306 = vld [vmem:[%s273 + $0xd0] sm:$0xff]
      %v307 = vld [vmem:[%s273 + $0xd8] sm:$0xff]
      %v308 = vld [vmem:[%s273 + $0xe0] sm:$0xff]
      %v309 = vld [vmem:[%s273 + $0xe8] sm:$0xff]
      %v310 = vld [vmem:[%s273 + $0xf0] sm:$0xff]
      %v311 = vld [vmem:[%s273 + $0xf8] sm:$0xff]
      %v312 = vpack.c.bf16 %v281, %v280
      %v313 = vpack.c.bf16 %v283, %v282
      %v314 = vpack.c.bf16 %v285, %v284
      %v315 = vpack.c.bf16 %v287, %v286
      %v316 = vpack.c.bf16 %v289, %v288
      %v317 = vpack.c.bf16 %v291, %v290
      %v318 = vpack.c.bf16 %v293, %v292
      %v319 = vpack.c.bf16 %v295, %v294
      %v320 = vpack.c.bf16 %v297, %v296
      %v321 = vpack.c.bf16 %v299, %v298
      %v322 = vpack.c.bf16 %v301, %v300
      %v323 = vpack.c.bf16 %v303, %v302
      %v324 = vpack.c.bf16 %v305, %v304
      %v325 = vpack.c.bf16 %v307, %v306
      %v326 = vpack.c.bf16 %v309, %v308
      %v327 = vpack.c.bf16 %v311, %v310
      %vm328 = vcmask 27648
      %329 = vst.msk [vmem:[#allocation2] sm:$0xf] %vm328, 0
      %330 = vst.msk [vmem:[#allocation2 + $0x4] sm:$0xf] %vm328, 0
      %vm331 = vcmask 24576
      %332 = vst.msk [vmem:[#allocation2 + $0x8] sm:$0x1] %vm331, 0
      %s333 = scalar_lea.vmem [#allocation2], 204
      %334 = vst.msk [vmem:[%s333] sm:$0xf] %vm328, 0
      %335 = vst.msk [vmem:[%s333 + $0x4] sm:$0xf] %vm328, 0
      %336 = vst.msk [vmem:[%s333 + $0x8] sm:$0x1] %vm331, 0
      %v338 = vshrl.u32 %v312, 16
      %v340 = vrot.slane %v338, 7
      %v341 = vshll.u32 %v312, 16
      %v343 = vor.u32 %v340, %v341
      %v345 = vshrl.u32 %v313, 16
      %v347 = vrot.slane %v345, 7
      %v348 = vshll.u32 %v313, 16
      %v350 = vor.u32 %v347, %v348
      %v352 = vshrl.u32 %v314, 16
      %v354 = vrot.slane %v352, 7
      %v355 = vshll.u32 %v314, 16
      %v357 = vor.u32 %v354, %v355
      %v359 = vshrl.u32 %v315, 16
      %v361 = vrot.slane %v359, 7
      %v362 = vshll.u32 %v315, 16
      %v364 = vor.u32 %v361, %v362
      %v366 = vshrl.u32 %v316, 16
      %v368 = vrot.slane %v366, 7
      %v369 = vshll.u32 %v316, 16
      %v371 = vor.u32 %v368, %v369
      %v373 = vshrl.u32 %v317, 16
      %v375 = vrot.slane %v373, 7
      %v376 = vshll.u32 %v317, 16
      %v378 = vor.u32 %v375, %v376
      %v380 = vshrl.u32 %v318, 16
      %v382 = vrot.slane %v380, 7
      %v383 = vshll.u32 %v318, 16
      %v385 = vor.u32 %v382, %v383
      %v387 = vshrl.u32 %v319, 16
      %v389 = vrot.slane %v387, 7
      %v390 = vshll.u32 %v319, 16
      %v392 = vor.u32 %v389, %v390
      %v394 = vshrl.u32 %v320, 16
      %v396 = vrot.slane %v394, 7
      %v397 = vshll.u32 %v320, 16
      %v399 = vor.u32 %v396, %v397
      %v401 = vshrl.u32 %v321, 16
      %v403 = vrot.slane %v401, 7
      %v404 = vshll.u32 %v321, 16
      %v406 = vor.u32 %v403, %v404
      %v408 = vshrl.u32 %v322, 16
      %v410 = vrot.slane %v408, 7
      %v411 = vshll.u32 %v322, 16
      %v413 = vor.u32 %v410, %v411
      %v415 = vshrl.u32 %v323, 16
      %v417 = vrot.slane %v415, 7
      %v418 = vshll.u32 %v323, 16
      %v420 = vor.u32 %v417, %v418
      %v422 = vshrl.u32 %v324, 16
      %v424 = vrot.slane %v422, 7
      %v425 = vshll.u32 %v324, 16
      %v427 = vor.u32 %v424, %v425
      %v429 = vshrl.u32 %v325, 16
      %v431 = vrot.slane %v429, 7
      %v432 = vshll.u32 %v325, 16
      %v434 = vor.u32 %v431, %v432
      %v436 = vshrl.u32 %v326, 16
      %v438 = vrot.slane %v436, 7
      %v439 = vshll.u32 %v326, 16
      %v441 = vor.u32 %v438, %v439
      %v443 = vshrl.u32 %v327, 16
      %v445 = vrot.slane %v443, 7
      %v446 = vshll.u32 %v327, 16
      %v448 = vor.u32 %v445, %v446
      %vm481 = vcmask 1040384
      %vm482 = vsmask.f32 256
      %vm483 = vmand %vm481, %vm482
      %v484 = vsel %vm483, 0, %v343
      %v485 = vsel %vm483, 0, %v350
      %v486 = vsel %vm483, 0, %v357
      %v487 = vsel %vm483, 0, %v364
      %v488 = vsel %vm483, 0, %v371
      %v489 = vsel %vm483, 0, %v378
      %v490 = vsel %vm483, 0, %v385
      %v491 = vsel %vm483, 0, %v392
      %v492 = vsel %vm483, 0, %v399
      %v493 = vsel %vm483, 0, %v406
      %v494 = vsel %vm483, 0, %v413
      %v495 = vsel %vm483, 0, %v420
      %v496 = vsel %vm483, 0, %v427
      %v497 = vsel %vm483, 0, %v434
      %v498 = vsel %vm483, 0, %v441
      %v499 = vsel %vm483, 0, %v448
      %v500 = vsel %vm483, %v340, 0
      %v501 = vsel %vm483, %v347, 0
      %v502 = vsel %vm483, %v354, 0
      %v503 = vsel %vm483, %v361, 0
      %v504 = vsel %vm483, %v368, 0
      %v505 = vsel %vm483, %v375, 0
      %v506 = vsel %vm483, %v382, 0
      %v507 = vsel %vm483, %v389, 0
      %v508 = vsel %vm483, %v396, 0
      %v509 = vsel %vm483, %v403, 0
      %v510 = vsel %vm483, %v410, 0
      %v511 = vsel %vm483, %v417, 0
      %v512 = vsel %vm483, %v424, 0
      %v513 = vsel %vm483, %v431, 0
      %v514 = vsel %vm483, %v438, 0
      %v515 = vsel %vm483, %v445, 0
      %v548 = vunpack.c.l.b16 %v484
      %v549 = vunpack.c.h.b16 %v484
      %v550 = vunpack.c.l.b16 %v500
      %v551 = vunpack.c.l.b16 %v485
      %v552 = vunpack.c.h.b16 %v485
      %v553 = vunpack.c.l.b16 %v501
      %v554 = vunpack.c.l.b16 %v486
      %v555 = vunpack.c.h.b16 %v486
      %v556 = vunpack.c.l.b16 %v502
      %v557 = vunpack.c.l.b16 %v487
      %v558 = vunpack.c.h.b16 %v487
      %v559 = vunpack.c.l.b16 %v503
      %v560 = vunpack.c.l.b16 %v488
      %v561 = vunpack.c.h.b16 %v488
      %v562 = vunpack.c.l.b16 %v504
      %v563 = vunpack.c.l.b16 %v489
      %v564 = vunpack.c.h.b16 %v489
      %v565 = vunpack.c.l.b16 %v505
      %v566 = vunpack.c.l.b16 %v490
      %v567 = vunpack.c.h.b16 %v490
      %v568 = vunpack.c.l.b16 %v506
      %v569 = vunpack.c.l.b16 %v491
      %v570 = vunpack.c.h.b16 %v491
      %v571 = vunpack.c.l.b16 %v507
      %v572 = vunpack.c.l.b16 %v492
      %v573 = vunpack.c.h.b16 %v492
      %v574 = vunpack.c.l.b16 %v508
      %v575 = vunpack.c.l.b16 %v493
      %v576 = vunpack.c.h.b16 %v493
      %v577 = vunpack.c.l.b16 %v509
      %v578 = vunpack.c.l.b16 %v494
      %v579 = vunpack.c.h.b16 %v494
      %v580 = vunpack.c.l.b16 %v510
      %v581 = vunpack.c.l.b16 %v495
      %v582 = vunpack.c.h.b16 %v495
      %v583 = vunpack.c.l.b16 %v511
      %v584 = vunpack.c.l.b16 %v496
      %v585 = vunpack.c.h.b16 %v496
      %v586 = vunpack.c.l.b16 %v512
      %v587 = vunpack.c.l.b16 %v497
      %v588 = vunpack.c.h.b16 %v497
      %v589 = vunpack.c.l.b16 %v513
      %v590 = vunpack.c.l.b16 %v498
      %v591 = vunpack.c.h.b16 %v498
      %v592 = vunpack.c.l.b16 %v514
      %v593 = vunpack.c.l.b16 %v499
      %v594 = vunpack.c.h.b16 %v499
      %v595 = vunpack.c.l.b16 %v515
      %v596 = vpack.c.b16 %v548, %v548
      %v597 = vpack.c.b16 %v549, %v549
      %v598 = vpack.c.b16 %v550, %v550
      %v599 = vpack.c.b16 %v551, %v551
      %v600 = vpack.c.b16 %v552, %v552
      %v601 = vpack.c.b16 %v553, %v553
      %v602 = vpack.c.b16 %v554, %v554
      %v603 = vpack.c.b16 %v555, %v555
      %v604 = vpack.c.b16 %v556, %v556
      %v605 = vpack.c.b16 %v557, %v557
      %v606 = vpack.c.b16 %v558, %v558
      %v607 = vpack.c.b16 %v559, %v559
      %v608 = vpack.c.b16 %v560, %v560
      %v609 = vpack.c.b16 %v561, %v561
      %v610 = vpack.c.b16 %v562, %v562
      %v611 = vpack.c.b16 %v563, %v563
      %v612 = vpack.c.b16 %v564, %v564
      %v613 = vpack.c.b16 %v565, %v565
      %v614 = vpack.c.b16 %v566, %v566
      %v615 = vpack.c.b16 %v567, %v567
      %v616 = vpack.c.b16 %v568, %v568
      %v617 = vpack.c.b16 %v569, %v569
      %v618 = vpack.c.b16 %v570, %v570
      %v619 = vpack.c.b16 %v571, %v571
      %v620 = vpack.c.b16 %v572, %v572
      %v621 = vpack.c.b16 %v573, %v573
      %v622 = vpack.c.b16 %v574, %v574
      %v623 = vpack.c.b16 %v575, %v575
      %v624 = vpack.c.b16 %v576, %v576
      %v625 = vpack.c.b16 %v577, %v577
      %v626 = vpack.c.b16 %v578, %v578
      %v627 = vpack.c.b16 %v579, %v579
      %v628 = vpack.c.b16 %v580, %v580
      %v629 = vpack.c.b16 %v581, %v581
      %v630 = vpack.c.b16 %v582, %v582
      %v631 = vpack.c.b16 %v583, %v583
      %v632 = vpack.c.b16 %v584, %v584
      %v633 = vpack.c.b16 %v585, %v585
      %v634 = vpack.c.b16 %v586, %v586
      %v635 = vpack.c.b16 %v587, %v587
      %v636 = vpack.c.b16 %v588, %v588
      %v637 = vpack.c.b16 %v589, %v589
      %v638 = vpack.c.b16 %v590, %v590
      %v639 = vpack.c.b16 %v591, %v591
      %v640 = vpack.c.b16 %v592, %v592
      %v641 = vpack.c.b16 %v593, %v593
      %v642 = vpack.c.b16 %v594, %v594
      %v643 = vpack.c.b16 %v595, %v595
      %s692 = scalar_lea.vmem [#allocation2], 12
      %693 = vst.msk [vmem:[%s692] sm:$0xf] %vm328, %v596
      %694 = vst.msk [vmem:[%s692 + $0x4] sm:$0xf] %vm328, %v597
      %695 = vst.msk [vmem:[%s692 + $0x8] sm:$0x1] %vm331, %v598
      %696 = vst.msk [vmem:[%s692 + $0xc] sm:$0xf] %vm328, %v599
      %697 = vst.msk [vmem:[%s692 + $0x10] sm:$0xf] %vm328, %v600
      %698 = vst.msk [vmem:[%s692 + $0x14] sm:$0x1] %vm331, %v601
      %699 = vst.msk [vmem:[%s692 + $0x18] sm:$0xf] %vm328, %v602
      %700 = vst.msk [vmem:[%s692 + $0x1c] sm:$0xf] %vm328, %v603
      %701 = vst.msk [vmem:[%s692 + $0x20] sm:$0x1] %vm331, %v604
      %702 = vst.msk [vmem:[%s692 + $0x24] sm:$0xf] %vm328, %v605
      %703 = vst.msk [vmem:[%s692 + $0x28] sm:$0xf] %vm328, %v606
      %704 = vst.msk [vmem:[%s692 + $0x2c] sm:$0x1] %vm331, %v607
      %705 = vst.msk [vmem:[%s692 + $0x30] sm:$0xf] %vm328, %v608
      %706 = vst.msk [vmem:[%s692 + $0x34] sm:$0xf] %vm328, %v609
      %707 = vst.msk [vmem:[%s692 + $0x38] sm:$0x1] %vm331, %v610
      %708 = vst.msk [vmem:[%s692 + $0x3c] sm:$0xf] %vm328, %v611
      %709 = vst.msk [vmem:[%s692 + $0x40] sm:$0xf] %vm328, %v612
      %710 = vst.msk [vmem:[%s692 + $0x44] sm:$0x1] %vm331, %v613
      %711 = vst.msk [vmem:[%s692 + $0x48] sm:$0xf] %vm328, %v614
      %712 = vst.msk [vmem:[%s692 + $0x4c] sm:$0xf] %vm328, %v615
      %713 = vst.msk [vmem:[%s692 + $0x50] sm:$0x1] %vm331, %v616
      %714 = vst.msk [vmem:[%s692 + $0x54] sm:$0xf] %vm328, %v617
      %715 = vst.msk [vmem:[%s692 + $0x58] sm:$0xf] %vm328, %v618
      %716 = vst.msk [vmem:[%s692 + $0x5c] sm:$0x1] %vm331, %v619
      %717 = vst.msk [vmem:[%s692 + $0x60] sm:$0xf] %vm328, %v620
      %718 = vst.msk [vmem:[%s692 + $0x64] sm:$0xf] %vm328, %v621
      %719 = vst.msk [vmem:[%s692 + $0x68] sm:$0x1] %vm331, %v622
      %720 = vst.msk [vmem:[%s692 + $0x6c] sm:$0xf] %vm328, %v623
      %721 = vst.msk [vmem:[%s692 + $0x70] sm:$0xf] %vm328, %v624
      %722 = vst.msk [vmem:[%s692 + $0x74] sm:$0x1] %vm331, %v625
      %723 = vst.msk [vmem:[%s692 + $0x78] sm:$0xf] %vm328, %v626
      %724 = vst.msk [vmem:[%s692 + $0x7c] sm:$0xf] %vm328, %v627
      %725 = vst.msk [vmem:[%s692 + $0x80] sm:$0x1] %vm331, %v628
      %726 = vst.msk [vmem:[%s692 + $0x84] sm:$0xf] %vm328, %v629
      %727 = vst.msk [vmem:[%s692 + $0x88] sm:$0xf] %vm328, %v630
      %728 = vst.msk [vmem:[%s692 + $0x8c] sm:$0x1] %vm331, %v631
      %729 = vst.msk [vmem:[%s692 + $0x90] sm:$0xf] %vm328, %v632
      %730 = vst.msk [vmem:[%s692 + $0x94] sm:$0xf] %vm328, %v633
      %731 = vst.msk [vmem:[%s692 + $0x98] sm:$0x1] %vm331, %v634
      %732 = vst.msk [vmem:[%s692 + $0x9c] sm:$0xf] %vm328, %v635
      %733 = vst.msk [vmem:[%s692 + $0xa0] sm:$0xf] %vm328, %v636
      %734 = vst.msk [vmem:[%s692 + $0xa4] sm:$0x1] %vm331, %v637
      %735 = vst.msk [vmem:[%s692 + $0xa8] sm:$0xf] %vm328, %v638
      %736 = vst.msk [vmem:[%s692 + $0xac] sm:$0xf] %vm328, %v639
      %737 = vst.msk [vmem:[%s692 + $0xb0] sm:$0x1] %vm331, %v640
      %738 = vst.msk [vmem:[%s692 + $0xb4] sm:$0xf] %vm328, %v641
      %739 = vst.msk [vmem:[%s692 + $0xb8] sm:$0xf] %vm328, %v642
      %740 = vst.msk [vmem:[%s692 + $0xbc] sm:$0x1] %vm331, %v643
      %v741 = vld [vmem:[#allocation2] sm:$0xf]
      %v742 = vld [vmem:[#allocation2 + $0x4] sm:$0xf]
      %v743 = vld [vmem:[#allocation2 + $0x8] sm:$0x1]
      %v744 = vld [vmem:[#allocation2 + $0xc] sm:$0xf]
      %v745 = vld [vmem:[#allocation2 + $0x10] sm:$0xf]
      %v746 = vld [vmem:[#allocation2 + $0x14] sm:$0x1]
      %v747 = vld [vmem:[#allocation2 + $0x18] sm:$0xf]
      %v748 = vld [vmem:[#allocation2 + $0x1c] sm:$0xf]
      %v749 = vld [vmem:[#allocation2 + $0x20] sm:$0x1]
      %v750 = vld [vmem:[#allocation2 + $0x24] sm:$0xf]
      %v751 = vld [vmem:[#allocation2 + $0x28] sm:$0xf]
      %v752 = vld [vmem:[#allocation2 + $0x2c] sm:$0x1]
      %v753 = vld [vmem:[#allocation2 + $0x30] sm:$0xf]
      %v754 = vld [vmem:[#allocation2 + $0x34] sm:$0xf]
      %v755 = vld [vmem:[#allocation2 + $0x38] sm:$0x1]
      %v756 = vld [vmem:[#allocation2 + $0x3c] sm:$0xf]
      %v757 = vld [vmem:[#allocation2 + $0x40] sm:$0xf]
      %v758 = vld [vmem:[#allocation2 + $0x44] sm:$0x1]
      %v759 = vld [vmem:[#allocation2 + $0x48] sm:$0xf]
      %v760 = vld [vmem:[#allocation2 + $0x4c] sm:$0xf]
      %v761 = vld [vmem:[#allocation2 + $0x50] sm:$0x1]
      %v762 = vld [vmem:[#allocation2 + $0x54] sm:$0xf]
      %v763 = vld [vmem:[#allocation2 + $0x58] sm:$0xf]
      %v764 = vld [vmem:[#allocation2 + $0x5c] sm:$0x1]
      %v765 = vld [vmem:[#allocation2 + $0x60] sm:$0xf]
      %v766 = vld [vmem:[#allocation2 + $0x64] sm:$0xf]
      %v767 = vld [vmem:[#allocation2 + $0x68] sm:$0x1]
      %v768 = vld [vmem:[#allocation2 + $0x6c] sm:$0xf]
      %v769 = vld [vmem:[#allocation2 + $0x70] sm:$0xf]
      %v770 = vld [vmem:[#allocation2 + $0x74] sm:$0x1]
      %v771 = vld [vmem:[#allocation2 + $0x78] sm:$0xf]
      %v772 = vld [vmem:[#allocation2 + $0x7c] sm:$0xf]
      %v773 = vld [vmem:[#allocation2 + $0x80] sm:$0x1]
      %v774 = vld [vmem:[#allocation2 + $0x84] sm:$0xf]
      %v775 = vld [vmem:[#allocation2 + $0x88] sm:$0xf]
      %v776 = vld [vmem:[#allocation2 + $0x8c] sm:$0x1]
      %v777 = vld [vmem:[#allocation2 + $0x90] sm:$0xf]
      %v778 = vld [vmem:[#allocation2 + $0x94] sm:$0xf]
      %v779 = vld [vmem:[#allocation2 + $0x98] sm:$0x1]
      %v780 = vld [vmem:[#allocation2 + $0x9c] sm:$0xf]
      %v781 = vld [vmem:[#allocation2 + $0xa0] sm:$0xf]
      %v782 = vld [vmem:[#allocation2 + $0xa4] sm:$0x1]
      %v783 = vld [vmem:[#allocation2 + $0xa8] sm:$0xf]
      %v784 = vld [vmem:[#allocation2 + $0xac] sm:$0xf]
      %v785 = vld [vmem:[#allocation2 + $0xb0] sm:$0x1]
      %v786 = vld [vmem:[#allocation2 + $0xb4] sm:$0xf]
      %v787 = vld [vmem:[#allocation2 + $0xb8] sm:$0xf]
      %v788 = vld [vmem:[#allocation2 + $0xbc] sm:$0x1]
      %v789 = vld [vmem:[%s692] sm:$0xf]
      %v790 = vld [vmem:[%s692 + $0x4] sm:$0xf]
      %v791 = vld [vmem:[%s692 + $0x8] sm:$0x1]
      %v792 = vld [vmem:[%s692 + $0xc] sm:$0xf]
      %v793 = vld [vmem:[%s692 + $0x10] sm:$0xf]
      %v794 = vld [vmem:[%s692 + $0x14] sm:$0x1]
      %v795 = vld [vmem:[%s692 + $0x18] sm:$0xf]
      %v796 = vld [vmem:[%s692 + $0x1c] sm:$0xf]
      %v797 = vld [vmem:[%s692 + $0x20] sm:$0x1]
      %v798 = vld [vmem:[%s692 + $0x24] sm:$0xf]
      %v799 = vld [vmem:[%s692 + $0x28] sm:$0xf]
      %v800 = vld [vmem:[%s692 + $0x2c] sm:$0x1]
      %v801 = vld [vmem:[%s692 + $0x30] sm:$0xf]
      %v802 = vld [vmem:[%s692 + $0x34] sm:$0xf]
      %v803 = vld [vmem:[%s692 + $0x38] sm:$0x1]
      %v804 = vld [vmem:[%s692 + $0x3c] sm:$0xf]
      %v805 = vld [vmem:[%s692 + $0x40] sm:$0xf]
      %v806 = vld [vmem:[%s692 + $0x44] sm:$0x1]
      %v807 = vld [vmem:[%s692 + $0x48] sm:$0xf]
      %v808 = vld [vmem:[%s692 + $0x4c] sm:$0xf]
      %v809 = vld [vmem:[%s692 + $0x50] sm:$0x1]
      %v810 = vld [vmem:[%s692 + $0x54] sm:$0xf]
      %v811 = vld [vmem:[%s692 + $0x58] sm:$0xf]
      %v812 = vld [vmem:[%s692 + $0x5c] sm:$0x1]
      %v813 = vld [vmem:[%s692 + $0x60] sm:$0xf]
      %v814 = vld [vmem:[%s692 + $0x64] sm:$0xf]
      %v815 = vld [vmem:[%s692 + $0x68] sm:$0x1]
      %v816 = vld [vmem:[%s692 + $0x6c] sm:$0xf]
      %v817 = vld [vmem:[%s692 + $0x70] sm:$0xf]
      %v818 = vld [vmem:[%s692 + $0x74] sm:$0x1]
      %v819 = vld [vmem:[%s692 + $0x78] sm:$0xf]
      %v820 = vld [vmem:[%s692 + $0x7c] sm:$0xf]
      %v821 = vld [vmem:[%s692 + $0x80] sm:$0x1]
      %v822 = vld [vmem:[%s692 + $0x84] sm:$0xf]
      %v823 = vld [vmem:[%s692 + $0x88] sm:$0xf]
      %v824 = vld [vmem:[%s692 + $0x8c] sm:$0x1]
      %v825 = vld [vmem:[%s692 + $0x90] sm:$0xf]
      %v826 = vld [vmem:[%s692 + $0x94] sm:$0xf]
      %v827 = vld [vmem:[%s692 + $0x98] sm:$0x1]
      %v828 = vld [vmem:[%s692 + $0x9c] sm:$0xf]
      %v829 = vld [vmem:[%s692 + $0xa0] sm:$0xf]
      %v830 = vld [vmem:[%s692 + $0xa4] sm:$0x1]
      %v831 = vld [vmem:[%s692 + $0xa8] sm:$0xf]
      %v832 = vld [vmem:[%s692 + $0xac] sm:$0xf]
      %v833 = vld [vmem:[%s692 + $0xb0] sm:$0x1]
      %v834 = vld [vmem:[%s692 + $0xb4] sm:$0xf]
      %v835 = vld [vmem:[%s692 + $0xb8] sm:$0xf]
      %v836 = vld [vmem:[%s692 + $0xbc] sm:$0x1]
      %s837 = scalar_lea.vmem [#allocation2], 24
      %v838 = vld [vmem:[%s837] sm:$0xf]
      %v839 = vld [vmem:[%s837 + $0x4] sm:$0xf]
      %v840 = vld [vmem:[%s837 + $0x8] sm:$0x1]
      %v841 = vld [vmem:[%s837 + $0xc] sm:$0xf]
      %v842 = vld [vmem:[%s837 + $0x10] sm:$0xf]
      %v843 = vld [vmem:[%s837 + $0x14] sm:$0x1]
      %v844 = vld [vmem:[%s837 + $0x18] sm:$0xf]
      %v845 = vld [vmem:[%s837 + $0x1c] sm:$0xf]
      %v846 = vld [vmem:[%s837 + $0x20] sm:$0x1]
      %v847 = vld [vmem:[%s837 + $0x24] sm:$0xf]
      %v848 = vld [vmem:[%s837 + $0x28] sm:$0xf]
      %v849 = vld [vmem:[%s837 + $0x2c] sm:$0x1]
      %v850 = vld [vmem:[%s837 + $0x30] sm:$0xf]
      %v851 = vld [vmem:[%s837 + $0x34] sm:$0xf]
      %v852 = vld [vmem:[%s837 + $0x38] sm:$0x1]
      %v853 = vld [vmem:[%s837 + $0x3c] sm:$0xf]
      %v854 = vld [vmem:[%s837 + $0x40] sm:$0xf]
      %v855 = vld [vmem:[%s837 + $0x44] sm:$0x1]
      %v856 = vld [vmem:[%s837 + $0x48] sm:$0xf]
      %v857 = vld [vmem:[%s837 + $0x4c] sm:$0xf]
      %v858 = vld [vmem:[%s837 + $0x50] sm:$0x1]
      %v859 = vld [vmem:[%s837 + $0x54] sm:$0xf]
      %v860 = vld [vmem:[%s837 + $0x58] sm:$0xf]
      %v861 = vld [vmem:[%s837 + $0x5c] sm:$0x1]
      %v862 = vld [vmem:[%s837 + $0x60] sm:$0xf]
      %v863 = vld [vmem:[%s837 + $0x64] sm:$0xf]
      %v864 = vld [vmem:[%s837 + $0x68] sm:$0x1]
      %v865 = vld [vmem:[%s837 + $0x6c] sm:$0xf]
      %v866 = vld [vmem:[%s837 + $0x70] sm:$0xf]
      %v867 = vld [vmem:[%s837 + $0x74] sm:$0x1]
      %v868 = vld [vmem:[%s837 + $0x78] sm:$0xf]
      %v869 = vld [vmem:[%s837 + $0x7c] sm:$0xf]
      %v870 = vld [vmem:[%s837 + $0x80] sm:$0x1]
      %v871 = vld [vmem:[%s837 + $0x84] sm:$0xf]
      %v872 = vld [vmem:[%s837 + $0x88] sm:$0xf]
      %v873 = vld [vmem:[%s837 + $0x8c] sm:$0x1]
      %v874 = vld [vmem:[%s837 + $0x90] sm:$0xf]
      %v875 = vld [vmem:[%s837 + $0x94] sm:$0xf]
      %v876 = vld [vmem:[%s837 + $0x98] sm:$0x1]
      %v877 = vld [vmem:[%s837 + $0x9c] sm:$0xf]
      %v878 = vld [vmem:[%s837 + $0xa0] sm:$0xf]
      %v879 = vld [vmem:[%s837 + $0xa4] sm:$0x1]
      %v880 = vld [vmem:[%s837 + $0xa8] sm:$0xf]
      %v881 = vld [vmem:[%s837 + $0xac] sm:$0xf]
      %v882 = vld [vmem:[%s837 + $0xb0] sm:$0x1]
      %v883 = vld [vmem:[%s837 + $0xb4] sm:$0xf]
      %v884 = vld [vmem:[%s837 + $0xb8] sm:$0xf]
      %v885 = vld [vmem:[%s837 + $0xbc] sm:$0x1]
      %v918 = vunpack.c.l.b16 %v741
      %v919 = vunpack.c.l.b16 %v742
      %v920 = vunpack.c.l.b16 %v744
      %v921 = vunpack.c.l.b16 %v745
      %v922 = vunpack.c.l.b16 %v747
      %v923 = vunpack.c.l.b16 %v748
      %v924 = vunpack.c.l.b16 %v750
      %v925 = vunpack.c.l.b16 %v751
      %v926 = vunpack.c.l.b16 %v753
      %v927 = vunpack.c.l.b16 %v754
      %v928 = vunpack.c.l.b16 %v756
      %v929 = vunpack.c.l.b16 %v757
      %v930 = vunpack.c.l.b16 %v759
      %v931 = vunpack.c.l.b16 %v760
      %v932 = vunpack.c.l.b16 %v762
      %v933 = vunpack.c.l.b16 %v763
      %v934 = vunpack.c.l.b16 %v765
      %v935 = vunpack.c.l.b16 %v766
      %v936 = vunpack.c.l.b16 %v768
      %v937 = vunpack.c.l.b16 %v769
      %v938 = vunpack.c.l.b16 %v771
      %v939 = vunpack.c.l.b16 %v772
      %v940 = vunpack.c.l.b16 %v774
      %v941 = vunpack.c.l.b16 %v775
      %v942 = vunpack.c.l.b16 %v777
      %v943 = vunpack.c.l.b16 %v778
      %v944 = vunpack.c.l.b16 %v780
      %v945 = vunpack.c.l.b16 %v781
      %v946 = vunpack.c.l.b16 %v783
      %v947 = vunpack.c.l.b16 %v784
      %v948 = vunpack.c.l.b16 %v786
      %v949 = vunpack.c.l.b16 %v787
      %v950 = vpack.c.b16 %v919, %v918
      %v951 = vpack.c.b16 %v921, %v920
      %v952 = vpack.c.b16 %v923, %v922
      %v953 = vpack.c.b16 %v925, %v924
      %v954 = vpack.c.b16 %v927, %v926
      %v955 = vpack.c.b16 %v929, %v928
      %v956 = vpack.c.b16 %v931, %v930
      %v957 = vpack.c.b16 %v933, %v932
      %v958 = vpack.c.b16 %v935, %v934
      %v959 = vpack.c.b16 %v937, %v936
      %v960 = vpack.c.b16 %v939, %v938
      %v961 = vpack.c.b16 %v941, %v940
      %v962 = vpack.c.b16 %v943, %v942
      %v963 = vpack.c.b16 %v945, %v944
      %v964 = vpack.c.b16 %v947, %v946
      %v965 = vpack.c.b16 %v949, %v948
      %v982 = vunpack.c.l.b16 %v743
      %v983 = vunpack.c.l.b16 %v746
      %v984 = vunpack.c.l.b16 %v749
      %v985 = vunpack.c.l.b16 %v752
      %v986 = vunpack.c.l.b16 %v755
      %v987 = vunpack.c.l.b16 %v758
      %v988 = vunpack.c.l.b16 %v761
      %v989 = vunpack.c.l.b16 %v764
      %v990 = vunpack.c.l.b16 %v767
      %v991 = vunpack.c.l.b16 %v770
      %v992 = vunpack.c.l.b16 %v773
      %v993 = vunpack.c.l.b16 %v776
      %v994 = vunpack.c.l.b16 %v779
      %v995 = vunpack.c.l.b16 %v782
      %v996 = vunpack.c.l.b16 %v785
      %v997 = vunpack.c.l.b16 %v788
      %v998 = vpack.c.b16 %v982, %v982
      %v999 = vpack.c.b16 %v983, %v983
      %v1000 = vpack.c.b16 %v984, %v984
      %v1001 = vpack.c.b16 %v985, %v985
      %v1002 = vpack.c.b16 %v986, %v986
      %v1003 = vpack.c.b16 %v987, %v987
      %v1004 = vpack.c.b16 %v988, %v988
      %v1005 = vpack.c.b16 %v989, %v989
      %v1006 = vpack.c.b16 %v990, %v990
      %v1007 = vpack.c.b16 %v991, %v991
      %v1008 = vpack.c.b16 %v992, %v992
      %v1009 = vpack.c.b16 %v993, %v993
      %v1010 = vpack.c.b16 %v994, %v994
      %v1011 = vpack.c.b16 %v995, %v995
      %v1012 = vpack.c.b16 %v996, %v996
      %v1013 = vpack.c.b16 %v997, %v997
      %vm1014 = vsmask.f32 7424
      %v1016 = vshrl.u32 %v950, 16
      %v1018 = vshll.u32 %v950, 16
      %v1020 = vrot.slane %v1018, 1
      %v1021 = vor.u32 %v1016, %v1020
      %v1023 = vshll.u32 %v998, 16
      %v1025 = vrot.slane %v1023, 1
      %v1026 = vsel %vm1014, %v1021, %v1025
      %v1028 = vshrl.u32 %v951, 16
      %v1030 = vshll.u32 %v951, 16
      %v1032 = vrot.slane %v1030, 1
      %v1033 = vor.u32 %v1028, %v1032
      %v1035 = vshll.u32 %v999, 16
      %v1037 = vrot.slane %v1035, 1
      %v1038 = vsel %vm1014, %v1033, %v1037
      %v1040 = vshrl.u32 %v952, 16
      %v1042 = vshll.u32 %v952, 16
      %v1044 = vrot.slane %v1042, 1
      %v1045 = vor.u32 %v1040, %v1044
      %v1047 = vshll.u32 %v1000, 16
      %v1049 = vrot.slane %v1047, 1
      %v1050 = vsel %vm1014, %v1045, %v1049
      %v1052 = vshrl.u32 %v953, 16
      %v1054 = vshll.u32 %v953, 16
      %v1056 = vrot.slane %v1054, 1
      %v1057 = vor.u32 %v1052, %v1056
      %v1059 = vshll.u32 %v1001, 16
      %v1061 = vrot.slane %v1059, 1
      %v1062 = vsel %vm1014, %v1057, %v1061
      %v1064 = vshrl.u32 %v954, 16
      %v1066 = vshll.u32 %v954, 16
      %v1068 = vrot.slane %v1066, 1
      %v1069 = vor.u32 %v1064, %v1068
      %v1071 = vshll.u32 %v1002, 16
      %v1073 = vrot.slane %v1071, 1
      %v1074 = vsel %vm1014, %v1069, %v1073
      %v1076 = vshrl.u32 %v955, 16
      %v1078 = vshll.u32 %v955, 16
      %v1080 = vrot.slane %v1078, 1
      %v1081 = vor.u32 %v1076, %v1080
      %v1083 = vshll.u32 %v1003, 16
      %v1085 = vrot.slane %v1083, 1
      %v1086 = vsel %vm1014, %v1081, %v1085
      %v1088 = vshrl.u32 %v956, 16
      %v1090 = vshll.u32 %v956, 16
      %v1092 = vrot.slane %v1090, 1
      %v1093 = vor.u32 %v1088, %v1092
      %v1095 = vshll.u32 %v1004, 16
      %v1097 = vrot.slane %v1095, 1
      %v1098 = vsel %vm1014, %v1093, %v1097
      %v1100 = vshrl.u32 %v957, 16
      %v1102 = vshll.u32 %v957, 16
      %v1104 = vrot.slane %v1102, 1
      %v1105 = vor.u32 %v1100, %v1104
      %v1107 = vshll.u32 %v1005, 16
      %v1109 = vrot.slane %v1107, 1
      %v1110 = vsel %vm1014, %v1105, %v1109
      %v1112 = vshrl.u32 %v958, 16
      %v1114 = vshll.u32 %v958, 16
      %v1116 = vrot.slane %v1114, 1
      %v1117 = vor.u32 %v1112, %v1116
      %v1119 = vshll.u32 %v1006, 16
      %v1121 = vrot.slane %v1119, 1
      %v1122 = vsel %vm1014, %v1117, %v1121
      %v1124 = vshrl.u32 %v959, 16
      %v1126 = vshll.u32 %v959, 16
      %v1128 = vrot.slane %v1126, 1
      %v1129 = vor.u32 %v1124, %v1128
      %v1131 = vshll.u32 %v1007, 16
      %v1133 = vrot.slane %v1131, 1
      %v1134 = vsel %vm1014, %v1129, %v1133
      %v1136 = vshrl.u32 %v960, 16
      %v1138 = vshll.u32 %v960, 16
      %v1140 = vrot.slane %v1138, 1
      %v1141 = vor.u32 %v1136, %v1140
      %v1143 = vshll.u32 %v1008, 16
      %v1145 = vrot.slane %v1143, 1
      %v1146 = vsel %vm1014, %v1141, %v1145
      %v1148 = vshrl.u32 %v961, 16
      %v1150 = vshll.u32 %v961, 16
      %v1152 = vrot.slane %v1150, 1
      %v1153 = vor.u32 %v1148, %v1152
      %v1155 = vshll.u32 %v1009, 16
      %v1157 = vrot.slane %v1155, 1
      %v1158 = vsel %vm1014, %v1153, %v1157
      %v1160 = vshrl.u32 %v962, 16
      %v1162 = vshll.u32 %v962, 16
      %v1164 = vrot.slane %v1162, 1
      %v1165 = vor.u32 %v1160, %v1164
      %v1167 = vshll.u32 %v1010, 16
      %v1169 = vrot.slane %v1167, 1
      %v1170 = vsel %vm1014, %v1165, %v1169
      %v1172 = vshrl.u32 %v963, 16
      %v1174 = vshll.u32 %v963, 16
      %v1176 = vrot.slane %v1174, 1
      %v1177 = vor.u32 %v1172, %v1176
      %v1179 = vshll.u32 %v1011, 16
      %v1181 = vrot.slane %v1179, 1
      %v1182 = vsel %vm1014, %v1177, %v1181
      %v1184 = vshrl.u32 %v964, 16
      %v1186 = vshll.u32 %v964, 16
      %v1188 = vrot.slane %v1186, 1
      %v1189 = vor.u32 %v1184, %v1188
      %v1191 = vshll.u32 %v1012, 16
      %v1193 = vrot.slane %v1191, 1
      %v1194 = vsel %vm1014, %v1189, %v1193
      %v1196 = vshrl.u32 %v965, 16
      %v1198 = vshll.u32 %v965, 16
      %v1200 = vrot.slane %v1198, 1
      %v1201 = vor.u32 %v1196, %v1200
      %v1203 = vshll.u32 %v1013, 16
      %v1205 = vrot.slane %v1203, 1
      %v1206 = vsel %vm1014, %v1201, %v1205
      %1207 = vrot.lane.b32.xlu0 %v1026, 4
      %v1208 = vpop.permute.xlu0 %1207
      %1209 = vrot.lane.b32.xlu0 %v1038, 4
      %v1210 = vpop.permute.xlu0 %1209
      %1211 = vrot.lane.b32.xlu0 %v1050, 4
      %v1212 = vpop.permute.xlu0 %1211
      %1213 = vrot.lane.b32.xlu0 %v1062, 4
      %v1214 = vpop.permute.xlu0 %1213
      %1215 = vrot.lane.b32.xlu0 %v1074, 4
      %v1216 = vpop.permute.xlu0 %1215
      %1217 = vrot.lane.b32.xlu0 %v1086, 4
      %v1218 = vpop.permute.xlu0 %1217
      %1219 = vrot.lane.b32.xlu0 %v1098, 4
      %v1220 = vpop.permute.xlu0 %1219
      %1221 = vrot.lane.b32.xlu0 %v1110, 4
      %v1222 = vpop.permute.xlu0 %1221
      %1223 = vrot.lane.b32.xlu0 %v1122, 4
      %v1224 = vpop.permute.xlu0 %1223
      %1225 = vrot.lane.b32.xlu0 %v1134, 4
      %v1226 = vpop.permute.xlu0 %1225
      %1227 = vrot.lane.b32.xlu0 %v1146, 4
      %v1228 = vpop.permute.xlu0 %1227
      %1229 = vrot.lane.b32.xlu0 %v1158, 4
      %v1230 = vpop.permute.xlu0 %1229
      %1231 = vrot.lane.b32.xlu0 %v1170, 4
      %v1232 = vpop.permute.xlu0 %1231
      %1233 = vrot.lane.b32.xlu0 %v1182, 4
      %v1234 = vpop.permute.xlu0 %1233
      %1235 = vrot.lane.b32.xlu0 %v1194, 4
      %v1236 = vpop.permute.xlu0 %1235
      %1237 = vrot.lane.b32.xlu0 %v1206, 4
      %v1238 = vpop.permute.xlu0 %1237
      %vm1239 = vcmask 1046528
      %v1240 = vrot.slane %v950, 1
      %v1241 = vrot.slane %v998, 1
      %v1242 = vsel %vm1239, %v1240, %v1241
      %v1243 = vrot.slane %v951, 1
      %v1244 = vrot.slane %v999, 1
      %v1245 = vsel %vm1239, %v1243, %v1244
      %v1246 = vrot.slane %v952, 1
      %v1247 = vrot.slane %v1000, 1
      %v1248 = vsel %vm1239, %v1246, %v1247
      %v1249 = vrot.slane %v953, 1
      %v1250 = vrot.slane %v1001, 1
      %v1251 = vsel %vm1239, %v1249, %v1250
      %v1252 = vrot.slane %v954, 1
      %v1253 = vrot.slane %v1002, 1
      %v1254 = vsel %vm1239, %v1252, %v1253
      %v1255 = vrot.slane %v955, 1
      %v1256 = vrot.slane %v1003, 1
      %v1257 = vsel %vm1239, %v1255, %v1256
      %v1258 = vrot.slane %v956, 1
      %v1259 = vrot.slane %v1004, 1
      %v1260 = vsel %vm1239, %v1258, %v1259
      %v1261 = vrot.slane %v957, 1
      %v1262 = vrot.slane %v1005, 1
      %v1263 = vsel %vm1239, %v1261, %v1262
      %v1264 = vrot.slane %v958, 1
      %v1265 = vrot.slane %v1006, 1
      %v1266 = vsel %vm1239, %v1264, %v1265
      %v1267 = vrot.slane %v959, 1
      %v1268 = vrot.slane %v1007, 1
      %v1269 = vsel %vm1239, %v1267, %v1268
      %v1270 = vrot.slane %v960, 1
      %v1271 = vrot.slane %v1008, 1
      %v1272 = vsel %vm1239, %v1270, %v1271
      %v1273 = vrot.slane %v961, 1
      %v1274 = vrot.slane %v1009, 1
      %v1275 = vsel %vm1239, %v1273, %v1274
      %v1276 = vrot.slane %v962, 1
      %v1277 = vrot.slane %v1010, 1
      %v1278 = vsel %vm1239, %v1276, %v1277
      %v1279 = vrot.slane %v963, 1
      %v1280 = vrot.slane %v1011, 1
      %v1281 = vsel %vm1239, %v1279, %v1280
      %v1282 = vrot.slane %v964, 1
      %v1283 = vrot.slane %v1012, 1
      %v1284 = vsel %vm1239, %v1282, %v1283
      %v1285 = vrot.slane %v965, 1
      %v1286 = vrot.slane %v1013, 1
      %v1287 = vsel %vm1239, %v1285, %v1286
      %1288 = vrot.lane.b32.xlu0 %v1242, 8
      %v1289 = vpop.permute.xlu0 %1288
      %1290 = vrot.lane.b32.xlu0 %v1245, 8
      %v1291 = vpop.permute.xlu0 %1290
      %1292 = vrot.lane.b32.xlu0 %v1248, 8
      %v1293 = vpop.permute.xlu0 %1292
      %1294 = vrot.lane.b32.xlu0 %v1251, 8
      %v1295 = vpop.permute.xlu0 %1294
      %1296 = vrot.lane.b32.xlu0 %v1254, 8
      %v1297 = vpop.permute.xlu0 %1296
      %1298 = vrot.lane.b32.xlu0 %v1257, 8
      %v1299 = vpop.permute.xlu0 %1298
      %1300 = vrot.lane.b32.xlu0 %v1260, 8
      %v1301 = vpop.permute.xlu0 %1300
      %1302 = vrot.lane.b32.xlu0 %v1263, 8
      %v1303 = vpop.permute.xlu0 %1302
      %1304 = vrot.lane.b32.xlu0 %v1266, 8
      %v1305 = vpop.permute.xlu0 %1304
      %1306 = vrot.lane.b32.xlu0 %v1269, 8
      %v1307 = vpop.permute.xlu0 %1306
      %1308 = vrot.lane.b32.xlu0 %v1272, 8
      %v1309 = vpop.permute.xlu0 %1308
      %1310 = vrot.lane.b32.xlu0 %v1275, 8
      %v1311 = vpop.permute.xlu0 %1310
      %1312 = vrot.lane.b32.xlu0 %v1278, 8
      %v1313 = vpop.permute.xlu0 %1312
      %1314 = vrot.lane.b32.xlu0 %v1281, 8
      %v1315 = vpop.permute.xlu0 %1314
      %1316 = vrot.lane.b32.xlu0 %v1284, 8
      %v1317 = vpop.permute.xlu0 %1316
      %1318 = vrot.lane.b32.xlu0 %v1287, 8
      %v1319 = vpop.permute.xlu0 %1318
      %v1352 = vunpack.c.l.b16 %v789
      %v1353 = vunpack.c.l.b16 %v790
      %v1354 = vunpack.c.l.b16 %v792
      %v1355 = vunpack.c.l.b16 %v793
      %v1356 = vunpack.c.l.b16 %v795
      %v1357 = vunpack.c.l.b16 %v796
      %v1358 = vunpack.c.l.b16 %v798
      %v1359 = vunpack.c.l.b16 %v799
      %v1360 = vunpack.c.l.b16 %v801
      %v1361 = vunpack.c.l.b16 %v802
      %v1362 = vunpack.c.l.b16 %v804
      %v1363 = vunpack.c.l.b16 %v805
      %v1364 = vunpack.c.l.b16 %v807
      %v1365 = vunpack.c.l.b16 %v808
      %v1366 = vunpack.c.l.b16 %v810
      %v1367 = vunpack.c.l.b16 %v811
      %v1368 = vunpack.c.l.b16 %v813
      %v1369 = vunpack.c.l.b16 %v814
      %v1370 = vunpack.c.l.b16 %v816
      %v1371 = vunpack.c.l.b16 %v817
      %v1372 = vunpack.c.l.b16 %v819
      %v1373 = vunpack.c.l.b16 %v820
      %v1374 = vunpack.c.l.b16 %v822
      %v1375 = vunpack.c.l.b16 %v823
      %v1376 = vunpack.c.l.b16 %v825
      %v1377 = vunpack.c.l.b16 %v826
      %v1378 = vunpack.c.l.b16 %v828
      %v1379 = vunpack.c.l.b16 %v829
      %v1380 = vunpack.c.l.b16 %v831
      %v1381 = vunpack.c.l.b16 %v832
      %v1382 = vunpack.c.l.b16 %v834
      %v1383 = vunpack.c.l.b16 %v835
      %v1384 = vpack.c.b16 %v1353, %v1352
      %v1385 = vpack.c.b16 %v1355, %v1354
      %v1386 = vpack.c.b16 %v1357, %v1356
      %v1387 = vpack.c.b16 %v1359, %v1358
      %v1388 = vpack.c.b16 %v1361, %v1360
      %v1389 = vpack.c.b16 %v1363, %v1362
      %v1390 = vpack.c.b16 %v1365, %v1364
      %v1391 = vpack.c.b16 %v1367, %v1366
      %v1392 = vpack.c.b16 %v1369, %v1368
      %v1393 = vpack.c.b16 %v1371, %v1370
      %v1394 = vpack.c.b16 %v1373, %v1372
      %v1395 = vpack.c.b16 %v1375, %v1374
      %v1396 = vpack.c.b16 %v1377, %v1376
      %v1397 = vpack.c.b16 %v1379, %v1378
      %v1398 = vpack.c.b16 %v1381, %v1380
      %v1399 = vpack.c.b16 %v1383, %v1382
      %1400 = vrot.lane.b32.xlu0 %v1384, 12
      %v1401 = vpop.permute.xlu0 %1400
      %1402 = vrot.lane.b32.xlu0 %v1385, 12
      %v1403 = vpop.permute.xlu0 %1402
      %1404 = vrot.lane.b32.xlu0 %v1386, 12
      %v1405 = vpop.permute.xlu0 %1404
      %1406 = vrot.lane.b32.xlu0 %v1387, 12
      %v1407 = vpop.permute.xlu0 %1406
      %1408 = vrot.lane.b32.xlu0 %v1388, 12
      %v1409 = vpop.permute.xlu0 %1408
      %1410 = vrot.lane.b32.xlu0 %v1389, 12
      %v1411 = vpop.permute.xlu0 %1410
      %1412 = vrot.lane.b32.xlu0 %v1390, 12
      %v1413 = vpop.permute.xlu0 %1412
      %1414 = vrot.lane.b32.xlu0 %v1391, 12
      %v1415 = vpop.permute.xlu0 %1414
      %1416 = vrot.lane.b32.xlu0 %v1392, 12
      %v1417 = vpop.permute.xlu0 %1416
      %1418 = vrot.lane.b32.xlu0 %v1393, 12
      %v1419 = vpop.permute.xlu0 %1418
      %1420 = vrot.lane.b32.xlu0 %v1394, 12
      %v1421 = vpop.permute.xlu0 %1420
      %1422 = vrot.lane.b32.xlu0 %v1395, 12
      %v1423 = vpop.permute.xlu0 %1422
      %1424 = vrot.lane.b32.xlu0 %v1396, 12
      %v1425 = vpop.permute.xlu0 %1424
      %1426 = vrot.lane.b32.xlu0 %v1397, 12
      %v1427 = vpop.permute.xlu0 %1426
      %1428 = vrot.lane.b32.xlu0 %v1398, 12
      %v1429 = vpop.permute.xlu0 %1428
      %1430 = vrot.lane.b32.xlu0 %v1399, 12
      %v1431 = vpop.permute.xlu0 %1430
      %v1448 = vunpack.c.l.b16 %v791
      %v1449 = vunpack.c.l.b16 %v794
      %v1450 = vunpack.c.l.b16 %v797
      %v1451 = vunpack.c.l.b16 %v800
      %v1452 = vunpack.c.l.b16 %v803
      %v1453 = vunpack.c.l.b16 %v806
      %v1454 = vunpack.c.l.b16 %v809
      %v1455 = vunpack.c.l.b16 %v812
      %v1456 = vunpack.c.l.b16 %v815
      %v1457 = vunpack.c.l.b16 %v818
      %v1458 = vunpack.c.l.b16 %v821
      %v1459 = vunpack.c.l.b16 %v824
      %v1460 = vunpack.c.l.b16 %v827
      %v1461 = vunpack.c.l.b16 %v830
      %v1462 = vunpack.c.l.b16 %v833
      %v1463 = vunpack.c.l.b16 %v836
      %v1464 = vpack.c.b16 %v1448, %v1448
      %v1465 = vpack.c.b16 %v1449, %v1449
      %v1466 = vpack.c.b16 %v1450, %v1450
      %v1467 = vpack.c.b16 %v1451, %v1451
      %v1468 = vpack.c.b16 %v1452, %v1452
      %v1469 = vpack.c.b16 %v1453, %v1453
      %v1470 = vpack.c.b16 %v1454, %v1454
      %v1471 = vpack.c.b16 %v1455, %v1455
      %v1472 = vpack.c.b16 %v1456, %v1456
      %v1473 = vpack.c.b16 %v1457, %v1457
      %v1474 = vpack.c.b16 %v1458, %v1458
      %v1475 = vpack.c.b16 %v1459, %v1459
      %v1476 = vpack.c.b16 %v1460, %v1460
      %v1477 = vpack.c.b16 %v1461, %v1461
      %v1478 = vpack.c.b16 %v1462, %v1462
      %v1479 = vpack.c.b16 %v1463, %v1463
      %v1481 = vshrl.u32 %v1384, 16
      %v1483 = vshll.u32 %v1384, 16
      %v1485 = vrot.slane %v1483, 1
      %v1486 = vor.u32 %v1481, %v1485
      %v1488 = vshll.u32 %v1464, 16
      %v1490 = vrot.slane %v1488, 1
      %v1491 = vsel %vm1014, %v1486, %v1490
      %v1493 = vshrl.u32 %v1385, 16
      %v1495 = vshll.u32 %v1385, 16
      %v1497 = vrot.slane %v1495, 1
      %v1498 = vor.u32 %v1493, %v1497
      %v1500 = vshll.u32 %v1465, 16
      %v1502 = vrot.slane %v1500, 1
      %v1503 = vsel %vm1014, %v1498, %v1502
      %v1505 = vshrl.u32 %v1386, 16
      %v1507 = vshll.u32 %v1386, 16
      %v1509 = vrot.slane %v1507, 1
      %v1510 = vor.u32 %v1505, %v1509
      %v1512 = vshll.u32 %v1466, 16
      %v1514 = vrot.slane %v1512, 1
      %v1515 = vsel %vm1014, %v1510, %v1514
      %v1517 = vshrl.u32 %v1387, 16
      %v1519 = vshll.u32 %v1387, 16
      %v1521 = vrot.slane %v1519, 1
      %v1522 = vor.u32 %v1517, %v1521
      %v1524 = vshll.u32 %v1467, 16
      %v1526 = vrot.slane %v1524, 1
      %v1527 = vsel %vm1014, %v1522, %v1526
      %v1529 = vshrl.u32 %v1388, 16
      %v1531 = vshll.u32 %v1388, 16
      %v1533 = vrot.slane %v1531, 1
      %v1534 = vor.u32 %v1529, %v1533
      %v1536 = vshll.u32 %v1468, 16
      %v1538 = vrot.slane %v1536, 1
      %v1539 = vsel %vm1014, %v1534, %v1538
      %v1541 = vshrl.u32 %v1389, 16
      %v1543 = vshll.u32 %v1389, 16
      %v1545 = vrot.slane %v1543, 1
      %v1546 = vor.u32 %v1541, %v1545
      %v1548 = vshll.u32 %v1469, 16
      %v1550 = vrot.slane %v1548, 1
      %v1551 = vsel %vm1014, %v1546, %v1550
      %v1553 = vshrl.u32 %v1390, 16
      %v1555 = vshll.u32 %v1390, 16
      %v1557 = vrot.slane %v1555, 1
      %v1558 = vor.u32 %v1553, %v1557
      %v1560 = vshll.u32 %v1470, 16
      %v1562 = vrot.slane %v1560, 1
      %v1563 = vsel %vm1014, %v1558, %v1562
      %v1565 = vshrl.u32 %v1391, 16
      %v1567 = vshll.u32 %v1391, 16
      %v1569 = vrot.slane %v1567, 1
      %v1570 = vor.u32 %v1565, %v1569
      %v1572 = vshll.u32 %v1471, 16
      %v1574 = vrot.slane %v1572, 1
      %v1575 = vsel %vm1014, %v1570, %v1574
      %v1577 = vshrl.u32 %v1392, 16
      %v1579 = vshll.u32 %v1392, 16
      %v1581 = vrot.slane %v1579, 1
      %v1582 = vor.u32 %v1577, %v1581
      %v1584 = vshll.u32 %v1472, 16
      %v1586 = vrot.slane %v1584, 1
      %v1587 = vsel %vm1014, %v1582, %v1586
      %v1589 = vshrl.u32 %v1393, 16
      %v1591 = vshll.u32 %v1393, 16
      %v1593 = vrot.slane %v1591, 1
      %v1594 = vor.u32 %v1589, %v1593
      %v1596 = vshll.u32 %v1473, 16
      %v1598 = vrot.slane %v1596, 1
      %v1599 = vsel %vm1014, %v1594, %v1598
      %v1601 = vshrl.u32 %v1394, 16
      %v1603 = vshll.u32 %v1394, 16
      %v1605 = vrot.slane %v1603, 1
      %v1606 = vor.u32 %v1601, %v1605
      %v1608 = vshll.u32 %v1474, 16
      %v1610 = vrot.slane %v1608, 1
      %v1611 = vsel %vm1014, %v1606, %v1610
      %v1613 = vshrl.u32 %v1395, 16
      %v1615 = vshll.u32 %v1395, 16
      %v1617 = vrot.slane %v1615, 1
      %v1618 = vor.u32 %v1613, %v1617
      %v1620 = vshll.u32 %v1475, 16
      %v1622 = vrot.slane %v1620, 1
      %v1623 = vsel %vm1014, %v1618, %v1622
      %v1625 = vshrl.u32 %v1396, 16
      %v1627 = vshll.u32 %v1396, 16
      %v1629 = vrot.slane %v1627, 1
      %v1630 = vor.u32 %v1625, %v1629
      %v1632 = vshll.u32 %v1476, 16
      %v1634 = vrot.slane %v1632, 1
      %v1635 = vsel %vm1014, %v1630, %v1634
      %v1637 = vshrl.u32 %v1397, 16
      %v1639 = vshll.u32 %v1397, 16
      %v1641 = vrot.slane %v1639, 1
      %v1642 = vor.u32 %v1637, %v1641
      %v1644 = vshll.u32 %v1477, 16
      %v1646 = vrot.slane %v1644, 1
      %v1647 = vsel %vm1014, %v1642, %v1646
      %v1649 = vshrl.u32 %v1398, 16
      %v1651 = vshll.u32 %v1398, 16
      %v1653 = vrot.slane %v1651, 1
      %v1654 = vor.u32 %v1649, %v1653
      %v1656 = vshll.u32 %v1478, 16
      %v1658 = vrot.slane %v1656, 1
      %v1659 = vsel %vm1014, %v1654, %v1658
      %v1661 = vshrl.u32 %v1399, 16
      %v1663 = vshll.u32 %v1399, 16
      %v1665 = vrot.slane %v1663, 1
      %v1666 = vor.u32 %v1661, %v1665
      %v1668 = vshll.u32 %v1479, 16
      %v1670 = vrot.slane %v1668, 1
      %v1671 = vsel %vm1014, %v1666, %v1670
      %1672 = vrot.lane.b32.xlu0 %v1491, 16
      %v1673 = vpop.permute.xlu0 %1672
      %1674 = vrot.lane.b32.xlu0 %v1503, 16
      %v1675 = vpop.permute.xlu0 %1674
      %1676 = vrot.lane.b32.xlu0 %v1515, 16
      %v1677 = vpop.permute.xlu0 %1676
      %1678 = vrot.lane.b32.xlu0 %v1527, 16
      %v1679 = vpop.permute.xlu0 %1678
      %1680 = vrot.lane.b32.xlu0 %v1539, 16
      %v1681 = vpop.permute.xlu0 %1680
      %1682 = vrot.lane.b32.xlu0 %v1551, 16
      %v1683 = vpop.permute.xlu0 %1682
      %1684 = vrot.lane.b32.xlu0 %v1563, 16
      %v1685 = vpop.permute.xlu0 %1684
      %1686 = vrot.lane.b32.xlu0 %v1575, 16
      %v1687 = vpop.permute.xlu0 %1686
      %1688 = vrot.lane.b32.xlu0 %v1587, 16
      %v1689 = vpop.permute.xlu0 %1688
      %1690 = vrot.lane.b32.xlu0 %v1599, 16
      %v1691 = vpop.permute.xlu0 %1690
      %1692 = vrot.lane.b32.xlu0 %v1611, 16
      %v1693 = vpop.permute.xlu0 %1692
      %1694 = vrot.lane.b32.xlu0 %v1623, 16
      %v1695 = vpop.permute.xlu0 %1694
      %1696 = vrot.lane.b32.xlu0 %v1635, 16
      %v1697 = vpop.permute.xlu0 %1696
      %1698 = vrot.lane.b32.xlu0 %v1647, 16
      %v1699 = vpop.permute.xlu0 %1698
      %1700 = vrot.lane.b32.xlu0 %v1659, 16
      %v1701 = vpop.permute.xlu0 %1700
      %1702 = vrot.lane.b32.xlu0 %v1671, 16
      %v1703 = vpop.permute.xlu0 %1702
      %v1704 = vrot.slane %v1384, 1
      %v1705 = vrot.slane %v1464, 1
      %v1706 = vsel %vm1239, %v1704, %v1705
      %v1707 = vrot.slane %v1385, 1
      %v1708 = vrot.slane %v1465, 1
      %v1709 = vsel %vm1239, %v1707, %v1708
      %v1710 = vrot.slane %v1386, 1
      %v1711 = vrot.slane %v1466, 1
      %v1712 = vsel %vm1239, %v1710, %v1711
      %v1713 = vrot.slane %v1387, 1
      %v1714 = vrot.slane %v1467, 1
      %v1715 = vsel %vm1239, %v1713, %v1714
      %v1716 = vrot.slane %v1388, 1
      %v1717 = vrot.slane %v1468, 1
      %v1718 = vsel %vm1239, %v1716, %v1717
      %v1719 = vrot.slane %v1389, 1
      %v1720 = vrot.slane %v1469, 1
      %v1721 = vsel %vm1239, %v1719, %v1720
      %v1722 = vrot.slane %v1390, 1
      %v1723 = vrot.slane %v1470, 1
      %v1724 = vsel %vm1239, %v1722, %v1723
      %v1725 = vrot.slane %v1391, 1
      %v1726 = vrot.slane %v1471, 1
      %v1727 = vsel %vm1239, %v1725, %v1726
      %v1728 = vrot.slane %v1392, 1
      %v1729 = vrot.slane %v1472, 1
      %v1730 = vsel %vm1239, %v1728, %v1729
      %v1731 = vrot.slane %v1393, 1
      %v1732 = vrot.slane %v1473, 1
      %v1733 = vsel %vm1239, %v1731, %v1732
      %v1734 = vrot.slane %v1394, 1
      %v1735 = vrot.slane %v1474, 1
      %v1736 = vsel %vm1239, %v1734, %v1735
      %v1737 = vrot.slane %v1395, 1
      %v1738 = vrot.slane %v1475, 1
      %v1739 = vsel %vm1239, %v1737, %v1738
      %v1740 = vrot.slane %v1396, 1
      %v1741 = vrot.slane %v1476, 1
      %v1742 = vsel %vm1239, %v1740, %v1741
      %v1743 = vrot.slane %v1397, 1
      %v1744 = vrot.slane %v1477, 1
      %v1745 = vsel %vm1239, %v1743, %v1744
      %v1746 = vrot.slane %v1398, 1
      %v1747 = vrot.slane %v1478, 1
      %v1748 = vsel %vm1239, %v1746, %v1747
      %v1749 = vrot.slane %v1399, 1
      %v1750 = vrot.slane %v1479, 1
      %v1751 = vsel %vm1239, %v1749, %v1750
      %1752 = vrot.lane.b32.xlu0 %v1706, 20
      %v1753 = vpop.permute.xlu0 %1752
      %1754 = vrot.lane.b32.xlu0 %v1709, 20
      %v1755 = vpop.permute.xlu0 %1754
      %1756 = vrot.lane.b32.xlu0 %v1712, 20
      %v1757 = vpop.permute.xlu0 %1756
      %1758 = vrot.lane.b32.xlu0 %v1715, 20
      %v1759 = vpop.permute.xlu0 %1758
      %1760 = vrot.lane.b32.xlu0 %v1718, 20
      %v1761 = vpop.permute.xlu0 %1760
      %1762 = vrot.lane.b32.xlu0 %v1721, 20
      %v1763 = vpop.permute.xlu0 %1762
      %1764 = vrot.lane.b32.xlu0 %v1724, 20
      %v1765 = vpop.permute.xlu0 %1764
      %1766 = vrot.lane.b32.xlu0 %v1727, 20
      %v1767 = vpop.permute.xlu0 %1766
      %1768 = vrot.lane.b32.xlu0 %v1730, 20
      %v1769 = vpop.permute.xlu0 %1768
      %1770 = vrot.lane.b32.xlu0 %v1733, 20
      %v1771 = vpop.permute.xlu0 %1770
      %1772 = vrot.lane.b32.xlu0 %v1736, 20
      %v1773 = vpop.permute.xlu0 %1772
      %1774 = vrot.lane.b32.xlu0 %v1739, 20
      %v1775 = vpop.permute.xlu0 %1774
      %1776 = vrot.lane.b32.xlu0 %v1742, 20
      %v1777 = vpop.permute.xlu0 %1776
      %1778 = vrot.lane.b32.xlu0 %v1745, 20
      %v1779 = vpop.permute.xlu0 %1778
      %1780 = vrot.lane.b32.xlu0 %v1748, 20
      %v1781 = vpop.permute.xlu0 %1780
      %1782 = vrot.lane.b32.xlu0 %v1751, 20
      %v1783 = vpop.permute.xlu0 %1782
      %v1816 = vunpack.c.l.b16 %v838
      %v1817 = vunpack.c.l.b16 %v839
      %v1818 = vunpack.c.l.b16 %v841
      %v1819 = vunpack.c.l.b16 %v842
      %v1820 = vunpack.c.l.b16 %v844
      %v1821 = vunpack.c.l.b16 %v845
      %v1822 = vunpack.c.l.b16 %v847
      %v1823 = vunpack.c.l.b16 %v848
      %v1824 = vunpack.c.l.b16 %v850
      %v1825 = vunpack.c.l.b16 %v851
      %v1826 = vunpack.c.l.b16 %v853
      %v1827 = vunpack.c.l.b16 %v854
      %v1828 = vunpack.c.l.b16 %v856
      %v1829 = vunpack.c.l.b16 %v857
      %v1830 = vunpack.c.l.b16 %v859
      %v1831 = vunpack.c.l.b16 %v860
      %v1832 = vunpack.c.l.b16 %v862
      %v1833 = vunpack.c.l.b16 %v863
      %v1834 = vunpack.c.l.b16 %v865
      %v1835 = vunpack.c.l.b16 %v866
      %v1836 = vunpack.c.l.b16 %v868
      %v1837 = vunpack.c.l.b16 %v869
      %v1838 = vunpack.c.l.b16 %v871
      %v1839 = vunpack.c.l.b16 %v872
      %v1840 = vunpack.c.l.b16 %v874
      %v1841 = vunpack.c.l.b16 %v875
      %v1842 = vunpack.c.l.b16 %v877
      %v1843 = vunpack.c.l.b16 %v878
      %v1844 = vunpack.c.l.b16 %v880
      %v1845 = vunpack.c.l.b16 %v881
      %v1846 = vunpack.c.l.b16 %v883
      %v1847 = vunpack.c.l.b16 %v884
      %v1848 = vpack.c.b16 %v1817, %v1816
      %v1849 = vpack.c.b16 %v1819, %v1818
      %v1850 = vpack.c.b16 %v1821, %v1820
      %v1851 = vpack.c.b16 %v1823, %v1822
      %v1852 = vpack.c.b16 %v1825, %v1824
      %v1853 = vpack.c.b16 %v1827, %v1826
      %v1854 = vpack.c.b16 %v1829, %v1828
      %v1855 = vpack.c.b16 %v1831, %v1830
      %v1856 = vpack.c.b16 %v1833, %v1832
      %v1857 = vpack.c.b16 %v1835, %v1834
      %v1858 = vpack.c.b16 %v1837, %v1836
      %v1859 = vpack.c.b16 %v1839, %v1838
      %v1860 = vpack.c.b16 %v1841, %v1840
      %v1861 = vpack.c.b16 %v1843, %v1842
      %v1862 = vpack.c.b16 %v1845, %v1844
      %v1863 = vpack.c.b16 %v1847, %v1846
      %1864 = vrot.lane.b32.xlu0 %v1848, 24
      %v1865 = vpop.permute.xlu0 %1864
      %1866 = vrot.lane.b32.xlu0 %v1849, 24
      %v1867 = vpop.permute.xlu0 %1866
      %1868 = vrot.lane.b32.xlu0 %v1850, 24
      %v1869 = vpop.permute.xlu0 %1868
      %1870 = vrot.lane.b32.xlu0 %v1851, 24
      %v1871 = vpop.permute.xlu0 %1870
      %1872 = vrot.lane.b32.xlu0 %v1852, 24
      %v1873 = vpop.permute.xlu0 %1872
      %1874 = vrot.lane.b32.xlu0 %v1853, 24
      %v1875 = vpop.permute.xlu0 %1874
      %1876 = vrot.lane.b32.xlu0 %v1854, 24
      %v1877 = vpop.permute.xlu0 %1876
      %1878 = vrot.lane.b32.xlu0 %v1855, 24
      %v1879 = vpop.permute.xlu0 %1878
      %1880 = vrot.lane.b32.xlu0 %v1856, 24
      %v1881 = vpop.permute.xlu0 %1880
      %1882 = vrot.lane.b32.xlu0 %v1857, 24
      %v1883 = vpop.permute.xlu0 %1882
      %1884 = vrot.lane.b32.xlu0 %v1858, 24
      %v1885 = vpop.permute.xlu0 %1884
      %1886 = vrot.lane.b32.xlu0 %v1859, 24
      %v1887 = vpop.permute.xlu0 %1886
      %1888 = vrot.lane.b32.xlu0 %v1860, 24
      %v1889 = vpop.permute.xlu0 %1888
      %1890 = vrot.lane.b32.xlu0 %v1861, 24
      %v1891 = vpop.permute.xlu0 %1890
      %1892 = vrot.lane.b32.xlu0 %v1862, 24
      %v1893 = vpop.permute.xlu0 %1892
      %1894 = vrot.lane.b32.xlu0 %v1863, 24
      %v1895 = vpop.permute.xlu0 %1894
      %v1912 = vunpack.c.l.b16 %v840
      %v1913 = vunpack.c.l.b16 %v843
      %v1914 = vunpack.c.l.b16 %v846
      %v1915 = vunpack.c.l.b16 %v849
      %v1916 = vunpack.c.l.b16 %v852
      %v1917 = vunpack.c.l.b16 %v855
      %v1918 = vunpack.c.l.b16 %v858
      %v1919 = vunpack.c.l.b16 %v861
      %v1920 = vunpack.c.l.b16 %v864
      %v1921 = vunpack.c.l.b16 %v867
      %v1922 = vunpack.c.l.b16 %v870
      %v1923 = vunpack.c.l.b16 %v873
      %v1924 = vunpack.c.l.b16 %v876
      %v1925 = vunpack.c.l.b16 %v879
      %v1926 = vunpack.c.l.b16 %v882
      %v1927 = vunpack.c.l.b16 %v885
      %v1928 = vpack.c.b16 %v1912, %v1912
      %v1929 = vpack.c.b16 %v1913, %v1913
      %v1930 = vpack.c.b16 %v1914, %v1914
      %v1931 = vpack.c.b16 %v1915, %v1915
      %v1932 = vpack.c.b16 %v1916, %v1916
      %v1933 = vpack.c.b16 %v1917, %v1917
      %v1934 = vpack.c.b16 %v1918, %v1918
      %v1935 = vpack.c.b16 %v1919, %v1919
      %v1936 = vpack.c.b16 %v1920, %v1920
      %v1937 = vpack.c.b16 %v1921, %v1921
      %v1938 = vpack.c.b16 %v1922, %v1922
      %v1939 = vpack.c.b16 %v1923, %v1923
      %v1940 = vpack.c.b16 %v1924, %v1924
      %v1941 = vpack.c.b16 %v1925, %v1925
      %v1942 = vpack.c.b16 %v1926, %v1926
      %v1943 = vpack.c.b16 %v1927, %v1927
      %v1945 = vshrl.u32 %v1848, 16
      %v1947 = vshll.u32 %v1848, 16
      %v1949 = vrot.slane %v1947, 1
      %v1950 = vor.u32 %v1945, %v1949
      %v1952 = vshll.u32 %v1928, 16
      %v1954 = vrot.slane %v1952, 1
      %v1955 = vsel %vm1014, %v1950, %v1954
      %v1957 = vshrl.u32 %v1849, 16
      %v1959 = vshll.u32 %v1849, 16
      %v1961 = vrot.slane %v1959, 1
      %v1962 = vor.u32 %v1957, %v1961
      %v1964 = vshll.u32 %v1929, 16
      %v1966 = vrot.slane %v1964, 1
      %v1967 = vsel %vm1014, %v1962, %v1966
      %v1969 = vshrl.u32 %v1850, 16
      %v1971 = vshll.u32 %v1850, 16
      %v1973 = vrot.slane %v1971, 1
      %v1974 = vor.u32 %v1969, %v1973
      %v1976 = vshll.u32 %v1930, 16
      %v1978 = vrot.slane %v1976, 1
      %v1979 = vsel %vm1014, %v1974, %v1978
      %v1981 = vshrl.u32 %v1851, 16
      %v1983 = vshll.u32 %v1851, 16
      %v1985 = vrot.slane %v1983, 1
      %v1986 = vor.u32 %v1981, %v1985
      %v1988 = vshll.u32 %v1931, 16
      %v1990 = vrot.slane %v1988, 1
      %v1991 = vsel %vm1014, %v1986, %v1990
      %v1993 = vshrl.u32 %v1852, 16
      %v1995 = vshll.u32 %v1852, 16
      %v1997 = vrot.slane %v1995, 1
      %v1998 = vor.u32 %v1993, %v1997
      %v2000 = vshll.u32 %v1932, 16
      %v2002 = vrot.slane %v2000, 1
      %v2003 = vsel %vm1014, %v1998, %v2002
      %v2005 = vshrl.u32 %v1853, 16
      %v2007 = vshll.u32 %v1853, 16
      %v2009 = vrot.slane %v2007, 1
      %v2010 = vor.u32 %v2005, %v2009
      %v2012 = vshll.u32 %v1933, 16
      %v2014 = vrot.slane %v2012, 1
      %v2015 = vsel %vm1014, %v2010, %v2014
      %v2017 = vshrl.u32 %v1854, 16
      %v2019 = vshll.u32 %v1854, 16
      %v2021 = vrot.slane %v2019, 1
      %v2022 = vor.u32 %v2017, %v2021
      %v2024 = vshll.u32 %v1934, 16
      %v2026 = vrot.slane %v2024, 1
      %v2027 = vsel %vm1014, %v2022, %v2026
      %v2029 = vshrl.u32 %v1855, 16
      %v2031 = vshll.u32 %v1855, 16
      %v2033 = vrot.slane %v2031, 1
      %v2034 = vor.u32 %v2029, %v2033
      %v2036 = vshll.u32 %v1935, 16
      %v2038 = vrot.slane %v2036, 1
      %v2039 = vsel %vm1014, %v2034, %v2038
      %v2041 = vshrl.u32 %v1856, 16
      %v2043 = vshll.u32 %v1856, 16
      %v2045 = vrot.slane %v2043, 1
      %v2046 = vor.u32 %v2041, %v2045
      %v2048 = vshll.u32 %v1936, 16
      %v2050 = vrot.slane %v2048, 1
      %v2051 = vsel %vm1014, %v2046, %v2050
      %v2053 = vshrl.u32 %v1857, 16
      %v2055 = vshll.u32 %v1857, 16
      %v2057 = vrot.slane %v2055, 1
      %v2058 = vor.u32 %v2053, %v2057
      %v2060 = vshll.u32 %v1937, 16
      %v2062 = vrot.slane %v2060, 1
      %v2063 = vsel %vm1014, %v2058, %v2062
      %v2065 = vshrl.u32 %v1858, 16
      %v2067 = vshll.u32 %v1858, 16
      %v2069 = vrot.slane %v2067, 1
      %v2070 = vor.u32 %v2065, %v2069
      %v2072 = vshll.u32 %v1938, 16
      %v2074 = vrot.slane %v2072, 1
      %v2075 = vsel %vm1014, %v2070, %v2074
      %v2077 = vshrl.u32 %v1859, 16
      %v2079 = vshll.u32 %v1859, 16
      %v2081 = vrot.slane %v2079, 1
      %v2082 = vor.u32 %v2077, %v2081
      %v2084 = vshll.u32 %v1939, 16
      %v2086 = vrot.slane %v2084, 1
      %v2087 = vsel %vm1014, %v2082, %v2086
      %v2089 = vshrl.u32 %v1860, 16
      %v2091 = vshll.u32 %v1860, 16
      %v2093 = vrot.slane %v2091, 1
      %v2094 = vor.u32 %v2089, %v2093
      %v2096 = vshll.u32 %v1940, 16
      %v2098 = vrot.slane %v2096, 1
      %v2099 = vsel %vm1014, %v2094, %v2098
      %v2101 = vshrl.u32 %v1861, 16
      %v2103 = vshll.u32 %v1861, 16
      %v2105 = vrot.slane %v2103, 1
      %v2106 = vor.u32 %v2101, %v2105
      %v2108 = vshll.u32 %v1941, 16
      %v2110 = vrot.slane %v2108, 1
      %v2111 = vsel %vm1014, %v2106, %v2110
      %v2113 = vshrl.u32 %v1862, 16
      %v2115 = vshll.u32 %v1862, 16
      %v2117 = vrot.slane %v2115, 1
      %v2118 = vor.u32 %v2113, %v2117
      %v2120 = vshll.u32 %v1942, 16
      %v2122 = vrot.slane %v2120, 1
      %v2123 = vsel %vm1014, %v2118, %v2122
      %v2125 = vshrl.u32 %v1863, 16
      %v2127 = vshll.u32 %v1863, 16
      %v2129 = vrot.slane %v2127, 1
      %v2130 = vor.u32 %v2125, %v2129
      %v2132 = vshll.u32 %v1943, 16
      %v2134 = vrot.slane %v2132, 1
      %v2135 = vsel %vm1014, %v2130, %v2134
      %2136 = vrot.lane.b32.xlu0 %v1955, 28
      %v2137 = vpop.permute.xlu0 %2136
      %2138 = vrot.lane.b32.xlu0 %v1967, 28
      %v2139 = vpop.permute.xlu0 %2138
      %2140 = vrot.lane.b32.xlu0 %v1979, 28
      %v2141 = vpop.permute.xlu0 %2140
      %2142 = vrot.lane.b32.xlu0 %v1991, 28
      %v2143 = vpop.permute.xlu0 %2142
      %2144 = vrot.lane.b32.xlu0 %v2003, 28
      %v2145 = vpop.permute.xlu0 %2144
      %2146 = vrot.lane.b32.xlu0 %v2015, 28
      %v2147 = vpop.permute.xlu0 %2146
      %2148 = vrot.lane.b32.xlu0 %v2027, 28
      %v2149 = vpop.permute.xlu0 %2148
      %2150 = vrot.lane.b32.xlu0 %v2039, 28
      %v2151 = vpop.permute.xlu0 %2150
      %2152 = vrot.lane.b32.xlu0 %v2051, 28
      %v2153 = vpop.permute.xlu0 %2152
      %2154 = vrot.lane.b32.xlu0 %v2063, 28
      %v2155 = vpop.permute.xlu0 %2154
      %2156 = vrot.lane.b32.xlu0 %v2075, 28
      %v2157 = vpop.permute.xlu0 %2156
      %2158 = vrot.lane.b32.xlu0 %v2087, 28
      %v2159 = vpop.permute.xlu0 %2158
      %2160 = vrot.lane.b32.xlu0 %v2099, 28
      %v2161 = vpop.permute.xlu0 %2160
      %2162 = vrot.lane.b32.xlu0 %v2111, 28
      %v2163 = vpop.permute.xlu0 %2162
      %2164 = vrot.lane.b32.xlu0 %v2123, 28
      %v2165 = vpop.permute.xlu0 %2164
      %2166 = vrot.lane.b32.xlu0 %v2135, 28
      %v2167 = vpop.permute.xlu0 %2166
      %v2168 = vrot.slane %v1848, 1
      %v2169 = vrot.slane %v1928, 1
      %v2170 = vsel %vm1239, %v2168, %v2169
      %v2171 = vrot.slane %v1849, 1
      %v2172 = vrot.slane %v1929, 1
      %v2173 = vsel %vm1239, %v2171, %v2172
      %v2174 = vrot.slane %v1850, 1
      %v2175 = vrot.slane %v1930, 1
      %v2176 = vsel %vm1239, %v2174, %v2175
      %v2177 = vrot.slane %v1851, 1
      %v2178 = vrot.slane %v1931, 1
      %v2179 = vsel %vm1239, %v2177, %v2178
      %v2180 = vrot.slane %v1852, 1
      %v2181 = vrot.slane %v1932, 1
      %v2182 = vsel %vm1239, %v2180, %v2181
      %v2183 = vrot.slane %v1853, 1
      %v2184 = vrot.slane %v1933, 1
      %v2185 = vsel %vm1239, %v2183, %v2184
      %v2186 = vrot.slane %v1854, 1
      %v2187 = vrot.slane %v1934, 1
      %v2188 = vsel %vm1239, %v2186, %v2187
      %v2189 = vrot.slane %v1855, 1
      %v2190 = vrot.slane %v1935, 1
      %v2191 = vsel %vm1239, %v2189, %v2190
      %v2192 = vrot.slane %v1856, 1
      %v2193 = vrot.slane %v1936, 1
      %v2194 = vsel %vm1239, %v2192, %v2193
      %v2195 = vrot.slane %v1857, 1
      %v2196 = vrot.slane %v1937, 1
      %v2197 = vsel %vm1239, %v2195, %v2196
      %v2198 = vrot.slane %v1858, 1
      %v2199 = vrot.slane %v1938, 1
      %v2200 = vsel %vm1239, %v2198, %v2199
      %v2201 = vrot.slane %v1859, 1
      %v2202 = vrot.slane %v1939, 1
      %v2203 = vsel %vm1239, %v2201, %v2202
      %v2204 = vrot.slane %v1860, 1
      %v2205 = vrot.slane %v1940, 1
      %v2206 = vsel %vm1239, %v2204, %v2205
      %v2207 = vrot.slane %v1861, 1
      %v2208 = vrot.slane %v1941, 1
      %v2209 = vsel %vm1239, %v2207, %v2208
      %v2210 = vrot.slane %v1862, 1
      %v2211 = vrot.slane %v1942, 1
      %v2212 = vsel %vm1239, %v2210, %v2211
      %v2213 = vrot.slane %v1863, 1
      %v2214 = vrot.slane %v1943, 1
      %v2215 = vsel %vm1239, %v2213, %v2214
      %2216 = vrot.lane.b32.xlu0 %v2170, 32
      %v2217 = vpop.permute.xlu0 %2216
      %2218 = vrot.lane.b32.xlu0 %v2173, 32
      %v2219 = vpop.permute.xlu0 %2218
      %2220 = vrot.lane.b32.xlu0 %v2176, 32
      %v2221 = vpop.permute.xlu0 %2220
      %2222 = vrot.lane.b32.xlu0 %v2179, 32
      %v2223 = vpop.permute.xlu0 %2222
      %2224 = vrot.lane.b32.xlu0 %v2182, 32
      %v2225 = vpop.permute.xlu0 %2224
      %2226 = vrot.lane.b32.xlu0 %v2185, 32
      %v2227 = vpop.permute.xlu0 %2226
      %2228 = vrot.lane.b32.xlu0 %v2188, 32
      %v2229 = vpop.permute.xlu0 %2228
      %2230 = vrot.lane.b32.xlu0 %v2191, 32
      %v2231 = vpop.permute.xlu0 %2230
      %2232 = vrot.lane.b32.xlu0 %v2194, 32
      %v2233 = vpop.permute.xlu0 %2232
      %2234 = vrot.lane.b32.xlu0 %v2197, 32
      %v2235 = vpop.permute.xlu0 %2234
      %2236 = vrot.lane.b32.xlu0 %v2200, 32
      %v2237 = vpop.permute.xlu0 %2236
      %2238 = vrot.lane.b32.xlu0 %v2203, 32
      %v2239 = vpop.permute.xlu0 %2238
      %2240 = vrot.lane.b32.xlu0 %v2206, 32
      %v2241 = vpop.permute.xlu0 %2240
      %2242 = vrot.lane.b32.xlu0 %v2209, 32
      %v2243 = vpop.permute.xlu0 %2242
      %2244 = vrot.lane.b32.xlu0 %v2212, 32
      %v2245 = vpop.permute.xlu0 %2244
      %2246 = vrot.lane.b32.xlu0 %v2215, 32
      %v2247 = vpop.permute.xlu0 %2246
      %vm2248 = vcmask 31744
      %v2250 = vsel %vm2248, %v950, %v1208
      %v2252 = vsel %vm2248, %v951, %v1210
      %v2254 = vsel %vm2248, %v952, %v1212
      %v2256 = vsel %vm2248, %v953, %v1214
      %v2258 = vsel %vm2248, %v954, %v1216
      %v2260 = vsel %vm2248, %v955, %v1218
      %v2262 = vsel %vm2248, %v956, %v1220
      %v2264 = vsel %vm2248, %v957, %v1222
      %v2266 = vsel %vm2248, %v958, %v1224
      %v2268 = vsel %vm2248, %v959, %v1226
      %v2270 = vsel %vm2248, %v960, %v1228
      %v2272 = vsel %vm2248, %v961, %v1230
      %v2274 = vsel %vm2248, %v962, %v1232
      %v2276 = vsel %vm2248, %v963, %v1234
      %v2278 = vsel %vm2248, %v964, %v1236
      %v2280 = vsel %vm2248, %v965, %v1238
      %vm2281 = vcmask 64512
      %v2283 = vsel %vm2281, %v2250, %v1289
      %v2285 = vsel %vm2281, %v2252, %v1291
      %v2287 = vsel %vm2281, %v2254, %v1293
      %v2289 = vsel %vm2281, %v2256, %v1295
      %v2291 = vsel %vm2281, %v2258, %v1297
      %v2293 = vsel %vm2281, %v2260, %v1299
      %v2295 = vsel %vm2281, %v2262, %v1301
      %v2297 = vsel %vm2281, %v2264, %v1303
      %v2299 = vsel %vm2281, %v2266, %v1305
      %v2301 = vsel %vm2281, %v2268, %v1307
      %v2303 = vsel %vm2281, %v2270, %v1309
      %v2305 = vsel %vm2281, %v2272, %v1311
      %v2307 = vsel %vm2281, %v2274, %v1313
      %v2309 = vsel %vm2281, %v2276, %v1315
      %v2311 = vsel %vm2281, %v2278, %v1317
      %v2313 = vsel %vm2281, %v2280, %v1319
      %vm2314 = vcmask 97280
      %v2316 = vsel %vm2314, %v2283, %v1401
      %v2318 = vsel %vm2314, %v2285, %v1403
      %v2320 = vsel %vm2314, %v2287, %v1405
      %v2322 = vsel %vm2314, %v2289, %v1407
      %v2324 = vsel %vm2314, %v2291, %v1409
      %v2326 = vsel %vm2314, %v2293, %v1411
      %v2328 = vsel %vm2314, %v2295, %v1413
      %v2330 = vsel %vm2314, %v2297, %v1415
      %v2332 = vsel %vm2314, %v2299, %v1417
      %v2334 = vsel %vm2314, %v2301, %v1419
      %v2336 = vsel %vm2314, %v2303, %v1421
      %v2338 = vsel %vm2314, %v2305, %v1423
      %v2340 = vsel %vm2314, %v2307, %v1425
      %v2342 = vsel %vm2314, %v2309, %v1427
      %v2344 = vsel %vm2314, %v2311, %v1429
      %v2346 = vsel %vm2314, %v2313, %v1431
      %vm2347 = vcmask 130048
      %v2349 = vsel %vm2347, %v2316, %v1673
      %v2351 = vsel %vm2347, %v2318, %v1675
      %v2353 = vsel %vm2347, %v2320, %v1677
      %v2355 = vsel %vm2347, %v2322, %v1679
      %v2357 = vsel %vm2347, %v2324, %v1681
      %v2359 = vsel %vm2347, %v2326, %v1683
      %v2361 = vsel %vm2347, %v2328, %v1685
      %v2363 = vsel %vm2347, %v2330, %v1687
      %v2365 = vsel %vm2347, %v2332, %v1689
      %v2367 = vsel %vm2347, %v2334, %v1691
      %v2369 = vsel %vm2347, %v2336, %v1693
      %v2371 = vsel %vm2347, %v2338, %v1695
      %v2373 = vsel %vm2347, %v2340, %v1697
      %v2375 = vsel %vm2347, %v2342, %v1699
      %v2377 = vsel %vm2347, %v2344, %v1701
      %v2379 = vsel %vm2347, %v2346, %v1703
      %vm2380 = vcmask 162816
      %v2382 = vsel %vm2380, %v2349, %v1753
      %v2384 = vsel %vm2380, %v2351, %v1755
      %v2386 = vsel %vm2380, %v2353, %v1757
      %v2388 = vsel %vm2380, %v2355, %v1759
      %v2390 = vsel %vm2380, %v2357, %v1761
      %v2392 = vsel %vm2380, %v2359, %v1763
      %v2394 = vsel %vm2380, %v2361, %v1765
      %v2396 = vsel %vm2380, %v2363, %v1767
      %v2398 = vsel %vm2380, %v2365, %v1769
      %v2400 = vsel %vm2380, %v2367, %v1771
      %v2402 = vsel %vm2380, %v2369, %v1773
      %v2404 = vsel %vm2380, %v2371, %v1775
      %v2406 = vsel %vm2380, %v2373, %v1777
      %v2408 = vsel %vm2380, %v2375, %v1779
      %v2410 = vsel %vm2380, %v2377, %v1781
      %v2412 = vsel %vm2380, %v2379, %v1783
      %vm2413 = vcmask 195584
      %v2415 = vsel %vm2413, %v2382, %v1865
      %v2417 = vsel %vm2413, %v2384, %v1867
      %v2419 = vsel %vm2413, %v2386, %v1869
      %v2421 = vsel %vm2413, %v2388, %v1871
      %v2423 = vsel %vm2413, %v2390, %v1873
      %v2425 = vsel %vm2413, %v2392, %v1875
      %v2427 = vsel %vm2413, %v2394, %v1877
      %v2429 = vsel %vm2413, %v2396, %v1879
      %v2431 = vsel %vm2413, %v2398, %v1881
      %v2433 = vsel %vm2413, %v2400, %v1883
      %v2435 = vsel %vm2413, %v2402, %v1885
      %v2437 = vsel %vm2413, %v2404, %v1887
      %v2439 = vsel %vm2413, %v2406, %v1889
      %v2441 = vsel %vm2413, %v2408, %v1891
      %v2443 = vsel %vm2413, %v2410, %v1893
      %v2445 = vsel %vm2413, %v2412, %v1895
      %vm2446 = vcmask 228352
      %v2448 = vsel %vm2446, %v2415, %v2137
      %v2450 = vsel %vm2446, %v2417, %v2139
      %v2452 = vsel %vm2446, %v2419, %v2141
      %v2454 = vsel %vm2446, %v2421, %v2143
      %v2456 = vsel %vm2446, %v2423, %v2145
      %v2458 = vsel %vm2446, %v2425, %v2147
      %v2460 = vsel %vm2446, %v2427, %v2149
      %v2462 = vsel %vm2446, %v2429, %v2151
      %v2464 = vsel %vm2446, %v2431, %v2153
      %v2466 = vsel %vm2446, %v2433, %v2155
      %v2468 = vsel %vm2446, %v2435, %v2157
      %v2470 = vsel %vm2446, %v2437, %v2159
      %v2472 = vsel %vm2446, %v2439, %v2161
      %v2474 = vsel %vm2446, %v2441, %v2163
      %v2476 = vsel %vm2446, %v2443, %v2165
      %v2478 = vsel %vm2446, %v2445, %v2167
      %vm2479 = vcmask 261120
      %v2481 = vsel %vm2479, %v2448, %v2217
      %v2483 = vsel %vm2479, %v2450, %v2219
      %v2485 = vsel %vm2479, %v2452, %v2221
      %v2487 = vsel %vm2479, %v2454, %v2223
      %v2489 = vsel %vm2479, %v2456, %v2225
      %v2491 = vsel %vm2479, %v2458, %v2227
      %v2493 = vsel %vm2479, %v2460, %v2229
      %v2495 = vsel %vm2479, %v2462, %v2231
      %v2497 = vsel %vm2479, %v2464, %v2233
      %v2499 = vsel %vm2479, %v2466, %v2235
      %v2501 = vsel %vm2479, %v2468, %v2237
      %v2503 = vsel %vm2479, %v2470, %v2239
      %v2505 = vsel %vm2479, %v2472, %v2241
      %v2507 = vsel %vm2479, %v2474, %v2243
      %v2509 = vsel %vm2479, %v2476, %v2245
      %v2511 = vsel %vm2479, %v2478, %v2247
      %v2512 = vld [vmem:[%s1] sm:$0xf]
      %v2513 = vld [vmem:[%s1 + $0x4] sm:$0xf]
      %v2514 = vld [vmem:[%s1 + $0x8] sm:$0xf]
      %v2515 = vld [vmem:[%s1 + $0xc] sm:$0xf]
      %v2516 = vld [vmem:[%s1 + $0x10] sm:$0x3]
      %v2522 = vunpack.c.l.b16 %v2512
      %v2523 = vunpack.c.l.b16 %v2513
      %v2524 = vunpack.c.l.b16 %v2514
      %v2525 = vunpack.c.l.b16 %v2515
      %v2526 = vunpack.c.l.b16 %v2516
      %v2527 = vpack.c.b16 %v2523, %v2522
      %v2528 = vpack.c.b16 %v2525, %v2524
      %v2529 = vpack.c.b16 %v2526, %v2526
      %vm2532 = vcmask 293888
      %v2533 = vsel %vm2532, %v2481, 0
      %v2535 = vsel %vm2532, %v2483, 0
      %v2537 = vsel %vm2532, %v2485, 0
      %v2539 = vsel %vm2532, %v2487, 0
      %v2541 = vsel %vm2532, %v2489, 0
      %v2543 = vsel %vm2532, %v2491, 0
      %v2545 = vsel %vm2532, %v2493, 0
      %v2547 = vsel %vm2532, %v2495, 0
      %v2549 = vsel %vm2532, %v2497, 0
      %v2551 = vsel %vm2532, %v2499, 0
      %v2553 = vsel %vm2532, %v2501, 0
      %v2555 = vsel %vm2532, %v2503, 0
      %v2557 = vsel %vm2532, %v2505, 0
      %v2559 = vsel %vm2532, %v2507, 0
      %v2561 = vsel %vm2532, %v2509, 0
      %v2563 = vsel %vm2532, %v2511, 0
      %vm2565 = vcmask 1041408
      %v2567 = vsel %vm2565, %v2529, 0
      %2569 = vmatprep.subr.bf16.mxu0 0
      %2570 = vmatpush1.bf16.msra.mxu0 %v2527
      %2571 = vmatprep.subr.bf16.mxu0 0
      %2572 = vmatpush1.bf16.msra.mxu0 %v2528
      %2573 = vmatprep.subr.bf16.mxu0 0
      %2574 = vmatpush1.bf16.msra.mxu0 %v2567
      %2575 = vmatprep.subr.bf16.mxu0 0
      %2576 = vmatpush1.bf16.msra.mxu0 0
      %2577 = vmatprep.subr.bf16.mxu0 0
      %2578 = vmatpush1.bf16.msra.mxu0 0
      %2579 = vmatprep.subr.bf16.mxu0 0
      %2580 = vmatpush1.bf16.msra.mxu0 0
      %2581 = vmatprep.subr.bf16.mxu0 0
      %2582 = vmatpush1.bf16.msra.mxu0 0
      %2583 = vmatprep.subr.bf16.mxu0 0
      %2584 = vmatpush1.bf16.msra.mxu0 0
      %2585 = vmatprep.subr.bf16.mxu0 0
      %2586 = vmatpush1.bf16.msra.mxu0 0
      %2587 = vmatprep.subr.bf16.mxu0 0
      %2588 = vmatpush1.bf16.msra.mxu0 0
      %2589 = vmatprep.subr.bf16.mxu0 0
      %2590 = vmatpush1.bf16.msra.mxu0 0
      %2591 = vmatprep.subr.bf16.mxu0 0
      %2592 = vmatpush1.bf16.msra.mxu0 0
      %2593 = vmatprep.subr.bf16.mxu0 0
      %2594 = vmatpush1.bf16.msra.mxu0 0
      %2595 = vmatprep.subr.bf16.mxu0 0
      %2596 = vmatpush1.bf16.msra.mxu0 0
      %2597 = vmatprep.subr.bf16.mxu0 0
      %2598 = vmatpush1.bf16.msra.mxu0 0
      %2599 = vmatprep.subr.bf16.mxu0 0
      %2600 = vmatpush1.bf16.msra.mxu0 0
      %2601 = vmatprep.mubr.bf16.mxu0 0
      %2602 = vmatmul.mubr.bf16.gmra.mrb[0].mxu0 %v2533
      %v2603 = vpop.f32.mrb[0].mxu0
      %v2604 = vadd.f32 0.0, %v2603
      %v2605 = vpop.f32.mrb[0].mxu0
      %v2606 = vpop.f32.mrb[0].mxu0
      %v2607 = vadd.f32 0.0, %v2606
      %v2608 = vpop.f32.mrb[0].mxu0
      %2609 = vmatprep.mubr.bf16.mxu0 0
      %2610 = vmatmul.mubr.bf16.gmra.mrb[0].mxu0 %v2535
      %v2611 = vpop.f32.mrb[0].mxu0
      %v2612 = vadd.f32 0.0, %v2611
      %v2613 = vpop.f32.mrb[0].mxu0
      %v2614 = vpop.f32.mrb[0].mxu0
      %v2615 = vadd.f32 0.0, %v2614
      %v2616 = vpop.f32.mrb[0].mxu0
      %2617 = vmatprep.mubr.bf16.mxu0 0
      %2618 = vmatmul.mubr.bf16.gmra.mrb[0].mxu0 %v2537
      %v2619 = vpop.f32.mrb[0].mxu0
      %v2620 = vadd.f32 0.0, %v2619
      %v2621 = vpop.f32.mrb[0].mxu0
      %v2622 = vpop.f32.mrb[0].mxu0
      %v2623 = vadd.f32 0.0, %v2622
      %v2624 = vpop.f32.mrb[0].mxu0
      %2625 = vmatprep.mubr.bf16.mxu0 0
      %2626 = vmatmul.mubr.bf16.gmra.mrb[0].mxu0 %v2539
      %v2627 = vpop.f32.mrb[0].mxu0
      %v2628 = vadd.f32 0.0, %v2627
      %v2629 = vpop.f32.mrb[0].mxu0
      %v2630 = vpop.f32.mrb[0].mxu0
      %v2631 = vadd.f32 0.0, %v2630
      %v2632 = vpop.f32.mrb[0].mxu0
      %2633 = vmatprep.mubr.bf16.mxu0 0
      %2634 = vmatmul.mubr.bf16.gmra.mrb[0].mxu0 %v2541
      %v2635 = vpop.f32.mrb[0].mxu0
      %v2636 = vadd.f32 0.0, %v2635
      %v2637 = vpop.f32.mrb[0].mxu0
      %v2638 = vpop.f32.mrb[0].mxu0
      %v2639 = vadd.f32 0.0, %v2638
      %v2640 = vpop.f32.mrb[0].mxu0
      %2641 = vmatprep.mubr.bf16.mxu0 0
      %2642 = vmatmul.mubr.bf16.gmra.mrb[0].mxu0 %v2543
      %v2643 = vpop.f32.mrb[0].mxu0
      %v2644 = vadd.f32 0.0, %v2643
      %v2645 = vpop.f32.mrb[0].mxu0
      %v2646 = vpop.f32.mrb[0].mxu0
      %v2647 = vadd.f32 0.0, %v2646
      %v2648 = vpop.f32.mrb[0].mxu0
      %2649 = vmatprep.mubr.bf16.mxu0 0
      %2650 = vmatmul.mubr.bf16.gmra.mrb[0].mxu0 %v2545
      %v2651 = vpop.f32.mrb[0].mxu0
      %v2652 = vadd.f32 0.0, %v2651
      %v2653 = vpop.f32.mrb[0].mxu0
      %v2654 = vpop.f32.mrb[0].mxu0
      %v2655 = vadd.f32 0.0, %v2654
      %v2656 = vpop.f32.mrb[0].mxu0
      %2657 = vmatprep.mubr.bf16.mxu0 0
      %2658 = vmatmul.mubr.bf16.gmra.mrb[0].mxu0 %v2547
      %v2659 = vpop.f32.mrb[0].mxu0
      %v2660 = vadd.f32 0.0, %v2659
      %v2661 = vpop.f32.mrb[0].mxu0
      %v2662 = vpop.f32.mrb[0].mxu0
      %v2663 = vadd.f32 0.0, %v2662
      %v2664 = vpop.f32.mrb[0].mxu0
      %2665 = vmatprep.mubr.bf16.mxu0 0
      %2666 = vmatmul.mubr.bf16.gmra.mrb[0].mxu0 %v2549
      %v2667 = vpop.f32.mrb[0].mxu0
      %v2668 = vadd.f32 0.0, %v2667
      %v2669 = vpop.f32.mrb[0].mxu0
      %v2670 = vpop.f32.mrb[0].mxu0
      %v2671 = vadd.f32 0.0, %v2670
      %v2672 = vpop.f32.mrb[0].mxu0
      %2673 = vmatprep.mubr.bf16.mxu0 0
      %2674 = vmatmul.mubr.bf16.gmra.mrb[0].mxu0 %v2551
      %v2675 = vpop.f32.mrb[0].mxu0
      %v2676 = vadd.f32 0.0, %v2675
      %v2677 = vpop.f32.mrb[0].mxu0
      %v2678 = vpop.f32.mrb[0].mxu0
      %v2679 = vadd.f32 0.0, %v2678
      %v2680 = vpop.f32.mrb[0].mxu0
      %2681 = vmatprep.mubr.bf16.mxu0 0
      %2682 = vmatmul.mubr.bf16.gmra.mrb[0].mxu0 %v2553
      %v2683 = vpop.f32.mrb[0].mxu0
      %v2684 = vadd.f32 0.0, %v2683
      %v2685 = vpop.f32.mrb[0].mxu0
      %v2686 = vpop.f32.mrb[0].mxu0
      %v2687 = vadd.f32 0.0, %v2686
      %v2688 = vpop.f32.mrb[0].mxu0
      %2689 = vmatprep.mubr.bf16.mxu0 0
      %2690 = vmatmul.mubr.bf16.gmra.mrb[0].mxu0 %v2555
      %v2691 = vpop.f32.mrb[0].mxu0
      %v2692 = vadd.f32 0.0, %v2691
      %v2693 = vpop.f32.mrb[0].mxu0
      %v2694 = vpop.f32.mrb[0].mxu0
      %v2695 = vadd.f32 0.0, %v2694
      %v2696 = vpop.f32.mrb[0].mxu0
      %2697 = vmatprep.mubr.bf16.mxu0 0
      %2698 = vmatmul.mubr.bf16.gmra.mrb[0].mxu0 %v2557
      %v2699 = vpop.f32.mrb[0].mxu0
      %v2700 = vadd.f32 0.0, %v2699
      %v2701 = vpop.f32.mrb[0].mxu0
      %v2702 = vpop.f32.mrb[0].mxu0
      %v2703 = vadd.f32 0.0, %v2702
      %v2704 = vpop.f32.mrb[0].mxu0
      %2705 = vmatprep.mubr.bf16.mxu0 0
      %2706 = vmatmul.mubr.bf16.gmra.mrb[0].mxu0 %v2559
      %v2707 = vpop.f32.mrb[0].mxu0
      %v2708 = vadd.f32 0.0, %v2707
      %v2709 = vpop.f32.mrb[0].mxu0
      %v2710 = vpop.f32.mrb[0].mxu0
      %v2711 = vadd.f32 0.0, %v2710
      %v2712 = vpop.f32.mrb[0].mxu0
      %2713 = vmatprep.mubr.bf16.mxu0 0
      %2714 = vmatmul.mubr.bf16.gmra.mrb[0].mxu0 %v2561
      %v2715 = vpop.f32.mrb[0].mxu0
      %v2716 = vadd.f32 0.0, %v2715
      %v2717 = vpop.f32.mrb[0].mxu0
      %v2718 = vpop.f32.mrb[0].mxu0
      %v2719 = vadd.f32 0.0, %v2718
      %v2720 = vpop.f32.mrb[0].mxu0
      %2721 = vmatprep.mubr.bf16.mxu0 0
      %2722 = vmatmul.mubr.bf16.gmra.mrb[0].mxu0 %v2563
      %v2723 = vpop.f32.mrb[0].mxu0
      %v2724 = vadd.f32 0.0, %v2723
      %v2725 = vpop.f32.mrb[0].mxu0
      %v2726 = vpop.f32.mrb[0].mxu0
      %v2727 = vadd.f32 0.0, %v2726
      %v2728 = vpop.f32.mrb[0].mxu0
      %2729 = vdwg.mxu0
      %v2730 = vld [vmem:[%s2] sm:$0x1]
      %v2732 = vlaneseq
      %v2733 = vshrl.u32 %v2732, 7
      %v2734 = vsub.s32 0, %v2733
      %v2735 = vrot.slane %v2730, %v2734
      %v2737 = vmul.f32 %v2604, %v2735
      %v2738 = vmul.f32 %v2607, %v2735
      %v2739 = vmul.f32 %v2612, %v2735
      %v2740 = vmul.f32 %v2615, %v2735
      %v2741 = vmul.f32 %v2620, %v2735
      %v2742 = vmul.f32 %v2623, %v2735
      %v2743 = vmul.f32 %v2628, %v2735
      %v2744 = vmul.f32 %v2631, %v2735
      %v2745 = vmul.f32 %v2636, %v2735
      %v2746 = vmul.f32 %v2639, %v2735
      %v2747 = vmul.f32 %v2644, %v2735
      %v2748 = vmul.f32 %v2647, %v2735
      %v2749 = vmul.f32 %v2652, %v2735
      %v2750 = vmul.f32 %v2655, %v2735
      %v2751 = vmul.f32 %v2660, %v2735
      %v2752 = vmul.f32 %v2663, %v2735
      %v2753 = vmul.f32 %v2668, %v2735
      %v2754 = vmul.f32 %v2671, %v2735
      %v2755 = vmul.f32 %v2676, %v2735
      %v2756 = vmul.f32 %v2679, %v2735
      %v2757 = vmul.f32 %v2684, %v2735
      %v2758 = vmul.f32 %v2687, %v2735
      %v2759 = vmul.f32 %v2692, %v2735
      %v2760 = vmul.f32 %v2695, %v2735
      %v2761 = vmul.f32 %v2700, %v2735
      %v2762 = vmul.f32 %v2703, %v2735
      %v2763 = vmul.f32 %v2708, %v2735
      %v2764 = vmul.f32 %v2711, %v2735
      %v2765 = vmul.f32 %v2716, %v2735
      %v2766 = vmul.f32 %v2719, %v2735
      %v2767 = vmul.f32 %v2724, %v2735
      %v2768 = vmul.f32 %v2727, %v2735
      %v2769 = vld [vmem:[%s3] sm:$0x1]
      %v2771 = vlaneseq
      %v2772 = vshrl.u32 %v2771, 7
      %v2773 = vsub.s32 0, %v2772
      %v2774 = vrot.slane %v2769, %v2773
      %v2776 = vadd.f32 %v2737, %v2774
      %v2777 = vadd.f32 %v2738, %v2774
      %v2778 = vadd.f32 %v2739, %v2774
      %v2779 = vadd.f32 %v2740, %v2774
      %v2780 = vadd.f32 %v2741, %v2774
      %v2781 = vadd.f32 %v2742, %v2774
      %v2782 = vadd.f32 %v2743, %v2774
      %v2783 = vadd.f32 %v2744, %v2774
      %v2784 = vadd.f32 %v2745, %v2774
      %v2785 = vadd.f32 %v2746, %v2774
      %v2786 = vadd.f32 %v2747, %v2774
      %v2787 = vadd.f32 %v2748, %v2774
      %v2788 = vadd.f32 %v2749, %v2774
      %v2789 = vadd.f32 %v2750, %v2774
      %v2790 = vadd.f32 %v2751, %v2774
      %v2791 = vadd.f32 %v2752, %v2774
      %v2792 = vadd.f32 %v2753, %v2774
      %v2793 = vadd.f32 %v2754, %v2774
      %v2794 = vadd.f32 %v2755, %v2774
      %v2795 = vadd.f32 %v2756, %v2774
      %v2796 = vadd.f32 %v2757, %v2774
      %v2797 = vadd.f32 %v2758, %v2774
      %v2798 = vadd.f32 %v2759, %v2774
      %v2799 = vadd.f32 %v2760, %v2774
      %v2800 = vadd.f32 %v2761, %v2774
      %v2801 = vadd.f32 %v2762, %v2774
      %v2802 = vadd.f32 %v2763, %v2774
      %v2803 = vadd.f32 %v2764, %v2774
      %v2804 = vadd.f32 %v2765, %v2774
      %v2805 = vadd.f32 %v2766, %v2774
      %v2806 = vadd.f32 %v2767, %v2774
      %v2807 = vadd.f32 %v2768, %v2774
      %v2808 = vmax.f32 %v2776, 0.0
      %v2809 = vmax.f32 %v2777, 0.0
      %v2810 = vmax.f32 %v2778, 0.0
      %v2811 = vmax.f32 %v2779, 0.0
      %v2812 = vmax.f32 %v2780, 0.0
      %v2813 = vmax.f32 %v2781, 0.0
      %v2814 = vmax.f32 %v2782, 0.0
      %v2815 = vmax.f32 %v2783, 0.0
      %v2816 = vmax.f32 %v2784, 0.0
      %v2817 = vmax.f32 %v2785, 0.0
      %v2818 = vmax.f32 %v2786, 0.0
      %v2819 = vmax.f32 %v2787, 0.0
      %v2820 = vmax.f32 %v2788, 0.0
      %v2821 = vmax.f32 %v2789, 0.0
      %v2822 = vmax.f32 %v2790, 0.0
      %v2823 = vmax.f32 %v2791, 0.0
      %v2824 = vmax.f32 %v2792, 0.0
      %v2825 = vmax.f32 %v2793, 0.0
      %v2826 = vmax.f32 %v2794, 0.0
      %v2827 = vmax.f32 %v2795, 0.0
      %v2828 = vmax.f32 %v2796, 0.0
      %v2829 = vmax.f32 %v2797, 0.0
      %v2830 = vmax.f32 %v2798, 0.0
      %v2831 = vmax.f32 %v2799, 0.0
      %v2832 = vmax.f32 %v2800, 0.0
      %v2833 = vmax.f32 %v2801, 0.0
      %v2834 = vmax.f32 %v2802, 0.0
      %v2835 = vmax.f32 %v2803, 0.0
      %v2836 = vmax.f32 %v2804, 0.0
      %v2837 = vmax.f32 %v2805, 0.0
      %v2838 = vmax.f32 %v2806, 0.0
      %v2839 = vmax.f32 %v2807, 0.0
      %v2840 = vpack.c.bf16 %v2809, %v2808
      %v2841 = vpack.c.bf16 %v2811, %v2810
      %v2842 = vpack.c.bf16 %v2813, %v2812
      %v2843 = vpack.c.bf16 %v2815, %v2814
      %v2844 = vpack.c.bf16 %v2817, %v2816
      %v2845 = vpack.c.bf16 %v2819, %v2818
      %v2846 = vpack.c.bf16 %v2821, %v2820
      %v2847 = vpack.c.bf16 %v2823, %v2822
      %v2848 = vpack.c.bf16 %v2825, %v2824
      %v2849 = vpack.c.bf16 %v2827, %v2826
      %v2850 = vpack.c.bf16 %v2829, %v2828
      %v2851 = vpack.c.bf16 %v2831, %v2830
      %v2852 = vpack.c.bf16 %v2833, %v2832
      %v2853 = vpack.c.bf16 %v2835, %v2834
      %v2854 = vpack.c.bf16 %v2837, %v2836
      %v2855 = vpack.c.bf16 %v2839, %v2838
      %2856 = vst.msk [vmem:[#allocation3] sm:$0xf] %vm328, 0
      %2857 = vst.msk [vmem:[#allocation3 + $0x4] sm:$0xf] %vm328, 0
      %2858 = vst.msk [vmem:[#allocation3 + $0x8] sm:$0x1] %vm331, 0
      %s2859 = scalar_lea.vmem [#allocation3], 204
      %2860 = vst.msk [vmem:[%s2859] sm:$0xf] %vm328, 0
      %2861 = vst.msk [vmem:[%s2859 + $0x4] sm:$0xf] %vm328, 0
      %2862 = vst.msk [vmem:[%s2859 + $0x8] sm:$0x1] %vm331, 0
      %v2864 = vshrl.u32 %v2840, 16
      %v2866 = vrot.slane %v2864, 7
      %v2867 = vshll.u32 %v2840, 16
      %v2869 = vor.u32 %v2866, %v2867
      %v2871 = vshrl.u32 %v2841, 16
      %v2873 = vrot.slane %v2871, 7
      %v2874 = vshll.u32 %v2841, 16
      %v2876 = vor.u32 %v2873, %v2874
      %v2878 = vshrl.u32 %v2842, 16
      %v2880 = vrot.slane %v2878, 7
      %v2881 = vshll.u32 %v2842, 16
      %v2883 = vor.u32 %v2880, %v2881
      %v2885 = vshrl.u32 %v2843, 16
      %v2887 = vrot.slane %v2885, 7
      %v2888 = vshll.u32 %v2843, 16
      %v2890 = vor.u32 %v2887, %v2888
      %v2892 = vshrl.u32 %v2844, 16
      %v2894 = vrot.slane %v2892, 7
      %v2895 = vshll.u32 %v2844, 16
      %v2897 = vor.u32 %v2894, %v2895
      %v2899 = vshrl.u32 %v2845, 16
      %v2901 = vrot.slane %v2899, 7
      %v2902 = vshll.u32 %v2845, 16
      %v2904 = vor.u32 %v2901, %v2902
      %v2906 = vshrl.u32 %v2846, 16
      %v2908 = vrot.slane %v2906, 7
      %v2909 = vshll.u32 %v2846, 16
      %v2911 = vor.u32 %v2908, %v2909
      %v2913 = vshrl.u32 %v2847, 16
      %v2915 = vrot.slane %v2913, 7
      %v2916 = vshll.u32 %v2847, 16
      %v2918 = vor.u32 %v2915, %v2916
      %v2920 = vshrl.u32 %v2848, 16
      %v2922 = vrot.slane %v2920, 7
      %v2923 = vshll.u32 %v2848, 16
      %v2925 = vor.u32 %v2922, %v2923
      %v2927 = vshrl.u32 %v2849, 16
      %v2929 = vrot.slane %v2927, 7
      %v2930 = vshll.u32 %v2849, 16
      %v2932 = vor.u32 %v2929, %v2930
      %v2934 = vshrl.u32 %v2850, 16
      %v2936 = vrot.slane %v2934, 7
      %v2937 = vshll.u32 %v2850, 16
      %v2939 = vor.u32 %v2936, %v2937
      %v2941 = vshrl.u32 %v2851, 16
      %v2943 = vrot.slane %v2941, 7
      %v2944 = vshll.u32 %v2851, 16
      %v2946 = vor.u32 %v2943, %v2944
      %v2948 = vshrl.u32 %v2852, 16
      %v2950 = vrot.slane %v2948, 7
      %v2951 = vshll.u32 %v2852, 16
      %v2953 = vor.u32 %v2950, %v2951
      %v2955 = vshrl.u32 %v2853, 16
      %v2957 = vrot.slane %v2955, 7
      %v2958 = vshll.u32 %v2853, 16
      %v2960 = vor.u32 %v2957, %v2958
      %v2962 = vshrl.u32 %v2854, 16
      %v2964 = vrot.slane %v2962, 7
      %v2965 = vshll.u32 %v2854, 16
      %v2967 = vor.u32 %v2964, %v2965
      %v2969 = vshrl.u32 %v2855, 16
      %v2971 = vrot.slane %v2969, 7
      %v2972 = vshll.u32 %v2855, 16
      %v2974 = vor.u32 %v2971, %v2972
      %v3007 = vsel %vm483, 0, %v2869
      %v3008 = vsel %vm483, 0, %v2876
      %v3009 = vsel %vm483, 0, %v2883
      %v3010 = vsel %vm483, 0, %v2890
      %v3011 = vsel %vm483, 0, %v2897
      %v3012 = vsel %vm483, 0, %v2904
      %v3013 = vsel %vm483, 0, %v2911
      %v3014 = vsel %vm483, 0, %v2918
      %v3015 = vsel %vm483, 0, %v2925
      %v3016 = vsel %vm483, 0, %v2932
      %v3017 = vsel %vm483, 0, %v2939
      %v3018 = vsel %vm483, 0, %v2946
      %v3019 = vsel %vm483, 0, %v2953
      %v3020 = vsel %vm483, 0, %v2960
      %v3021 = vsel %vm483, 0, %v2967
      %v3022 = vsel %vm483, 0, %v2974
      %v3023 = vsel %vm483, %v2866, 0
      %v3024 = vsel %vm483, %v2873, 0
      %v3025 = vsel %vm483, %v2880, 0
      %v3026 = vsel %vm483, %v2887, 0
      %v3027 = vsel %vm483, %v2894, 0
      %v3028 = vsel %vm483, %v2901, 0
      %v3029 = vsel %vm483, %v2908, 0
      %v3030 = vsel %vm483, %v2915, 0
      %v3031 = vsel %vm483, %v2922, 0
      %v3032 = vsel %vm483, %v2929, 0
      %v3033 = vsel %vm483, %v2936, 0
      %v3034 = vsel %vm483, %v2943, 0
      %v3035 = vsel %vm483, %v2950, 0
      %v3036 = vsel %vm483, %v2957, 0
      %v3037 = vsel %vm483, %v2964, 0
      %v3038 = vsel %vm483, %v2971, 0
      %v3071 = vunpack.c.l.b16 %v3007
      %v3072 = vunpack.c.h.b16 %v3007
      %v3073 = vunpack.c.l.b16 %v3023
      %v3074 = vunpack.c.l.b16 %v3008
      %v3075 = vunpack.c.h.b16 %v3008
      %v3076 = vunpack.c.l.b16 %v3024
      %v3077 = vunpack.c.l.b16 %v3009
      %v3078 = vunpack.c.h.b16 %v3009
      %v3079 = vunpack.c.l.b16 %v3025
      %v3080 = vunpack.c.l.b16 %v3010
      %v3081 = vunpack.c.h.b16 %v3010
      %v3082 = vunpack.c.l.b16 %v3026
      %v3083 = vunpack.c.l.b16 %v3011
      %v3084 = vunpack.c.h.b16 %v3011
      %v3085 = vunpack.c.l.b16 %v3027
      %v3086 = vunpack.c.l.b16 %v3012
      %v3087 = vunpack.c.h.b16 %v3012
      %v3088 = vunpack.c.l.b16 %v3028
      %v3089 = vunpack.c.l.b16 %v3013
      %v3090 = vunpack.c.h.b16 %v3013
      %v3091 = vunpack.c.l.b16 %v3029
      %v3092 = vunpack.c.l.b16 %v3014
      %v3093 = vunpack.c.h.b16 %v3014
      %v3094 = vunpack.c.l.b16 %v3030
      %v3095 = vunpack.c.l.b16 %v3015
      %v3096 = vunpack.c.h.b16 %v3015
      %v3097 = vunpack.c.l.b16 %v3031
      %v3098 = vunpack.c.l.b16 %v3016
      %v3099 = vunpack.c.h.b16 %v3016
      %v3100 = vunpack.c.l.b16 %v3032
      %v3101 = vunpack.c.l.b16 %v3017
      %v3102 = vunpack.c.h.b16 %v3017
      %v3103 = vunpack.c.l.b16 %v3033
      %v3104 = vunpack.c.l.b16 %v3018
      %v3105 = vunpack.c.h.b16 %v3018
      %v3106 = vunpack.c.l.b16 %v3034
      %v3107 = vunpack.c.l.b16 %v3019
      %v3108 = vunpack.c.h.b16 %v3019
      %v3109 = vunpack.c.l.b16 %v3035
      %v3110 = vunpack.c.l.b16 %v3020
      %v3111 = vunpack.c.h.b16 %v3020
      %v3112 = vunpack.c.l.b16 %v3036
      %v3113 = vunpack.c.l.b16 %v3021
      %v3114 = vunpack.c.h.b16 %v3021
      %v3115 = vunpack.c.l.b16 %v3037
      %v3116 = vunpack.c.l.b16 %v3022
      %v3117 = vunpack.c.h.b16 %v3022
      %v3118 = vunpack.c.l.b16 %v3038
      %v3119 = vpack.c.b16 %v3071, %v3071
      %v3120 = vpack.c.b16 %v3072, %v3072
      %v3121 = vpack.c.b16 %v3073, %v3073
      %v3122 = vpack.c.b16 %v3074, %v3074
      %v3123 = vpack.c.b16 %v3075, %v3075
      %v3124 = vpack.c.b16 %v3076, %v3076
      %v3125 = vpack.c.b16 %v3077, %v3077
      %v3126 = vpack.c.b16 %v3078, %v3078
      %v3127 = vpack.c.b16 %v3079, %v3079
      %v3128 = vpack.c.b16 %v3080, %v3080
      %v3129 = vpack.c.b16 %v3081, %v3081
      %v3130 = vpack.c.b16 %v3082, %v3082
      %v3131 = vpack.c.b16 %v3083, %v3083
      %v3132 = vpack.c.b16 %v3084, %v3084
      %v3133 = vpack.c.b16 %v3085, %v3085
      %v3134 = vpack.c.b16 %v3086, %v3086
      %v3135 = vpack.c.b16 %v3087, %v3087
      %v3136 = vpack.c.b16 %v3088, %v3088
      %v3137 = vpack.c.b16 %v3089, %v3089
      %v3138 = vpack.c.b16 %v3090, %v3090
      %v3139 = vpack.c.b16 %v3091, %v3091
      %v3140 = vpack.c.b16 %v3092, %v3092
      %v3141 = vpack.c.b16 %v3093, %v3093
      %v3142 = vpack.c.b16 %v3094, %v3094
      %v3143 = vpack.c.b16 %v3095, %v3095
      %v3144 = vpack.c.b16 %v3096, %v3096
      %v3145 = vpack.c.b16 %v3097, %v3097
      %v3146 = vpack.c.b16 %v3098, %v3098
      %v3147 = vpack.c.b16 %v3099, %v3099
      %v3148 = vpack.c.b16 %v3100, %v3100
      %v3149 = vpack.c.b16 %v3101, %v3101
      %v3150 = vpack.c.b16 %v3102, %v3102
      %v3151 = vpack.c.b16 %v3103, %v3103
      %v3152 = vpack.c.b16 %v3104, %v3104
      %v3153 = vpack.c.b16 %v3105, %v3105
      %v3154 = vpack.c.b16 %v3106, %v3106
      %v3155 = vpack.c.b16 %v3107, %v3107
      %v3156 = vpack.c.b16 %v3108, %v3108
      %v3157 = vpack.c.b16 %v3109, %v3109
      %v3158 = vpack.c.b16 %v3110, %v3110
      %v3159 = vpack.c.b16 %v3111, %v3111
      %v3160 = vpack.c.b16 %v3112, %v3112
      %v3161 = vpack.c.b16 %v3113, %v3113
      %v3162 = vpack.c.b16 %v3114, %v3114
      %v3163 = vpack.c.b16 %v3115, %v3115
      %v3164 = vpack.c.b16 %v3116, %v3116
      %v3165 = vpack.c.b16 %v3117, %v3117
      %v3166 = vpack.c.b16 %v3118, %v3118
      %s3215 = scalar_lea.vmem [#allocation3], 12
      %3216 = vst.msk [vmem:[%s3215] sm:$0xf] %vm328, %v3119
      %3217 = vst.msk [vmem:[%s3215 + $0x4] sm:$0xf] %vm328, %v3120
      %3218 = vst.msk [vmem:[%s3215 + $0x8] sm:$0x1] %vm331, %v3121
      %3219 = vst.msk [vmem:[%s3215 + $0xc] sm:$0xf] %vm328, %v3122
      %3220 = vst.msk [vmem:[%s3215 + $0x10] sm:$0xf] %vm328, %v3123
      %3221 = vst.msk [vmem:[%s3215 + $0x14] sm:$0x1] %vm331, %v3124
      %3222 = vst.msk [vmem:[%s3215 + $0x18] sm:$0xf] %vm328, %v3125
      %3223 = vst.msk [vmem:[%s3215 + $0x1c] sm:$0xf] %vm328, %v3126
      %3224 = vst.msk [vmem:[%s3215 + $0x20] sm:$0x1] %vm331, %v3127
      %3225 = vst.msk [vmem:[%s3215 + $0x24] sm:$0xf] %vm328, %v3128
      %3226 = vst.msk [vmem:[%s3215 + $0x28] sm:$0xf] %vm328, %v3129
      %3227 = vst.msk [vmem:[%s3215 + $0x2c] sm:$0x1] %vm331, %v3130
      %3228 = vst.msk [vmem:[%s3215 + $0x30] sm:$0xf] %vm328, %v3131
      %3229 = vst.msk [vmem:[%s3215 + $0x34] sm:$0xf] %vm328, %v3132
      %3230 = vst.msk [vmem:[%s3215 + $0x38] sm:$0x1] %vm331, %v3133
      %3231 = vst.msk [vmem:[%s3215 + $0x3c] sm:$0xf] %vm328, %v3134
      %3232 = vst.msk [vmem:[%s3215 + $0x40] sm:$0xf] %vm328, %v3135
      %3233 = vst.msk [vmem:[%s3215 + $0x44] sm:$0x1] %vm331, %v3136
      %3234 = vst.msk [vmem:[%s3215 + $0x48] sm:$0xf] %vm328, %v3137
      %3235 = vst.msk [vmem:[%s3215 + $0x4c] sm:$0xf] %vm328, %v3138
      %3236 = vst.msk [vmem:[%s3215 + $0x50] sm:$0x1] %vm331, %v3139
      %3237 = vst.msk [vmem:[%s3215 + $0x54] sm:$0xf] %vm328, %v3140
      %3238 = vst.msk [vmem:[%s3215 + $0x58] sm:$0xf] %vm328, %v3141
      %3239 = vst.msk [vmem:[%s3215 + $0x5c] sm:$0x1] %vm331, %v3142
      %3240 = vst.msk [vmem:[%s3215 + $0x60] sm:$0xf] %vm328, %v3143
      %3241 = vst.msk [vmem:[%s3215 + $0x64] sm:$0xf] %vm328, %v3144
      %3242 = vst.msk [vmem:[%s3215 + $0x68] sm:$0x1] %vm331, %v3145
      %3243 = vst.msk [vmem:[%s3215 + $0x6c] sm:$0xf] %vm328, %v3146
      %3244 = vst.msk [vmem:[%s3215 + $0x70] sm:$0xf] %vm328, %v3147
      %3245 = vst.msk [vmem:[%s3215 + $0x74] sm:$0x1] %vm331, %v3148
      %3246 = vst.msk [vmem:[%s3215 + $0x78] sm:$0xf] %vm328, %v3149
      %3247 = vst.msk [vmem:[%s3215 + $0x7c] sm:$0xf] %vm328, %v3150
      %3248 = vst.msk [vmem:[%s3215 + $0x80] sm:$0x1] %vm331, %v3151
      %3249 = vst.msk [vmem:[%s3215 + $0x84] sm:$0xf] %vm328, %v3152
      %3250 = vst.msk [vmem:[%s3215 + $0x88] sm:$0xf] %vm328, %v3153
      %3251 = vst.msk [vmem:[%s3215 + $0x8c] sm:$0x1] %vm331, %v3154
      %3252 = vst.msk [vmem:[%s3215 + $0x90] sm:$0xf] %vm328, %v3155
      %3253 = vst.msk [vmem:[%s3215 + $0x94] sm:$0xf] %vm328, %v3156
      %3254 = vst.msk [vmem:[%s3215 + $0x98] sm:$0x1] %vm331, %v3157
      %3255 = vst.msk [vmem:[%s3215 + $0x9c] sm:$0xf] %vm328, %v3158
      %3256 = vst.msk [vmem:[%s3215 + $0xa0] sm:$0xf] %vm328, %v3159
      %3257 = vst.msk [vmem:[%s3215 + $0xa4] sm:$0x1] %vm331, %v3160
      %3258 = vst.msk [vmem:[%s3215 + $0xa8] sm:$0xf] %vm328, %v3161
      %3259 = vst.msk [vmem:[%s3215 + $0xac] sm:$0xf] %vm328, %v3162
      %3260 = vst.msk [vmem:[%s3215 + $0xb0] sm:$0x1] %vm331, %v3163
      %3261 = vst.msk [vmem:[%s3215 + $0xb4] sm:$0xf] %vm328, %v3164
      %3262 = vst.msk [vmem:[%s3215 + $0xb8] sm:$0xf] %vm328, %v3165
      %3263 = vst.msk [vmem:[%s3215 + $0xbc] sm:$0x1] %vm331, %v3166
      %v3264 = vld [vmem:[#allocation3] sm:$0xf]
      %v3265 = vld [vmem:[#allocation3 + $0x4] sm:$0xf]
      %v3266 = vld [vmem:[#allocation3 + $0x8] sm:$0x1]
      %v3267 = vld [vmem:[#allocation3 + $0xc] sm:$0xf]
      %v3268 = vld [vmem:[#allocation3 + $0x10] sm:$0xf]
      %v3269 = vld [vmem:[#allocation3 + $0x14] sm:$0x1]
      %v3270 = vld [vmem:[#allocation3 + $0x18] sm:$0xf]
      %v3271 = vld [vmem:[#allocation3 + $0x1c] sm:$0xf]
      %v3272 = vld [vmem:[#allocation3 + $0x20] sm:$0x1]
      %v3273 = vld [vmem:[#allocation3 + $0x24] sm:$0xf]
      %v3274 = vld [vmem:[#allocation3 + $0x28] sm:$0xf]
      %v3275 = vld [vmem:[#allocation3 + $0x2c] sm:$0x1]
      %v3276 = vld [vmem:[#allocation3 + $0x30] sm:$0xf]
      %v3277 = vld [vmem:[#allocation3 + $0x34] sm:$0xf]
      %v3278 = vld [vmem:[#allocation3 + $0x38] sm:$0x1]
      %v3279 = vld [vmem:[#allocation3 + $0x3c] sm:$0xf]
      %v3280 = vld [vmem:[#allocation3 + $0x40] sm:$0xf]
      %v3281 = vld [vmem:[#allocation3 + $0x44] sm:$0x1]
      %v3282 = vld [vmem:[#allocation3 + $0x48] sm:$0xf]
      %v3283 = vld [vmem:[#allocation3 + $0x4c] sm:$0xf]
      %v3284 = vld [vmem:[#allocation3 + $0x50] sm:$0x1]
      %v3285 = vld [vmem:[#allocation3 + $0x54] sm:$0xf]
      %v3286 = vld [vmem:[#allocation3 + $0x58] sm:$0xf]
      %v3287 = vld [vmem:[#allocation3 + $0x5c] sm:$0x1]
      %v3288 = vld [vmem:[#allocation3 + $0x60] sm:$0xf]
      %v3289 = vld [vmem:[#allocation3 + $0x64] sm:$0xf]
      %v3290 = vld [vmem:[#allocation3 + $0x68] sm:$0x1]
      %v3291 = vld [vmem:[#allocation3 + $0x6c] sm:$0xf]
      %v3292 = vld [vmem:[#allocation3 + $0x70] sm:$0xf]
      %v3293 = vld [vmem:[#allocation3 + $0x74] sm:$0x1]
      %v3294 = vld [vmem:[#allocation3 + $0x78] sm:$0xf]
      %v3295 = vld [vmem:[#allocation3 + $0x7c] sm:$0xf]
      %v3296 = vld [vmem:[#allocation3 + $0x80] sm:$0x1]
      %v3297 = vld [vmem:[#allocation3 + $0x84] sm:$0xf]
      %v3298 = vld [vmem:[#allocation3 + $0x88] sm:$0xf]
      %v3299 = vld [vmem:[#allocation3 + $0x8c] sm:$0x1]
      %v3300 = vld [vmem:[#allocation3 + $0x90] sm:$0xf]
      %v3301 = vld [vmem:[#allocation3 + $0x94] sm:$0xf]
      %v3302 = vld [vmem:[#allocation3 + $0x98] sm:$0x1]
      %v3303 = vld [vmem:[#allocation3 + $0x9c] sm:$0xf]
      %v3304 = vld [vmem:[#allocation3 + $0xa0] sm:$0xf]
      %v3305 = vld [vmem:[#allocation3 + $0xa4] sm:$0x1]
      %v3306 = vld [vmem:[#allocation3 + $0xa8] sm:$0xf]
      %v3307 = vld [vmem:[#allocation3 + $0xac] sm:$0xf]
      %v3308 = vld [vmem:[#allocation3 + $0xb0] sm:$0x1]
      %v3309 = vld [vmem:[#allocation3 + $0xb4] sm:$0xf]
      %v3310 = vld [vmem:[#allocation3 + $0xb8] sm:$0xf]
      %v3311 = vld [vmem:[#allocation3 + $0xbc] sm:$0x1]
      %v3312 = vld [vmem:[%s3215] sm:$0xf]
      %v3313 = vld [vmem:[%s3215 + $0x4] sm:$0xf]
      %v3314 = vld [vmem:[%s3215 + $0x8] sm:$0x1]
      %v3315 = vld [vmem:[%s3215 + $0xc] sm:$0xf]
      %v3316 = vld [vmem:[%s3215 + $0x10] sm:$0xf]
      %v3317 = vld [vmem:[%s3215 + $0x14] sm:$0x1]
      %v3318 = vld [vmem:[%s3215 + $0x18] sm:$0xf]
      %v3319 = vld [vmem:[%s3215 + $0x1c] sm:$0xf]
      %v3320 = vld [vmem:[%s3215 + $0x20] sm:$0x1]
      %v3321 = vld [vmem:[%s3215 + $0x24] sm:$0xf]
      %v3322 = vld [vmem:[%s3215 + $0x28] sm:$0xf]
      %v3323 = vld [vmem:[%s3215 + $0x2c] sm:$0x1]
      %v3324 = vld [vmem:[%s3215 + $0x30] sm:$0xf]
      %v3325 = vld [vmem:[%s3215 + $0x34] sm:$0xf]
      %v3326 = vld [vmem:[%s3215 + $0x38] sm:$0x1]
      %v3327 = vld [vmem:[%s3215 + $0x3c] sm:$0xf]
      %v3328 = vld [vmem:[%s3215 + $0x40] sm:$0xf]
      %v3329 = vld [vmem:[%s3215 + $0x44] sm:$0x1]
      %v3330 = vld [vmem:[%s3215 + $0x48] sm:$0xf]
      %v3331 = vld [vmem:[%s3215 + $0x4c] sm:$0xf]
      %v3332 = vld [vmem:[%s3215 + $0x50] sm:$0x1]
      %v3333 = vld [vmem:[%s3215 + $0x54] sm:$0xf]
      %v3334 = vld [vmem:[%s3215 + $0x58] sm:$0xf]
      %v3335 = vld [vmem:[%s3215 + $0x5c] sm:$0x1]
      %v3336 = vld [vmem:[%s3215 + $0x60] sm:$0xf]
      %v3337 = vld [vmem:[%s3215 + $0x64] sm:$0xf]
      %v3338 = vld [vmem:[%s3215 + $0x68] sm:$0x1]
      %v3339 = vld [vmem:[%s3215 + $0x6c] sm:$0xf]
      %v3340 = vld [vmem:[%s3215 + $0x70] sm:$0xf]
      %v3341 = vld [vmem:[%s3215 + $0x74] sm:$0x1]
      %v3342 = vld [vmem:[%s3215 + $0x78] sm:$0xf]
      %v3343 = vld [vmem:[%s3215 + $0x7c] sm:$0xf]
      %v3344 = vld [vmem:[%s3215 + $0x80] sm:$0x1]
      %v3345 = vld [vmem:[%s3215 + $0x84] sm:$0xf]
      %v3346 = vld [vmem:[%s3215 + $0x88] sm:$0xf]
      %v3347 = vld [vmem:[%s3215 + $0x8c] sm:$0x1]
      %v3348 = vld [vmem:[%s3215 + $0x90] sm:$0xf]
      %v3349 = vld [vmem:[%s3215 + $0x94] sm:$0xf]
      %v3350 = vld [vmem:[%s3215 + $0x98] sm:$0x1]
      %v3351 = vld [vmem:[%s3215 + $0x9c] sm:$0xf]
      %v3352 = vld [vmem:[%s3215 + $0xa0] sm:$0xf]
      %v3353 = vld [vmem:[%s3215 + $0xa4] sm:$0x1]
      %v3354 = vld [vmem:[%s3215 + $0xa8] sm:$0xf]
      %v3355 = vld [vmem:[%s3215 + $0xac] sm:$0xf]
      %v3356 = vld [vmem:[%s3215 + $0xb0] sm:$0x1]
      %v3357 = vld [vmem:[%s3215 + $0xb4] sm:$0xf]
      %v3358 = vld [vmem:[%s3215 + $0xb8] sm:$0xf]
      %v3359 = vld [vmem:[%s3215 + $0xbc] sm:$0x1]
      %s3360 = scalar_lea.vmem [#allocation3], 24
      %v3361 = vld [vmem:[%s3360] sm:$0xf]
      %v3362 = vld [vmem:[%s3360 + $0x4] sm:$0xf]
      %v3363 = vld [vmem:[%s3360 + $0x8] sm:$0x1]
      %v3364 = vld [vmem:[%s3360 + $0xc] sm:$0xf]
      %v3365 = vld [vmem:[%s3360 + $0x10] sm:$0xf]
      %v3366 = vld [vmem:[%s3360 + $0x14] sm:$0x1]
      %v3367 = vld [vmem:[%s3360 + $0x18] sm:$0xf]
      %v3368 = vld [vmem:[%s3360 + $0x1c] sm:$0xf]
      %v3369 = vld [vmem:[%s3360 + $0x20] sm:$0x1]
      %v3370 = vld [vmem:[%s3360 + $0x24] sm:$0xf]
      %v3371 = vld [vmem:[%s3360 + $0x28] sm:$0xf]
      %v3372 = vld [vmem:[%s3360 + $0x2c] sm:$0x1]
      %v3373 = vld [vmem:[%s3360 + $0x30] sm:$0xf]
      %v3374 = vld [vmem:[%s3360 + $0x34] sm:$0xf]
      %v3375 = vld [vmem:[%s3360 + $0x38] sm:$0x1]
      %v3376 = vld [vmem:[%s3360 + $0x3c] sm:$0xf]
      %v3377 = vld [vmem:[%s3360 + $0x40] sm:$0xf]
      %v3378 = vld [vmem:[%s3360 + $0x44] sm:$0x1]
      %v3379 = vld [vmem:[%s3360 + $0x48] sm:$0xf]
      %v3380 = vld [vmem:[%s3360 + $0x4c] sm:$0xf]
      %v3381 = vld [vmem:[%s3360 + $0x50] sm:$0x1]
      %v3382 = vld [vmem:[%s3360 + $0x54] sm:$0xf]
      %v3383 = vld [vmem:[%s3360 + $0x58] sm:$0xf]
      %v3384 = vld [vmem:[%s3360 + $0x5c] sm:$0x1]
      %v3385 = vld [vmem:[%s3360 + $0x60] sm:$0xf]
      %v3386 = vld [vmem:[%s3360 + $0x64] sm:$0xf]
      %v3387 = vld [vmem:[%s3360 + $0x68] sm:$0x1]
      %v3388 = vld [vmem:[%s3360 + $0x6c] sm:$0xf]
      %v3389 = vld [vmem:[%s3360 + $0x70] sm:$0xf]
      %v3390 = vld [vmem:[%s3360 + $0x74] sm:$0x1]
      %v3391 = vld [vmem:[%s3360 + $0x78] sm:$0xf]
      %v3392 = vld [vmem:[%s3360 + $0x7c] sm:$0xf]
      %v3393 = vld [vmem:[%s3360 + $0x80] sm:$0x1]
      %v3394 = vld [vmem:[%s3360 + $0x84] sm:$0xf]
      %v3395 = vld [vmem:[%s3360 + $0x88] sm:$0xf]
      %v3396 = vld [vmem:[%s3360 + $0x8c] sm:$0x1]
      %v3397 = vld [vmem:[%s3360 + $0x90] sm:$0xf]
      %v3398 = vld [vmem:[%s3360 + $0x94] sm:$0xf]
      %v3399 = vld [vmem:[%s3360 + $0x98] sm:$0x1]
      %v3400 = vld [vmem:[%s3360 + $0x9c] sm:$0xf]
      %v3401 = vld [vmem:[%s3360 + $0xa0] sm:$0xf]
      %v3402 = vld [vmem:[%s3360 + $0xa4] sm:$0x1]
      %v3403 = vld [vmem:[%s3360 + $0xa8] sm:$0xf]
      %v3404 = vld [vmem:[%s3360 + $0xac] sm:$0xf]
      %v3405 = vld [vmem:[%s3360 + $0xb0] sm:$0x1]
      %v3406 = vld [vmem:[%s3360 + $0xb4] sm:$0xf]
      %v3407 = vld [vmem:[%s3360 + $0xb8] sm:$0xf]
      %v3408 = vld [vmem:[%s3360 + $0xbc] sm:$0x1]
      %v3441 = vunpack.c.l.b16 %v3264
      %v3442 = vunpack.c.l.b16 %v3265
      %v3443 = vunpack.c.l.b16 %v3267
      %v3444 = vunpack.c.l.b16 %v3268
      %v3445 = vunpack.c.l.b16 %v3270
      %v3446 = vunpack.c.l.b16 %v3271
      %v3447 = vunpack.c.l.b16 %v3273
      %v3448 = vunpack.c.l.b16 %v3274
      %v3449 = vunpack.c.l.b16 %v3276
      %v3450 = vunpack.c.l.b16 %v3277
      %v3451 = vunpack.c.l.b16 %v3279
      %v3452 = vunpack.c.l.b16 %v3280
      %v3453 = vunpack.c.l.b16 %v3282
      %v3454 = vunpack.c.l.b16 %v3283
      %v3455 = vunpack.c.l.b16 %v3285
      %v3456 = vunpack.c.l.b16 %v3286
      %v3457 = vunpack.c.l.b16 %v3288
      %v3458 = vunpack.c.l.b16 %v3289
      %v3459 = vunpack.c.l.b16 %v3291
      %v3460 = vunpack.c.l.b16 %v3292
      %v3461 = vunpack.c.l.b16 %v3294
      %v3462 = vunpack.c.l.b16 %v3295
      %v3463 = vunpack.c.l.b16 %v3297
      %v3464 = vunpack.c.l.b16 %v3298
      %v3465 = vunpack.c.l.b16 %v3300
      %v3466 = vunpack.c.l.b16 %v3301
      %v3467 = vunpack.c.l.b16 %v3303
      %v3468 = vunpack.c.l.b16 %v3304
      %v3469 = vunpack.c.l.b16 %v3306
      %v3470 = vunpack.c.l.b16 %v3307
      %v3471 = vunpack.c.l.b16 %v3309
      %v3472 = vunpack.c.l.b16 %v3310
      %v3473 = vpack.c.b16 %v3442, %v3441
      %v3474 = vpack.c.b16 %v3444, %v3443
      %v3475 = vpack.c.b16 %v3446, %v3445
      %v3476 = vpack.c.b16 %v3448, %v3447
      %v3477 = vpack.c.b16 %v3450, %v3449
      %v3478 = vpack.c.b16 %v3452, %v3451
      %v3479 = vpack.c.b16 %v3454, %v3453
      %v3480 = vpack.c.b16 %v3456, %v3455
      %v3481 = vpack.c.b16 %v3458, %v3457
      %v3482 = vpack.c.b16 %v3460, %v3459
      %v3483 = vpack.c.b16 %v3462, %v3461
      %v3484 = vpack.c.b16 %v3464, %v3463
      %v3485 = vpack.c.b16 %v3466, %v3465
      %v3486 = vpack.c.b16 %v3468, %v3467
      %v3487 = vpack.c.b16 %v3470, %v3469
      %v3488 = vpack.c.b16 %v3472, %v3471
      %v3505 = vunpack.c.l.b16 %v3266
      %v3506 = vunpack.c.l.b16 %v3269
      %v3507 = vunpack.c.l.b16 %v3272
      %v3508 = vunpack.c.l.b16 %v3275
      %v3509 = vunpack.c.l.b16 %v3278
      %v3510 = vunpack.c.l.b16 %v3281
      %v3511 = vunpack.c.l.b16 %v3284
      %v3512 = vunpack.c.l.b16 %v3287
      %v3513 = vunpack.c.l.b16 %v3290
      %v3514 = vunpack.c.l.b16 %v3293
      %v3515 = vunpack.c.l.b16 %v3296
      %v3516 = vunpack.c.l.b16 %v3299
      %v3517 = vunpack.c.l.b16 %v3302
      %v3518 = vunpack.c.l.b16 %v3305
      %v3519 = vunpack.c.l.b16 %v3308
      %v3520 = vunpack.c.l.b16 %v3311
      %v3521 = vpack.c.b16 %v3505, %v3505
      %v3522 = vpack.c.b16 %v3506, %v3506
      %v3523 = vpack.c.b16 %v3507, %v3507
      %v3524 = vpack.c.b16 %v3508, %v3508
      %v3525 = vpack.c.b16 %v3509, %v3509
      %v3526 = vpack.c.b16 %v3510, %v3510
      %v3527 = vpack.c.b16 %v3511, %v3511
      %v3528 = vpack.c.b16 %v3512, %v3512
      %v3529 = vpack.c.b16 %v3513, %v3513
      %v3530 = vpack.c.b16 %v3514, %v3514
      %v3531 = vpack.c.b16 %v3515, %v3515
      %v3532 = vpack.c.b16 %v3516, %v3516
      %v3533 = vpack.c.b16 %v3517, %v3517
      %v3534 = vpack.c.b16 %v3518, %v3518
      %v3535 = vpack.c.b16 %v3519, %v3519
      %v3536 = vpack.c.b16 %v3520, %v3520
      %v3538 = vshrl.u32 %v3473, 16
      %v3540 = vshll.u32 %v3473, 16
      %v3542 = vrot.slane %v3540, 1
      %v3543 = vor.u32 %v3538, %v3542
      %v3545 = vshll.u32 %v3521, 16
      %v3547 = vrot.slane %v3545, 1
      %v3548 = vsel %vm1014, %v3543, %v3547
      %v3550 = vshrl.u32 %v3474, 16
      %v3552 = vshll.u32 %v3474, 16
      %v3554 = vrot.slane %v3552, 1
      %v3555 = vor.u32 %v3550, %v3554
      %v3557 = vshll.u32 %v3522, 16
      %v3559 = vrot.slane %v3557, 1
      %v3560 = vsel %vm1014, %v3555, %v3559
      %v3562 = vshrl.u32 %v3475, 16
      %v3564 = vshll.u32 %v3475, 16
      %v3566 = vrot.slane %v3564, 1
      %v3567 = vor.u32 %v3562, %v3566
      %v3569 = vshll.u32 %v3523, 16
      %v3571 = vrot.slane %v3569, 1
      %v3572 = vsel %vm1014, %v3567, %v3571
      %v3574 = vshrl.u32 %v3476, 16
      %v3576 = vshll.u32 %v3476, 16
      %v3578 = vrot.slane %v3576, 1
      %v3579 = vor.u32 %v3574, %v3578
      %v3581 = vshll.u32 %v3524, 16
      %v3583 = vrot.slane %v3581, 1
      %v3584 = vsel %vm1014, %v3579, %v3583
      %v3586 = vshrl.u32 %v3477, 16
      %v3588 = vshll.u32 %v3477, 16
      %v3590 = vrot.slane %v3588, 1
      %v3591 = vor.u32 %v3586, %v3590
      %v3593 = vshll.u32 %v3525, 16
      %v3595 = vrot.slane %v3593, 1
      %v3596 = vsel %vm1014, %v3591, %v3595
      %v3598 = vshrl.u32 %v3478, 16
      %v3600 = vshll.u32 %v3478, 16
      %v3602 = vrot.slane %v3600, 1
      %v3603 = vor.u32 %v3598, %v3602
      %v3605 = vshll.u32 %v3526, 16
      %v3607 = vrot.slane %v3605, 1
      %v3608 = vsel %vm1014, %v3603, %v3607
      %v3610 = vshrl.u32 %v3479, 16
      %v3612 = vshll.u32 %v3479, 16
      %v3614 = vrot.slane %v3612, 1
      %v3615 = vor.u32 %v3610, %v3614
      %v3617 = vshll.u32 %v3527, 16
      %v3619 = vrot.slane %v3617, 1
      %v3620 = vsel %vm1014, %v3615, %v3619
      %v3622 = vshrl.u32 %v3480, 16
      %v3624 = vshll.u32 %v3480, 16
      %v3626 = vrot.slane %v3624, 1
      %v3627 = vor.u32 %v3622, %v3626
      %v3629 = vshll.u32 %v3528, 16
      %v3631 = vrot.slane %v3629, 1
      %v3632 = vsel %vm1014, %v3627, %v3631
      %v3634 = vshrl.u32 %v3481, 16
      %v3636 = vshll.u32 %v3481, 16
      %v3638 = vrot.slane %v3636, 1
      %v3639 = vor.u32 %v3634, %v3638
      %v3641 = vshll.u32 %v3529, 16
      %v3643 = vrot.slane %v3641, 1
      %v3644 = vsel %vm1014, %v3639, %v3643
      %v3646 = vshrl.u32 %v3482, 16
      %v3648 = vshll.u32 %v3482, 16
      %v3650 = vrot.slane %v3648, 1
      %v3651 = vor.u32 %v3646, %v3650
      %v3653 = vshll.u32 %v3530, 16
      %v3655 = vrot.slane %v3653, 1
      %v3656 = vsel %vm1014, %v3651, %v3655
      %v3658 = vshrl.u32 %v3483, 16
      %v3660 = vshll.u32 %v3483, 16
      %v3662 = vrot.slane %v3660, 1
      %v3663 = vor.u32 %v3658, %v3662
      %v3665 = vshll.u32 %v3531, 16
      %v3667 = vrot.slane %v3665, 1
      %v3668 = vsel %vm1014, %v3663, %v3667
      %v3670 = vshrl.u32 %v3484, 16
      %v3672 = vshll.u32 %v3484, 16
      %v3674 = vrot.slane %v3672, 1
      %v3675 = vor.u32 %v3670, %v3674
      %v3677 = vshll.u32 %v3532, 16
      %v3679 = vrot.slane %v3677, 1
      %v3680 = vsel %vm1014, %v3675, %v3679
      %v3682 = vshrl.u32 %v3485, 16
      %v3684 = vshll.u32 %v3485, 16
      %v3686 = vrot.slane %v3684, 1
      %v3687 = vor.u32 %v3682, %v3686
      %v3689 = vshll.u32 %v3533, 16
      %v3691 = vrot.slane %v3689, 1
      %v3692 = vsel %vm1014, %v3687, %v3691
      %v3694 = vshrl.u32 %v3486, 16
      %v3696 = vshll.u32 %v3486, 16
      %v3698 = vrot.slane %v3696, 1
      %v3699 = vor.u32 %v3694, %v3698
      %v3701 = vshll.u32 %v3534, 16
      %v3703 = vrot.slane %v3701, 1
      %v3704 = vsel %vm1014, %v3699, %v3703
      %v3706 = vshrl.u32 %v3487, 16
      %v3708 = vshll.u32 %v3487, 16
      %v3710 = vrot.slane %v3708, 1
      %v3711 = vor.u32 %v3706, %v3710
      %v3713 = vshll.u32 %v3535, 16
      %v3715 = vrot.slane %v3713, 1
      %v3716 = vsel %vm1014, %v3711, %v3715
      %v3718 = vshrl.u32 %v3488, 16
      %v3720 = vshll.u32 %v3488, 16
      %v3722 = vrot.slane %v3720, 1
      %v3723 = vor.u32 %v3718, %v3722
      %v3725 = vshll.u32 %v3536, 16
      %v3727 = vrot.slane %v3725, 1
      %v3728 = vsel %vm1014, %v3723, %v3727
      %3729 = vrot.lane.b32.xlu0 %v3548, 4
      %v3730 = vpop.permute.xlu0 %3729
      %3731 = vrot.lane.b32.xlu0 %v3560, 4
      %v3732 = vpop.permute.xlu0 %3731
      %3733 = vrot.lane.b32.xlu0 %v3572, 4
      %v3734 = vpop.permute.xlu0 %3733
      %3735 = vrot.lane.b32.xlu0 %v3584, 4
      %v3736 = vpop.permute.xlu0 %3735
      %3737 = vrot.lane.b32.xlu0 %v3596, 4
      %v3738 = vpop.permute.xlu0 %3737
      %3739 = vrot.lane.b32.xlu0 %v3608, 4
      %v3740 = vpop.permute.xlu0 %3739
      %3741 = vrot.lane.b32.xlu0 %v3620, 4
      %v3742 = vpop.permute.xlu0 %3741
      %3743 = vrot.lane.b32.xlu0 %v3632, 4
      %v3744 = vpop.permute.xlu0 %3743
      %3745 = vrot.lane.b32.xlu0 %v3644, 4
      %v3746 = vpop.permute.xlu0 %3745
      %3747 = vrot.lane.b32.xlu0 %v3656, 4
      %v3748 = vpop.permute.xlu0 %3747
      %3749 = vrot.lane.b32.xlu0 %v3668, 4
      %v3750 = vpop.permute.xlu0 %3749
      %3751 = vrot.lane.b32.xlu0 %v3680, 4
      %v3752 = vpop.permute.xlu0 %3751
      %3753 = vrot.lane.b32.xlu0 %v3692, 4
      %v3754 = vpop.permute.xlu0 %3753
      %3755 = vrot.lane.b32.xlu0 %v3704, 4
      %v3756 = vpop.permute.xlu0 %3755
      %3757 = vrot.lane.b32.xlu0 %v3716, 4
      %v3758 = vpop.permute.xlu0 %3757
      %3759 = vrot.lane.b32.xlu0 %v3728, 4
      %v3760 = vpop.permute.xlu0 %3759
      %v3761 = vrot.slane %v3473, 1
      %v3762 = vrot.slane %v3521, 1
      %v3763 = vsel %vm1239, %v3761, %v3762
      %v3764 = vrot.slane %v3474, 1
      %v3765 = vrot.slane %v3522, 1
      %v3766 = vsel %vm1239, %v3764, %v3765
      %v3767 = vrot.slane %v3475, 1
      %v3768 = vrot.slane %v3523, 1
      %v3769 = vsel %vm1239, %v3767, %v3768
      %v3770 = vrot.slane %v3476, 1
      %v3771 = vrot.slane %v3524, 1
      %v3772 = vsel %vm1239, %v3770, %v3771
      %v3773 = vrot.slane %v3477, 1
      %v3774 = vrot.slane %v3525, 1
      %v3775 = vsel %vm1239, %v3773, %v3774
      %v3776 = vrot.slane %v3478, 1
      %v3777 = vrot.slane %v3526, 1
      %v3778 = vsel %vm1239, %v3776, %v3777
      %v3779 = vrot.slane %v3479, 1
      %v3780 = vrot.slane %v3527, 1
      %v3781 = vsel %vm1239, %v3779, %v3780
      %v3782 = vrot.slane %v3480, 1
      %v3783 = vrot.slane %v3528, 1
      %v3784 = vsel %vm1239, %v3782, %v3783
      %v3785 = vrot.slane %v3481, 1
      %v3786 = vrot.slane %v3529, 1
      %v3787 = vsel %vm1239, %v3785, %v3786
      %v3788 = vrot.slane %v3482, 1
      %v3789 = vrot.slane %v3530, 1
      %v3790 = vsel %vm1239, %v3788, %v3789
      %v3791 = vrot.slane %v3483, 1
      %v3792 = vrot.slane %v3531, 1
      %v3793 = vsel %vm1239, %v3791, %v3792
      %v3794 = vrot.slane %v3484, 1
      %v3795 = vrot.slane %v3532, 1
      %v3796 = vsel %vm1239, %v3794, %v3795
      %v3797 = vrot.slane %v3485, 1
      %v3798 = vrot.slane %v3533, 1
      %v3799 = vsel %vm1239, %v3797, %v3798
      %v3800 = vrot.slane %v3486, 1
      %v3801 = vrot.slane %v3534, 1
      %v3802 = vsel %vm1239, %v3800, %v3801
      %v3803 = vrot.slane %v3487, 1
      %v3804 = vrot.slane %v3535, 1
      %v3805 = vsel %vm1239, %v3803, %v3804
      %v3806 = vrot.slane %v3488, 1
      %v3807 = vrot.slane %v3536, 1
      %v3808 = vsel %vm1239, %v3806, %v3807
      %3809 = vrot.lane.b32.xlu0 %v3763, 8
      %v3810 = vpop.permute.xlu0 %3809
      %3811 = vrot.lane.b32.xlu0 %v3766, 8
      %v3812 = vpop.permute.xlu0 %3811
      %3813 = vrot.lane.b32.xlu0 %v3769, 8
      %v3814 = vpop.permute.xlu0 %3813
      %3815 = vrot.lane.b32.xlu0 %v3772, 8
      %v3816 = vpop.permute.xlu0 %3815
      %3817 = vrot.lane.b32.xlu0 %v3775, 8
      %v3818 = vpop.permute.xlu0 %3817
      %3819 = vrot.lane.b32.xlu0 %v3778, 8
      %v3820 = vpop.permute.xlu0 %3819
      %3821 = vrot.lane.b32.xlu0 %v3781, 8
      %v3822 = vpop.permute.xlu0 %3821
      %3823 = vrot.lane.b32.xlu0 %v3784, 8
      %v3824 = vpop.permute.xlu0 %3823
      %3825 = vrot.lane.b32.xlu0 %v3787, 8
      %v3826 = vpop.permute.xlu0 %3825
      %3827 = vrot.lane.b32.xlu0 %v3790, 8
      %v3828 = vpop.permute.xlu0 %3827
      %3829 = vrot.lane.b32.xlu0 %v3793, 8
      %v3830 = vpop.permute.xlu0 %3829
      %3831 = vrot.lane.b32.xlu0 %v3796, 8
      %v3832 = vpop.permute.xlu0 %3831
      %3833 = vrot.lane.b32.xlu0 %v3799, 8
      %v3834 = vpop.permute.xlu0 %3833
      %3835 = vrot.lane.b32.xlu0 %v3802, 8
      %v3836 = vpop.permute.xlu0 %3835
      %3837 = vrot.lane.b32.xlu0 %v3805, 8
      %v3838 = vpop.permute.xlu0 %3837
      %3839 = vrot.lane.b32.xlu0 %v3808, 8
      %v3840 = vpop.permute.xlu0 %3839
      %v3873 = vunpack.c.l.b16 %v3312
      %v3874 = vunpack.c.l.b16 %v3313
      %v3875 = vunpack.c.l.b16 %v3315
      %v3876 = vunpack.c.l.b16 %v3316
      %v3877 = vunpack.c.l.b16 %v3318
      %v3878 = vunpack.c.l.b16 %v3319
      %v3879 = vunpack.c.l.b16 %v3321
      %v3880 = vunpack.c.l.b16 %v3322
      %v3881 = vunpack.c.l.b16 %v3324
      %v3882 = vunpack.c.l.b16 %v3325
      %v3883 = vunpack.c.l.b16 %v3327
      %v3884 = vunpack.c.l.b16 %v3328
      %v3885 = vunpack.c.l.b16 %v3330
      %v3886 = vunpack.c.l.b16 %v3331
      %v3887 = vunpack.c.l.b16 %v3333
      %v3888 = vunpack.c.l.b16 %v3334
      %v3889 = vunpack.c.l.b16 %v3336
      %v3890 = vunpack.c.l.b16 %v3337
      %v3891 = vunpack.c.l.b16 %v3339
      %v3892 = vunpack.c.l.b16 %v3340
      %v3893 = vunpack.c.l.b16 %v3342
      %v3894 = vunpack.c.l.b16 %v3343
      %v3895 = vunpack.c.l.b16 %v3345
      %v3896 = vunpack.c.l.b16 %v3346
      %v3897 = vunpack.c.l.b16 %v3348
      %v3898 = vunpack.c.l.b16 %v3349
      %v3899 = vunpack.c.l.b16 %v3351
      %v3900 = vunpack.c.l.b16 %v3352
      %v3901 = vunpack.c.l.b16 %v3354
      %v3902 = vunpack.c.l.b16 %v3355
      %v3903 = vunpack.c.l.b16 %v3357
      %v3904 = vunpack.c.l.b16 %v3358
      %v3905 = vpack.c.b16 %v3874, %v3873
      %v3906 = vpack.c.b16 %v3876, %v3875
      %v3907 = vpack.c.b16 %v3878, %v3877
      %v3908 = vpack.c.b16 %v3880, %v3879
      %v3909 = vpack.c.b16 %v3882, %v3881
      %v3910 = vpack.c.b16 %v3884, %v3883
      %v3911 = vpack.c.b16 %v3886, %v3885
      %v3912 = vpack.c.b16 %v3888, %v3887
      %v3913 = vpack.c.b16 %v3890, %v3889
      %v3914 = vpack.c.b16 %v3892, %v3891
      %v3915 = vpack.c.b16 %v3894, %v3893
      %v3916 = vpack.c.b16 %v3896, %v3895
      %v3917 = vpack.c.b16 %v3898, %v3897
      %v3918 = vpack.c.b16 %v3900, %v3899
      %v3919 = vpack.c.b16 %v3902, %v3901
      %v3920 = vpack.c.b16 %v3904, %v3903
      %3921 = vrot.lane.b32.xlu0 %v3905, 12
      %v3922 = vpop.permute.xlu0 %3921
      %3923 = vrot.lane.b32.xlu0 %v3906, 12
      %v3924 = vpop.permute.xlu0 %3923
      %3925 = vrot.lane.b32.xlu0 %v3907, 12
      %v3926 = vpop.permute.xlu0 %3925
      %3927 = vrot.lane.b32.xlu0 %v3908, 12
      %v3928 = vpop.permute.xlu0 %3927
      %3929 = vrot.lane.b32.xlu0 %v3909, 12
      %v3930 = vpop.permute.xlu0 %3929
      %3931 = vrot.lane.b32.xlu0 %v3910, 12
      %v3932 = vpop.permute.xlu0 %3931
      %3933 = vrot.lane.b32.xlu0 %v3911, 12
      %v3934 = vpop.permute.xlu0 %3933
      %3935 = vrot.lane.b32.xlu0 %v3912, 12
      %v3936 = vpop.permute.xlu0 %3935
      %3937 = vrot.lane.b32.xlu0 %v3913, 12
      %v3938 = vpop.permute.xlu0 %3937
      %3939 = vrot.lane.b32.xlu0 %v3914, 12
      %v3940 = vpop.permute.xlu0 %3939
      %3941 = vrot.lane.b32.xlu0 %v3915, 12
      %v3942 = vpop.permute.xlu0 %3941
      %3943 = vrot.lane.b32.xlu0 %v3916, 12
      %v3944 = vpop.permute.xlu0 %3943
      %3945 = vrot.lane.b32.xlu0 %v3917, 12
      %v3946 = vpop.permute.xlu0 %3945
      %3947 = vrot.lane.b32.xlu0 %v3918, 12
      %v3948 = vpop.permute.xlu0 %3947
      %3949 = vrot.lane.b32.xlu0 %v3919, 12
      %v3950 = vpop.permute.xlu0 %3949
      %3951 = vrot.lane.b32.xlu0 %v3920, 12
      %v3952 = vpop.permute.xlu0 %3951
      %v3969 = vunpack.c.l.b16 %v3314
      %v3970 = vunpack.c.l.b16 %v3317
      %v3971 = vunpack.c.l.b16 %v3320
      %v3972 = vunpack.c.l.b16 %v3323
      %v3973 = vunpack.c.l.b16 %v3326
      %v3974 = vunpack.c.l.b16 %v3329
      %v3975 = vunpack.c.l.b16 %v3332
      %v3976 = vunpack.c.l.b16 %v3335
      %v3977 = vunpack.c.l.b16 %v3338
      %v3978 = vunpack.c.l.b16 %v3341
      %v3979 = vunpack.c.l.b16 %v3344
      %v3980 = vunpack.c.l.b16 %v3347
      %v3981 = vunpack.c.l.b16 %v3350
      %v3982 = vunpack.c.l.b16 %v3353
      %v3983 = vunpack.c.l.b16 %v3356
      %v3984 = vunpack.c.l.b16 %v3359
      %v3985 = vpack.c.b16 %v3969, %v3969
      %v3986 = vpack.c.b16 %v3970, %v3970
      %v3987 = vpack.c.b16 %v3971, %v3971
      %v3988 = vpack.c.b16 %v3972, %v3972
      %v3989 = vpack.c.b16 %v3973, %v3973
      %v3990 = vpack.c.b16 %v3974, %v3974
      %v3991 = vpack.c.b16 %v3975, %v3975
      %v3992 = vpack.c.b16 %v3976, %v3976
      %v3993 = vpack.c.b16 %v3977, %v3977
      %v3994 = vpack.c.b16 %v3978, %v3978
      %v3995 = vpack.c.b16 %v3979, %v3979
      %v3996 = vpack.c.b16 %v3980, %v3980
      %v3997 = vpack.c.b16 %v3981, %v3981
      %v3998 = vpack.c.b16 %v3982, %v3982
      %v3999 = vpack.c.b16 %v3983, %v3983
      %v4000 = vpack.c.b16 %v3984, %v3984
      %v4002 = vshrl.u32 %v3905, 16
      %v4004 = vshll.u32 %v3905, 16
      %v4006 = vrot.slane %v4004, 1
      %v4007 = vor.u32 %v4002, %v4006
      %v4009 = vshll.u32 %v3985, 16
      %v4011 = vrot.slane %v4009, 1
      %v4012 = vsel %vm1014, %v4007, %v4011
      %v4014 = vshrl.u32 %v3906, 16
      %v4016 = vshll.u32 %v3906, 16
      %v4018 = vrot.slane %v4016, 1
      %v4019 = vor.u32 %v4014, %v4018
      %v4021 = vshll.u32 %v3986, 16
      %v4023 = vrot.slane %v4021, 1
      %v4024 = vsel %vm1014, %v4019, %v4023
      %v4026 = vshrl.u32 %v3907, 16
      %v4028 = vshll.u32 %v3907, 16
      %v4030 = vrot.slane %v4028, 1
      %v4031 = vor.u32 %v4026, %v4030
      %v4033 = vshll.u32 %v3987, 16
      %v4035 = vrot.slane %v4033, 1
      %v4036 = vsel %vm1014, %v4031, %v4035
      %v4038 = vshrl.u32 %v3908, 16
      %v4040 = vshll.u32 %v3908, 16
      %v4042 = vrot.slane %v4040, 1
      %v4043 = vor.u32 %v4038, %v4042
      %v4045 = vshll.u32 %v3988, 16
      %v4047 = vrot.slane %v4045, 1
      %v4048 = vsel %vm1014, %v4043, %v4047
      %v4050 = vshrl.u32 %v3909, 16
      %v4052 = vshll.u32 %v3909, 16
      %v4054 = vrot.slane %v4052, 1
      %v4055 = vor.u32 %v4050, %v4054
      %v4057 = vshll.u32 %v3989, 16
      %v4059 = vrot.slane %v4057, 1
      %v4060 = vsel %vm1014, %v4055, %v4059
      %v4062 = vshrl.u32 %v3910, 16
      %v4064 = vshll.u32 %v3910, 16
      %v4066 = vrot.slane %v4064, 1
      %v4067 = vor.u32 %v4062, %v4066
      %v4069 = vshll.u32 %v3990, 16
      %v4071 = vrot.slane %v4069, 1
      %v4072 = vsel %vm1014, %v4067, %v4071
      %v4074 = vshrl.u32 %v3911, 16
      %v4076 = vshll.u32 %v3911, 16
      %v4078 = vrot.slane %v4076, 1
      %v4079 = vor.u32 %v4074, %v4078
      %v4081 = vshll.u32 %v3991, 16
      %v4083 = vrot.slane %v4081, 1
      %v4084 = vsel %vm1014, %v4079, %v4083
      %v4086 = vshrl.u32 %v3912, 16
      %v4088 = vshll.u32 %v3912, 16
      %v4090 = vrot.slane %v4088, 1
      %v4091 = vor.u32 %v4086, %v4090
      %v4093 = vshll.u32 %v3992, 16
      %v4095 = vrot.slane %v4093, 1
      %v4096 = vsel %vm1014, %v4091, %v4095
      %v4098 = vshrl.u32 %v3913, 16
      %v4100 = vshll.u32 %v3913, 16
      %v4102 = vrot.slane %v4100, 1
      %v4103 = vor.u32 %v4098, %v4102
      %v4105 = vshll.u32 %v3993, 16
      %v4107 = vrot.slane %v4105, 1
      %v4108 = vsel %vm1014, %v4103, %v4107
      %v4110 = vshrl.u32 %v3914, 16
      %v4112 = vshll.u32 %v3914, 16
      %v4114 = vrot.slane %v4112, 1
      %v4115 = vor.u32 %v4110, %v4114
      %v4117 = vshll.u32 %v3994, 16
      %v4119 = vrot.slane %v4117, 1
      %v4120 = vsel %vm1014, %v4115, %v4119
      %v4122 = vshrl.u32 %v3915, 16
      %v4124 = vshll.u32 %v3915, 16
      %v4126 = vrot.slane %v4124, 1
      %v4127 = vor.u32 %v4122, %v4126
      %v4129 = vshll.u32 %v3995, 16
      %v4131 = vrot.slane %v4129, 1
      %v4132 = vsel %vm1014, %v4127, %v4131
      %v4134 = vshrl.u32 %v3916, 16
      %v4136 = vshll.u32 %v3916, 16
      %v4138 = vrot.slane %v4136, 1
      %v4139 = vor.u32 %v4134, %v4138
      %v4141 = vshll.u32 %v3996, 16
      %v4143 = vrot.slane %v4141, 1
      %v4144 = vsel %vm1014, %v4139, %v4143
      %v4146 = vshrl.u32 %v3917, 16
      %v4148 = vshll.u32 %v3917, 16
      %v4150 = vrot.slane %v4148, 1
      %v4151 = vor.u32 %v4146, %v4150
      %v4153 = vshll.u32 %v3997, 16
      %v4155 = vrot.slane %v4153, 1
      %v4156 = vsel %vm1014, %v4151, %v4155
      %v4158 = vshrl.u32 %v3918, 16
      %v4160 = vshll.u32 %v3918, 16
      %v4162 = vrot.slane %v4160, 1
      %v4163 = vor.u32 %v4158, %v4162
      %v4165 = vshll.u32 %v3998, 16
      %v4167 = vrot.slane %v4165, 1
      %v4168 = vsel %vm1014, %v4163, %v4167
      %v4170 = vshrl.u32 %v3919, 16
      %v4172 = vshll.u32 %v3919, 16
      %v4174 = vrot.slane %v4172, 1
      %v4175 = vor.u32 %v4170, %v4174
      %v4177 = vshll.u32 %v3999, 16
      %v4179 = vrot.slane %v4177, 1
      %v4180 = vsel %vm1014, %v4175, %v4179
      %v4182 = vshrl.u32 %v3920, 16
      %v4184 = vshll.u32 %v3920, 16
      %v4186 = vrot.slane %v4184, 1
      %v4187 = vor.u32 %v4182, %v4186
      %v4189 = vshll.u32 %v4000, 16
      %v4191 = vrot.slane %v4189, 1
      %v4192 = vsel %vm1014, %v4187, %v4191
      %4193 = vrot.lane.b32.xlu0 %v4012, 16
      %v4194 = vpop.permute.xlu0 %4193
      %4195 = vrot.lane.b32.xlu0 %v4024, 16
      %v4196 = vpop.permute.xlu0 %4195
      %4197 = vrot.lane.b32.xlu0 %v4036, 16
      %v4198 = vpop.permute.xlu0 %4197
      %4199 = vrot.lane.b32.xlu0 %v4048, 16
      %v4200 = vpop.permute.xlu0 %4199
      %4201 = vrot.lane.b32.xlu0 %v4060, 16
      %v4202 = vpop.permute.xlu0 %4201
      %4203 = vrot.lane.b32.xlu0 %v4072, 16
      %v4204 = vpop.permute.xlu0 %4203
      %4205 = vrot.lane.b32.xlu0 %v4084, 16
      %v4206 = vpop.permute.xlu0 %4205
      %4207 = vrot.lane.b32.xlu0 %v4096, 16
      %v4208 = vpop.permute.xlu0 %4207
      %4209 = vrot.lane.b32.xlu0 %v4108, 16
      %v4210 = vpop.permute.xlu0 %4209
      %4211 = vrot.lane.b32.xlu0 %v4120, 16
      %v4212 = vpop.permute.xlu0 %4211
      %4213 = vrot.lane.b32.xlu0 %v4132, 16
      %v4214 = vpop.permute.xlu0 %4213
      %4215 = vrot.lane.b32.xlu0 %v4144, 16
      %v4216 = vpop.permute.xlu0 %4215
      %4217 = vrot.lane.b32.xlu0 %v4156, 16
      %v4218 = vpop.permute.xlu0 %4217
      %4219 = vrot.lane.b32.xlu0 %v4168, 16
      %v4220 = vpop.permute.xlu0 %4219
      %4221 = vrot.lane.b32.xlu0 %v4180, 16
      %v4222 = vpop.permute.xlu0 %4221
      %4223 = vrot.lane.b32.xlu0 %v4192, 16
      %v4224 = vpop.permute.xlu0 %4223
      %v4225 = vrot.slane %v3905, 1
      %v4226 = vrot.slane %v3985, 1
      %v4227 = vsel %vm1239, %v4225, %v4226
      %v4228 = vrot.slane %v3906, 1
      %v4229 = vrot.slane %v3986, 1
      %v4230 = vsel %vm1239, %v4228, %v4229
      %v4231 = vrot.slane %v3907, 1
      %v4232 = vrot.slane %v3987, 1
      %v4233 = vsel %vm1239, %v4231, %v4232
      %v4234 = vrot.slane %v3908, 1
      %v4235 = vrot.slane %v3988, 1
      %v4236 = vsel %vm1239, %v4234, %v4235
      %v4237 = vrot.slane %v3909, 1
      %v4238 = vrot.slane %v3989, 1
      %v4239 = vsel %vm1239, %v4237, %v4238
      %v4240 = vrot.slane %v3910, 1
      %v4241 = vrot.slane %v3990, 1
      %v4242 = vsel %vm1239, %v4240, %v4241
      %v4243 = vrot.slane %v3911, 1
      %v4244 = vrot.slane %v3991, 1
      %v4245 = vsel %vm1239, %v4243, %v4244
      %v4246 = vrot.slane %v3912, 1
      %v4247 = vrot.slane %v3992, 1
      %v4248 = vsel %vm1239, %v4246, %v4247
      %v4249 = vrot.slane %v3913, 1
      %v4250 = vrot.slane %v3993, 1
      %v4251 = vsel %vm1239, %v4249, %v4250
      %v4252 = vrot.slane %v3914, 1
      %v4253 = vrot.slane %v3994, 1
      %v4254 = vsel %vm1239, %v4252, %v4253
      %v4255 = vrot.slane %v3915, 1
      %v4256 = vrot.slane %v3995, 1
      %v4257 = vsel %vm1239, %v4255, %v4256
      %v4258 = vrot.slane %v3916, 1
      %v4259 = vrot.slane %v3996, 1
      %v4260 = vsel %vm1239, %v4258, %v4259
      %v4261 = vrot.slane %v3917, 1
      %v4262 = vrot.slane %v3997, 1
      %v4263 = vsel %vm1239, %v4261, %v4262
      %v4264 = vrot.slane %v3918, 1
      %v4265 = vrot.slane %v3998, 1
      %v4266 = vsel %vm1239, %v4264, %v4265
      %v4267 = vrot.slane %v3919, 1
      %v4268 = vrot.slane %v3999, 1
      %v4269 = vsel %vm1239, %v4267, %v4268
      %v4270 = vrot.slane %v3920, 1
      %v4271 = vrot.slane %v4000, 1
      %v4272 = vsel %vm1239, %v4270, %v4271
      %4273 = vrot.lane.b32.xlu0 %v4227, 20
      %v4274 = vpop.permute.xlu0 %4273
      %4275 = vrot.lane.b32.xlu0 %v4230, 20
      %v4276 = vpop.permute.xlu0 %4275
      %4277 = vrot.lane.b32.xlu0 %v4233, 20
      %v4278 = vpop.permute.xlu0 %4277
      %4279 = vrot.lane.b32.xlu0 %v4236, 20
      %v4280 = vpop.permute.xlu0 %4279
      %4281 = vrot.lane.b32.xlu0 %v4239, 20
      %v4282 = vpop.permute.xlu0 %4281
      %4283 = vrot.lane.b32.xlu0 %v4242, 20
      %v4284 = vpop.permute.xlu0 %4283
      %4285 = vrot.lane.b32.xlu0 %v4245, 20
      %v4286 = vpop.permute.xlu0 %4285
      %4287 = vrot.lane.b32.xlu0 %v4248, 20
      %v4288 = vpop.permute.xlu0 %4287
      %4289 = vrot.lane.b32.xlu0 %v4251, 20
      %v4290 = vpop.permute.xlu0 %4289
      %4291 = vrot.lane.b32.xlu0 %v4254, 20
      %v4292 = vpop.permute.xlu0 %4291
      %4293 = vrot.lane.b32.xlu0 %v4257, 20
      %v4294 = vpop.permute.xlu0 %4293
      %4295 = vrot.lane.b32.xlu0 %v4260, 20
      %v4296 = vpop.permute.xlu0 %4295
      %4297 = vrot.lane.b32.xlu0 %v4263, 20
      %v4298 = vpop.permute.xlu0 %4297
      %4299 = vrot.lane.b32.xlu0 %v4266, 20
      %v4300 = vpop.permute.xlu0 %4299
      %4301 = vrot.lane.b32.xlu0 %v4269, 20
      %v4302 = vpop.permute.xlu0 %4301
      %4303 = vrot.lane.b32.xlu0 %v4272, 20
      %v4304 = vpop.permute.xlu0 %4303
      %v4337 = vunpack.c.l.b16 %v3361
      %v4338 = vunpack.c.l.b16 %v3362
      %v4339 = vunpack.c.l.b16 %v3364
      %v4340 = vunpack.c.l.b16 %v3365
      %v4341 = vunpack.c.l.b16 %v3367
      %v4342 = vunpack.c.l.b16 %v3368
      %v4343 = vunpack.c.l.b16 %v3370
      %v4344 = vunpack.c.l.b16 %v3371
      %v4345 = vunpack.c.l.b16 %v3373
      %v4346 = vunpack.c.l.b16 %v3374
      %v4347 = vunpack.c.l.b16 %v3376
      %v4348 = vunpack.c.l.b16 %v3377
      %v4349 = vunpack.c.l.b16 %v3379
      %v4350 = vunpack.c.l.b16 %v3380
      %v4351 = vunpack.c.l.b16 %v3382
      %v4352 = vunpack.c.l.b16 %v3383
      %v4353 = vunpack.c.l.b16 %v3385
      %v4354 = vunpack.c.l.b16 %v3386
      %v4355 = vunpack.c.l.b16 %v3388
      %v4356 = vunpack.c.l.b16 %v3389
      %v4357 = vunpack.c.l.b16 %v3391
      %v4358 = vunpack.c.l.b16 %v3392
      %v4359 = vunpack.c.l.b16 %v3394
      %v4360 = vunpack.c.l.b16 %v3395
      %v4361 = vunpack.c.l.b16 %v3397
      %v4362 = vunpack.c.l.b16 %v3398
      %v4363 = vunpack.c.l.b16 %v3400
      %v4364 = vunpack.c.l.b16 %v3401
      %v4365 = vunpack.c.l.b16 %v3403
      %v4366 = vunpack.c.l.b16 %v3404
      %v4367 = vunpack.c.l.b16 %v3406
      %v4368 = vunpack.c.l.b16 %v3407
      %v4369 = vpack.c.b16 %v4338, %v4337
      %v4370 = vpack.c.b16 %v4340, %v4339
      %v4371 = vpack.c.b16 %v4342, %v4341
      %v4372 = vpack.c.b16 %v4344, %v4343
      %v4373 = vpack.c.b16 %v4346, %v4345
      %v4374 = vpack.c.b16 %v4348, %v4347
      %v4375 = vpack.c.b16 %v4350, %v4349
      %v4376 = vpack.c.b16 %v4352, %v4351
      %v4377 = vpack.c.b16 %v4354, %v4353
      %v4378 = vpack.c.b16 %v4356, %v4355
      %v4379 = vpack.c.b16 %v4358, %v4357
      %v4380 = vpack.c.b16 %v4360, %v4359
      %v4381 = vpack.c.b16 %v4362, %v4361
      %v4382 = vpack.c.b16 %v4364, %v4363
      %v4383 = vpack.c.b16 %v4366, %v4365
      %v4384 = vpack.c.b16 %v4368, %v4367
      %4385 = vrot.lane.b32.xlu0 %v4369, 24
      %v4386 = vpop.permute.xlu0 %4385
      %4387 = vrot.lane.b32.xlu0 %v4370, 24
      %v4388 = vpop.permute.xlu0 %4387
      %4389 = vrot.lane.b32.xlu0 %v4371, 24
      %v4390 = vpop.permute.xlu0 %4389
      %4391 = vrot.lane.b32.xlu0 %v4372, 24
      %v4392 = vpop.permute.xlu0 %4391
      %4393 = vrot.lane.b32.xlu0 %v4373, 24
      %v4394 = vpop.permute.xlu0 %4393
      %4395 = vrot.lane.b32.xlu0 %v4374, 24
      %v4396 = vpop.permute.xlu0 %4395
      %4397 = vrot.lane.b32.xlu0 %v4375, 24
      %v4398 = vpop.permute.xlu0 %4397
      %4399 = vrot.lane.b32.xlu0 %v4376, 24
      %v4400 = vpop.permute.xlu0 %4399
      %4401 = vrot.lane.b32.xlu0 %v4377, 24
      %v4402 = vpop.permute.xlu0 %4401
      %4403 = vrot.lane.b32.xlu0 %v4378, 24
      %v4404 = vpop.permute.xlu0 %4403
      %4405 = vrot.lane.b32.xlu0 %v4379, 24
      %v4406 = vpop.permute.xlu0 %4405
      %4407 = vrot.lane.b32.xlu0 %v4380, 24
      %v4408 = vpop.permute.xlu0 %4407
      %4409 = vrot.lane.b32.xlu0 %v4381, 24
      %v4410 = vpop.permute.xlu0 %4409
      %4411 = vrot.lane.b32.xlu0 %v4382, 24
      %v4412 = vpop.permute.xlu0 %4411
      %4413 = vrot.lane.b32.xlu0 %v4383, 24
      %v4414 = vpop.permute.xlu0 %4413
      %4415 = vrot.lane.b32.xlu0 %v4384, 24
      %v4416 = vpop.permute.xlu0 %4415
      %v4433 = vunpack.c.l.b16 %v3363
      %v4434 = vunpack.c.l.b16 %v3366
      %v4435 = vunpack.c.l.b16 %v3369
      %v4436 = vunpack.c.l.b16 %v3372
      %v4437 = vunpack.c.l.b16 %v3375
      %v4438 = vunpack.c.l.b16 %v3378
      %v4439 = vunpack.c.l.b16 %v3381
      %v4440 = vunpack.c.l.b16 %v3384
      %v4441 = vunpack.c.l.b16 %v3387
      %v4442 = vunpack.c.l.b16 %v3390
      %v4443 = vunpack.c.l.b16 %v3393
      %v4444 = vunpack.c.l.b16 %v3396
      %v4445 = vunpack.c.l.b16 %v3399
      %v4446 = vunpack.c.l.b16 %v3402
      %v4447 = vunpack.c.l.b16 %v3405
      %v4448 = vunpack.c.l.b16 %v3408
      %v4449 = vpack.c.b16 %v4433, %v4433
      %v4450 = vpack.c.b16 %v4434, %v4434
      %v4451 = vpack.c.b16 %v4435, %v4435
      %v4452 = vpack.c.b16 %v4436, %v4436
      %v4453 = vpack.c.b16 %v4437, %v4437
      %v4454 = vpack.c.b16 %v4438, %v4438
      %v4455 = vpack.c.b16 %v4439, %v4439
      %v4456 = vpack.c.b16 %v4440, %v4440
      %v4457 = vpack.c.b16 %v4441, %v4441
      %v4458 = vpack.c.b16 %v4442, %v4442
      %v4459 = vpack.c.b16 %v4443, %v4443
      %v4460 = vpack.c.b16 %v4444, %v4444
      %v4461 = vpack.c.b16 %v4445, %v4445
      %v4462 = vpack.c.b16 %v4446, %v4446
      %v4463 = vpack.c.b16 %v4447, %v4447
      %v4464 = vpack.c.b16 %v4448, %v4448
      %v4466 = vshrl.u32 %v4369, 16
      %v4468 = vshll.u32 %v4369, 16
      %v4470 = vrot.slane %v4468, 1
      %v4471 = vor.u32 %v4466, %v4470
      %v4473 = vshll.u32 %v4449, 16
      %v4475 = vrot.slane %v4473, 1
      %v4476 = vsel %vm1014, %v4471, %v4475
      %v4478 = vshrl.u32 %v4370, 16
      %v4480 = vshll.u32 %v4370, 16
      %v4482 = vrot.slane %v4480, 1
      %v4483 = vor.u32 %v4478, %v4482
      %v4485 = vshll.u32 %v4450, 16
      %v4487 = vrot.slane %v4485, 1
      %v4488 = vsel %vm1014, %v4483, %v4487
      %v4490 = vshrl.u32 %v4371, 16
      %v4492 = vshll.u32 %v4371, 16
      %v4494 = vrot.slane %v4492, 1
      %v4495 = vor.u32 %v4490, %v4494
      %v4497 = vshll.u32 %v4451, 16
      %v4499 = vrot.slane %v4497, 1
      %v4500 = vsel %vm1014, %v4495, %v4499
      %v4502 = vshrl.u32 %v4372, 16
      %v4504 = vshll.u32 %v4372, 16
      %v4506 = vrot.slane %v4504, 1
      %v4507 = vor.u32 %v4502, %v4506
      %v4509 = vshll.u32 %v4452, 16
      %v4511 = vrot.slane %v4509, 1
      %v4512 = vsel %vm1014, %v4507, %v4511
      %v4514 = vshrl.u32 %v4373, 16
      %v4516 = vshll.u32 %v4373, 16
      %v4518 = vrot.slane %v4516, 1
      %v4519 = vor.u32 %v4514, %v4518
      %v4521 = vshll.u32 %v4453, 16
      %v4523 = vrot.slane %v4521, 1
      %v4524 = vsel %vm1014, %v4519, %v4523
      %v4526 = vshrl.u32 %v4374, 16
      %v4528 = vshll.u32 %v4374, 16
      %v4530 = vrot.slane %v4528, 1
      %v4531 = vor.u32 %v4526, %v4530
      %v4533 = vshll.u32 %v4454, 16
      %v4535 = vrot.slane %v4533, 1
      %v4536 = vsel %vm1014, %v4531, %v4535
      %v4538 = vshrl.u32 %v4375, 16
      %v4540 = vshll.u32 %v4375, 16
      %v4542 = vrot.slane %v4540, 1
      %v4543 = vor.u32 %v4538, %v4542
      %v4545 = vshll.u32 %v4455, 16
      %v4547 = vrot.slane %v4545, 1
      %v4548 = vsel %vm1014, %v4543, %v4547
      %v4550 = vshrl.u32 %v4376, 16
      %v4552 = vshll.u32 %v4376, 16
      %v4554 = vrot.slane %v4552, 1
      %v4555 = vor.u32 %v4550, %v4554
      %v4557 = vshll.u32 %v4456, 16
      %v4559 = vrot.slane %v4557, 1
      %v4560 = vsel %vm1014, %v4555, %v4559
      %v4562 = vshrl.u32 %v4377, 16
      %v4564 = vshll.u32 %v4377, 16
      %v4566 = vrot.slane %v4564, 1
      %v4567 = vor.u32 %v4562, %v4566
      %v4569 = vshll.u32 %v4457, 16
      %v4571 = vrot.slane %v4569, 1
      %v4572 = vsel %vm1014, %v4567, %v4571
      %v4574 = vshrl.u32 %v4378, 16
      %v4576 = vshll.u32 %v4378, 16
      %v4578 = vrot.slane %v4576, 1
      %v4579 = vor.u32 %v4574, %v4578
      %v4581 = vshll.u32 %v4458, 16
      %v4583 = vrot.slane %v4581, 1
      %v4584 = vsel %vm1014, %v4579, %v4583
      %v4586 = vshrl.u32 %v4379, 16
      %v4588 = vshll.u32 %v4379, 16
      %v4590 = vrot.slane %v4588, 1
      %v4591 = vor.u32 %v4586, %v4590
      %v4593 = vshll.u32 %v4459, 16
      %v4595 = vrot.slane %v4593, 1
      %v4596 = vsel %vm1014, %v4591, %v4595
      %v4598 = vshrl.u32 %v4380, 16
      %v4600 = vshll.u32 %v4380, 16
      %v4602 = vrot.slane %v4600, 1
      %v4603 = vor.u32 %v4598, %v4602
      %v4605 = vshll.u32 %v4460, 16
      %v4607 = vrot.slane %v4605, 1
      %v4608 = vsel %vm1014, %v4603, %v4607
      %v4610 = vshrl.u32 %v4381, 16
      %v4612 = vshll.u32 %v4381, 16
      %v4614 = vrot.slane %v4612, 1
      %v4615 = vor.u32 %v4610, %v4614
      %v4617 = vshll.u32 %v4461, 16
      %v4619 = vrot.slane %v4617, 1
      %v4620 = vsel %vm1014, %v4615, %v4619
      %v4622 = vshrl.u32 %v4382, 16
      %v4624 = vshll.u32 %v4382, 16
      %v4626 = vrot.slane %v4624, 1
      %v4627 = vor.u32 %v4622, %v4626
      %v4629 = vshll.u32 %v4462, 16
      %v4631 = vrot.slane %v4629, 1
      %v4632 = vsel %vm1014, %v4627, %v4631
      %v4634 = vshrl.u32 %v4383, 16
      %v4636 = vshll.u32 %v4383, 16
      %v4638 = vrot.slane %v4636, 1
      %v4639 = vor.u32 %v4634, %v4638
      %v4641 = vshll.u32 %v4463, 16
      %v4643 = vrot.slane %v4641, 1
      %v4644 = vsel %vm1014, %v4639, %v4643
      %v4646 = vshrl.u32 %v4384, 16
      %v4648 = vshll.u32 %v4384, 16
      %v4650 = vrot.slane %v4648, 1
      %v4651 = vor.u32 %v4646, %v4650
      %v4653 = vshll.u32 %v4464, 16
      %v4655 = vrot.slane %v4653, 1
      %v4656 = vsel %vm1014, %v4651, %v4655
      %4657 = vrot.lane.b32.xlu0 %v4476, 28
      %v4658 = vpop.permute.xlu0 %4657
      %4659 = vrot.lane.b32.xlu0 %v4488, 28
      %v4660 = vpop.permute.xlu0 %4659
      %4661 = vrot.lane.b32.xlu0 %v4500, 28
      %v4662 = vpop.permute.xlu0 %4661
      %4663 = vrot.lane.b32.xlu0 %v4512, 28
      %v4664 = vpop.permute.xlu0 %4663
      %4665 = vrot.lane.b32.xlu0 %v4524, 28
      %v4666 = vpop.permute.xlu0 %4665
      %4667 = vrot.lane.b32.xlu0 %v4536, 28
      %v4668 = vpop.permute.xlu0 %4667
      %4669 = vrot.lane.b32.xlu0 %v4548, 28
      %v4670 = vpop.permute.xlu0 %4669
      %4671 = vrot.lane.b32.xlu0 %v4560, 28
      %v4672 = vpop.permute.xlu0 %4671
      %4673 = vrot.lane.b32.xlu0 %v4572, 28
      %v4674 = vpop.permute.xlu0 %4673
      %4675 = vrot.lane.b32.xlu0 %v4584, 28
      %v4676 = vpop.permute.xlu0 %4675
      %4677 = vrot.lane.b32.xlu0 %v4596, 28
      %v4678 = vpop.permute.xlu0 %4677
      %4679 = vrot.lane.b32.xlu0 %v4608, 28
      %v4680 = vpop.permute.xlu0 %4679
      %4681 = vrot.lane.b32.xlu0 %v4620, 28
      %v4682 = vpop.permute.xlu0 %4681
      %4683 = vrot.lane.b32.xlu0 %v4632, 28
      %v4684 = vpop.permute.xlu0 %4683
      %4685 = vrot.lane.b32.xlu0 %v4644, 28
      %v4686 = vpop.permute.xlu0 %4685
      %4687 = vrot.lane.b32.xlu0 %v4656, 28
      %v4688 = vpop.permute.xlu0 %4687
      %v4689 = vrot.slane %v4369, 1
      %v4690 = vrot.slane %v4449, 1
      %v4691 = vsel %vm1239, %v4689, %v4690
      %v4692 = vrot.slane %v4370, 1
      %v4693 = vrot.slane %v4450, 1
      %v4694 = vsel %vm1239, %v4692, %v4693
      %v4695 = vrot.slane %v4371, 1
      %v4696 = vrot.slane %v4451, 1
      %v4697 = vsel %vm1239, %v4695, %v4696
      %v4698 = vrot.slane %v4372, 1
      %v4699 = vrot.slane %v4452, 1
      %v4700 = vsel %vm1239, %v4698, %v4699
      %v4701 = vrot.slane %v4373, 1
      %v4702 = vrot.slane %v4453, 1
      %v4703 = vsel %vm1239, %v4701, %v4702
      %v4704 = vrot.slane %v4374, 1
      %v4705 = vrot.slane %v4454, 1
      %v4706 = vsel %vm1239, %v4704, %v4705
      %v4707 = vrot.slane %v4375, 1
      %v4708 = vrot.slane %v4455, 1
      %v4709 = vsel %vm1239, %v4707, %v4708
      %v4710 = vrot.slane %v4376, 1
      %v4711 = vrot.slane %v4456, 1
      %v4712 = vsel %vm1239, %v4710, %v4711
      %v4713 = vrot.slane %v4377, 1
      %v4714 = vrot.slane %v4457, 1
      %v4715 = vsel %vm1239, %v4713, %v4714
      %v4716 = vrot.slane %v4378, 1
      %v4717 = vrot.slane %v4458, 1
      %v4718 = vsel %vm1239, %v4716, %v4717
      %v4719 = vrot.slane %v4379, 1
      %v4720 = vrot.slane %v4459, 1
      %v4721 = vsel %vm1239, %v4719, %v4720
      %v4722 = vrot.slane %v4380, 1
      %v4723 = vrot.slane %v4460, 1
      %v4724 = vsel %vm1239, %v4722, %v4723
      %v4725 = vrot.slane %v4381, 1
      %v4726 = vrot.slane %v4461, 1
      %v4727 = vsel %vm1239, %v4725, %v4726
      %v4728 = vrot.slane %v4382, 1
      %v4729 = vrot.slane %v4462, 1
      %v4730 = vsel %vm1239, %v4728, %v4729
      %v4731 = vrot.slane %v4383, 1
      %v4732 = vrot.slane %v4463, 1
      %v4733 = vsel %vm1239, %v4731, %v4732
      %v4734 = vrot.slane %v4384, 1
      %v4735 = vrot.slane %v4464, 1
      %v4736 = vsel %vm1239, %v4734, %v4735
      %4737 = vrot.lane.b32.xlu0 %v4691, 32
      %v4738 = vpop.permute.xlu0 %4737
      %4739 = vrot.lane.b32.xlu0 %v4694, 32
      %v4740 = vpop.permute.xlu0 %4739
      %4741 = vrot.lane.b32.xlu0 %v4697, 32
      %v4742 = vpop.permute.xlu0 %4741
      %4743 = vrot.lane.b32.xlu0 %v4700, 32
      %v4744 = vpop.permute.xlu0 %4743
      %4745 = vrot.lane.b32.xlu0 %v4703, 32
      %v4746 = vpop.permute.xlu0 %4745
      %4747 = vrot.lane.b32.xlu0 %v4706, 32
      %v4748 = vpop.permute.xlu0 %4747
      %4749 = vrot.lane.b32.xlu0 %v4709, 32
      %v4750 = vpop.permute.xlu0 %4749
      %4751 = vrot.lane.b32.xlu0 %v4712, 32
      %v4752 = vpop.permute.xlu0 %4751
      %4753 = vrot.lane.b32.xlu0 %v4715, 32
      %v4754 = vpop.permute.xlu0 %4753
      %4755 = vrot.lane.b32.xlu0 %v4718, 32
      %v4756 = vpop.permute.xlu0 %4755
      %4757 = vrot.lane.b32.xlu0 %v4721, 32
      %v4758 = vpop.permute.xlu0 %4757
      %4759 = vrot.lane.b32.xlu0 %v4724, 32
      %v4760 = vpop.permute.xlu0 %4759
      %4761 = vrot.lane.b32.xlu0 %v4727, 32
      %v4762 = vpop.permute.xlu0 %4761
      %4763 = vrot.lane.b32.xlu0 %v4730, 32
      %v4764 = vpop.permute.xlu0 %4763
      %4765 = vrot.lane.b32.xlu0 %v4733, 32
      %v4766 = vpop.permute.xlu0 %4765
      %4767 = vrot.lane.b32.xlu0 %v4736, 32
      %v4768 = vpop.permute.xlu0 %4767
      %v4770 = vsel %vm2248, %v3473, %v3730
      %v4772 = vsel %vm2248, %v3474, %v3732
      %v4774 = vsel %vm2248, %v3475, %v3734
      %v4776 = vsel %vm2248, %v3476, %v3736
      %v4778 = vsel %vm2248, %v3477, %v3738
      %v4780 = vsel %vm2248, %v3478, %v3740
      %v4782 = vsel %vm2248, %v3479, %v3742
      %v4784 = vsel %vm2248, %v3480, %v3744
      %v4786 = vsel %vm2248, %v3481, %v3746
      %v4788 = vsel %vm2248, %v3482, %v3748
      %v4790 = vsel %vm2248, %v3483, %v3750
      %v4792 = vsel %vm2248, %v3484, %v3752
      %v4794 = vsel %vm2248, %v3485, %v3754
      %v4796 = vsel %vm2248, %v3486, %v3756
      %v4798 = vsel %vm2248, %v3487, %v3758
      %v4800 = vsel %vm2248, %v3488, %v3760
      %v4802 = vsel %vm2281, %v4770, %v3810
      %v4804 = vsel %vm2281, %v4772, %v3812
      %v4806 = vsel %vm2281, %v4774, %v3814
      %v4808 = vsel %vm2281, %v4776, %v3816
      %v4810 = vsel %vm2281, %v4778, %v3818
      %v4812 = vsel %vm2281, %v4780, %v3820
      %v4814 = vsel %vm2281, %v4782, %v3822
      %v4816 = vsel %vm2281, %v4784, %v3824
      %v4818 = vsel %vm2281, %v4786, %v3826
      %v4820 = vsel %vm2281, %v4788, %v3828
      %v4822 = vsel %vm2281, %v4790, %v3830
      %v4824 = vsel %vm2281, %v4792, %v3832
      %v4826 = vsel %vm2281, %v4794, %v3834
      %v4828 = vsel %vm2281, %v4796, %v3836
      %v4830 = vsel %vm2281, %v4798, %v3838
      %v4832 = vsel %vm2281, %v4800, %v3840
      %v4834 = vsel %vm2314, %v4802, %v3922
      %v4836 = vsel %vm2314, %v4804, %v3924
      %v4838 = vsel %vm2314, %v4806, %v3926
      %v4840 = vsel %vm2314, %v4808, %v3928
      %v4842 = vsel %vm2314, %v4810, %v3930
      %v4844 = vsel %vm2314, %v4812, %v3932
      %v4846 = vsel %vm2314, %v4814, %v3934
      %v4848 = vsel %vm2314, %v4816, %v3936
      %v4850 = vsel %vm2314, %v4818, %v3938
      %v4852 = vsel %vm2314, %v4820, %v3940
      %v4854 = vsel %vm2314, %v4822, %v3942
      %v4856 = vsel %vm2314, %v4824, %v3944
      %v4858 = vsel %vm2314, %v4826, %v3946
      %v4860 = vsel %vm2314, %v4828, %v3948
      %v4862 = vsel %vm2314, %v4830, %v3950
      %v4864 = vsel %vm2314, %v4832, %v3952
      %v4866 = vsel %vm2347, %v4834, %v4194
      %v4868 = vsel %vm2347, %v4836, %v4196
      %v4870 = vsel %vm2347, %v4838, %v4198
      %v4872 = vsel %vm2347, %v4840, %v4200
      %v4874 = vsel %vm2347, %v4842, %v4202
      %v4876 = vsel %vm2347, %v4844, %v4204
      %v4878 = vsel %vm2347, %v4846, %v4206
      %v4880 = vsel %vm2347, %v4848, %v4208
      %v4882 = vsel %vm2347, %v4850, %v4210
      %v4884 = vsel %vm2347, %v4852, %v4212
      %v4886 = vsel %vm2347, %v4854, %v4214
      %v4888 = vsel %vm2347, %v4856, %v4216
      %v4890 = vsel %vm2347, %v4858, %v4218
      %v4892 = vsel %vm2347, %v4860, %v4220
      %v4894 = vsel %vm2347, %v4862, %v4222
      %v4896 = vsel %vm2347, %v4864, %v4224
      %v4898 = vsel %vm2380, %v4866, %v4274
      %v4900 = vsel %vm2380, %v4868, %v4276
      %v4902 = vsel %vm2380, %v4870, %v4278
      %v4904 = vsel %vm2380, %v4872, %v4280
      %v4906 = vsel %vm2380, %v4874, %v4282
      %v4908 = vsel %vm2380, %v4876, %v4284
      %v4910 = vsel %vm2380, %v4878, %v4286
      %v4912 = vsel %vm2380, %v4880, %v4288
      %v4914 = vsel %vm2380, %v4882, %v4290
      %v4916 = vsel %vm2380, %v4884, %v4292
      %v4918 = vsel %vm2380, %v4886, %v4294
      %v4920 = vsel %vm2380, %v4888, %v4296
      %v4922 = vsel %vm2380, %v4890, %v4298
      %v4924 = vsel %vm2380, %v4892, %v4300
      %v4926 = vsel %vm2380, %v4894, %v4302
      %v4928 = vsel %vm2380, %v4896, %v4304
      %v4930 = vsel %vm2413, %v4898, %v4386
      %v4932 = vsel %vm2413, %v4900, %v4388
      %v4934 = vsel %vm2413, %v4902, %v4390
      %v4936 = vsel %vm2413, %v4904, %v4392
      %v4938 = vsel %vm2413, %v4906, %v4394
      %v4940 = vsel %vm2413, %v4908, %v4396
      %v4942 = vsel %vm2413, %v4910, %v4398
      %v4944 = vsel %vm2413, %v4912, %v4400
      %v4946 = vsel %vm2413, %v4914, %v4402
      %v4948 = vsel %vm2413, %v4916, %v4404
      %v4950 = vsel %vm2413, %v4918, %v4406
      %v4952 = vsel %vm2413, %v4920, %v4408
      %v4954 = vsel %vm2413, %v4922, %v4410
      %v4956 = vsel %vm2413, %v4924, %v4412
      %v4958 = vsel %vm2413, %v4926, %v4414
      %v4960 = vsel %vm2413, %v4928, %v4416
      %v4962 = vsel %vm2446, %v4930, %v4658
      %v4964 = vsel %vm2446, %v4932, %v4660
      %v4966 = vsel %vm2446, %v4934, %v4662
      %v4968 = vsel %vm2446, %v4936, %v4664
      %v4970 = vsel %vm2446, %v4938, %v4666
      %v4972 = vsel %vm2446, %v4940, %v4668
      %v4974 = vsel %vm2446, %v4942, %v4670
      %v4976 = vsel %vm2446, %v4944, %v4672
      %v4978 = vsel %vm2446, %v4946, %v4674
      %v4980 = vsel %vm2446, %v4948, %v4676
      %v4982 = vsel %vm2446, %v4950, %v4678
      %v4984 = vsel %vm2446, %v4952, %v4680
      %v4986 = vsel %vm2446, %v4954, %v4682
      %v4988 = vsel %vm2446, %v4956, %v4684
      %v4990 = vsel %vm2446, %v4958, %v4686
      %v4992 = vsel %vm2446, %v4960, %v4688
      %v4994 = vsel %vm2479, %v4962, %v4738
      %v4996 = vsel %vm2479, %v4964, %v4740
      %v4998 = vsel %vm2479, %v4966, %v4742
      %v5000 = vsel %vm2479, %v4968, %v4744
      %v5002 = vsel %vm2479, %v4970, %v4746
      %v5004 = vsel %vm2479, %v4972, %v4748
      %v5006 = vsel %vm2479, %v4974, %v4750
      %v5008 = vsel %vm2479, %v4976, %v4752
      %v5010 = vsel %vm2479, %v4978, %v4754
      %v5012 = vsel %vm2479, %v4980, %v4756
      %v5014 = vsel %vm2479, %v4982, %v4758
      %v5016 = vsel %vm2479, %v4984, %v4760
      %v5018 = vsel %vm2479, %v4986, %v4762
      %v5020 = vsel %vm2479, %v4988, %v4764
      %v5022 = vsel %vm2479, %v4990, %v4766
      %v5024 = vsel %vm2479, %v4992, %v4768
      %v5025 = vld [vmem:[%s4] sm:$0xf]
      %v5026 = vld [vmem:[%s4 + $0x4] sm:$0xf]
      %v5027 = vld [vmem:[%s4 + $0x8] sm:$0xf]
      %v5028 = vld [vmem:[%s4 + $0xc] sm:$0xf]
      %v5029 = vld [vmem:[%s4 + $0x10] sm:$0x3]
      %v5035 = vunpack.c.l.b16 %v5025
      %v5036 = vunpack.c.l.b16 %v5026
      %v5037 = vunpack.c.l.b16 %v5027
      %v5038 = vunpack.c.l.b16 %v5028
      %v5039 = vunpack.c.l.b16 %v5029
      %v5040 = vpack.c.b16 %v5036, %v5035
      %v5041 = vpack.c.b16 %v5038, %v5037
      %v5042 = vpack.c.b16 %v5039, %v5039
      %v5045 = vsel %vm2532, %v4994, 0
      %v5047 = vsel %vm2532, %v4996, 0
      %v5049 = vsel %vm2532, %v4998, 0
      %v5051 = vsel %vm2532, %v5000, 0
      %v5053 = vsel %vm2532, %v5002, 0
      %v5055 = vsel %vm2532, %v5004, 0
      %v5057 = vsel %vm2532, %v5006, 0
      %v5059 = vsel %vm2532, %v5008, 0
      %v5061 = vsel %vm2532, %v5010, 0
      %v5063 = vsel %vm2532, %v5012, 0
      %v5065 = vsel %vm2532, %v5014, 0
      %v5067 = vsel %vm2532, %v5016, 0
      %v5069 = vsel %vm2532, %v5018, 0
      %v5071 = vsel %vm2532, %v5020, 0
      %v5073 = vsel %vm2532, %v5022, 0
      %v5075 = vsel %vm2532, %v5024, 0
      %v5078 = vsel %vm2565, %v5042, 0
      %5080 = vmatprep.subr.bf16.mxu0 0
      %5081 = vmatpush1.bf16.msra.mxu0 %v5040
      %5082 = vmatprep.subr.bf16.mxu0 0
      %5083 = vmatpush1.bf16.msra.mxu0 %v5041
      %5084 = vmatprep.subr.bf16.mxu0 0
      %5085 = vmatpush1.bf16.msra.mxu0 %v5078
      %5086 = vmatprep.subr.bf16.mxu0 0
      %5087 = vmatpush1.bf16.msra.mxu0 0
      %5088 = vmatprep.subr.bf16.mxu0 0
      %5089 = vmatpush1.bf16.msra.mxu0 0
      %5090 = vmatprep.subr.bf16.mxu0 0
      %5091 = vmatpush1.bf16.msra.mxu0 0
      %5092 = vmatprep.subr.bf16.mxu0 0
      %5093 = vmatpush1.bf16.msra.mxu0 0
      %5094 = vmatprep.subr.bf16.mxu0 0
      %5095 = vmatpush1.bf16.msra.mxu0 0
      %5096 = vmatprep.subr.bf16.mxu0 0
      %5097 = vmatpush1.bf16.msra.mxu0 0
      %5098 = vmatprep.subr.bf16.mxu0 0
      %5099 = vmatpush1.bf16.msra.mxu0 0
      %5100 = vmatprep.subr.bf16.mxu0 0
      %5101 = vmatpush1.bf16.msra.mxu0 0
      %5102 = vmatprep.subr.bf16.mxu0 0
      %5103 = vmatpush1.bf16.msra.mxu0 0
      %5104 = vmatprep.subr.bf16.mxu0 0
      %5105 = vmatpush1.bf16.msra.mxu0 0
      %5106 = vmatprep.subr.bf16.mxu0 0
      %5107 = vmatpush1.bf16.msra.mxu0 0
      %5108 = vmatprep.subr.bf16.mxu0 0
      %5109 = vmatpush1.bf16.msra.mxu0 0
      %5110 = vmatprep.subr.bf16.mxu0 0
      %5111 = vmatpush1.bf16.msra.mxu0 0
      %5112 = vmatprep.mubr.bf16.mxu0 0
      %5113 = vmatmul.mubr.bf16.gmra.mrb[0].mxu0 %v5045
      %v5114 = vpop.f32.mrb[0].mxu0
      %v5115 = vadd.f32 0.0, %v5114
      %v5116 = vpop.f32.mrb[0].mxu0
      %v5117 = vpop.f32.mrb[0].mxu0
      %v5118 = vadd.f32 0.0, %v5117
      %v5119 = vpop.f32.mrb[0].mxu0
      %5120 = vmatprep.mubr.bf16.mxu0 0
      %5121 = vmatmul.mubr.bf16.gmra.mrb[0].mxu0 %v5047
      %v5122 = vpop.f32.mrb[0].mxu0
      %v5123 = vadd.f32 0.0, %v5122
      %v5124 = vpop.f32.mrb[0].mxu0
      %v5125 = vpop.f32.mrb[0].mxu0
      %v5126 = vadd.f32 0.0, %v5125
      %v5127 = vpop.f32.mrb[0].mxu0
      %5128 = vmatprep.mubr.bf16.mxu0 0
      %5129 = vmatmul.mubr.bf16.gmra.mrb[0].mxu0 %v5049
      %v5130 = vpop.f32.mrb[0].mxu0
      %v5131 = vadd.f32 0.0, %v5130
      %v5132 = vpop.f32.mrb[0].mxu0
      %v5133 = vpop.f32.mrb[0].mxu0
      %v5134 = vadd.f32 0.0, %v5133
      %v5135 = vpop.f32.mrb[0].mxu0
      %5136 = vmatprep.mubr.bf16.mxu0 0
      %5137 = vmatmul.mubr.bf16.gmra.mrb[0].mxu0 %v5051
      %v5138 = vpop.f32.mrb[0].mxu0
      %v5139 = vadd.f32 0.0, %v5138
      %v5140 = vpop.f32.mrb[0].mxu0
      %v5141 = vpop.f32.mrb[0].mxu0
      %v5142 = vadd.f32 0.0, %v5141
      %v5143 = vpop.f32.mrb[0].mxu0
      %5144 = vmatprep.mubr.bf16.mxu0 0
      %5145 = vmatmul.mubr.bf16.gmra.mrb[0].mxu0 %v5053
      %v5146 = vpop.f32.mrb[0].mxu0
      %v5147 = vadd.f32 0.0, %v5146
      %v5148 = vpop.f32.mrb[0].mxu0
      %v5149 = vpop.f32.mrb[0].mxu0
      %v5150 = vadd.f32 0.0, %v5149
      %v5151 = vpop.f32.mrb[0].mxu0
      %5152 = vmatprep.mubr.bf16.mxu0 0
      %5153 = vmatmul.mubr.bf16.gmra.mrb[0].mxu0 %v5055
      %v5154 = vpop.f32.mrb[0].mxu0
      %v5155 = vadd.f32 0.0, %v5154
      %v5156 = vpop.f32.mrb[0].mxu0
      %v5157 = vpop.f32.mrb[0].mxu0
      %v5158 = vadd.f32 0.0, %v5157
      %v5159 = vpop.f32.mrb[0].mxu0
      %5160 = vmatprep.mubr.bf16.mxu0 0
      %5161 = vmatmul.mubr.bf16.gmra.mrb[0].mxu0 %v5057
      %v5162 = vpop.f32.mrb[0].mxu0
      %v5163 = vadd.f32 0.0, %v5162
      %v5164 = vpop.f32.mrb[0].mxu0
      %v5165 = vpop.f32.mrb[0].mxu0
      %v5166 = vadd.f32 0.0, %v5165
      %v5167 = vpop.f32.mrb[0].mxu0
      %5168 = vmatprep.mubr.bf16.mxu0 0
      %5169 = vmatmul.mubr.bf16.gmra.mrb[0].mxu0 %v5059
      %v5170 = vpop.f32.mrb[0].mxu0
      %v5171 = vadd.f32 0.0, %v5170
      %v5172 = vpop.f32.mrb[0].mxu0
      %v5173 = vpop.f32.mrb[0].mxu0
      %v5174 = vadd.f32 0.0, %v5173
      %v5175 = vpop.f32.mrb[0].mxu0
      %5176 = vmatprep.mubr.bf16.mxu0 0
      %5177 = vmatmul.mubr.bf16.gmra.mrb[0].mxu0 %v5061
      %v5178 = vpop.f32.mrb[0].mxu0
      %v5179 = vadd.f32 0.0, %v5178
      %v5180 = vpop.f32.mrb[0].mxu0
      %v5181 = vpop.f32.mrb[0].mxu0
      %v5182 = vadd.f32 0.0, %v5181
      %v5183 = vpop.f32.mrb[0].mxu0
      %5184 = vmatprep.mubr.bf16.mxu0 0
      %5185 = vmatmul.mubr.bf16.gmra.mrb[0].mxu0 %v5063
      %v5186 = vpop.f32.mrb[0].mxu0
      %v5187 = vadd.f32 0.0, %v5186
      %v5188 = vpop.f32.mrb[0].mxu0
      %v5189 = vpop.f32.mrb[0].mxu0
      %v5190 = vadd.f32 0.0, %v5189
      %v5191 = vpop.f32.mrb[0].mxu0
      %5192 = vmatprep.mubr.bf16.mxu0 0
      %5193 = vmatmul.mubr.bf16.gmra.mrb[0].mxu0 %v5065
      %v5194 = vpop.f32.mrb[0].mxu0
      %v5195 = vadd.f32 0.0, %v5194
      %v5196 = vpop.f32.mrb[0].mxu0
      %v5197 = vpop.f32.mrb[0].mxu0
      %v5198 = vadd.f32 0.0, %v5197
      %v5199 = vpop.f32.mrb[0].mxu0
      %5200 = vmatprep.mubr.bf16.mxu0 0
      %5201 = vmatmul.mubr.bf16.gmra.mrb[0].mxu0 %v5067
      %v5202 = vpop.f32.mrb[0].mxu0
      %v5203 = vadd.f32 0.0, %v5202
      %v5204 = vpop.f32.mrb[0].mxu0
      %v5205 = vpop.f32.mrb[0].mxu0
      %v5206 = vadd.f32 0.0, %v5205
      %v5207 = vpop.f32.mrb[0].mxu0
      %5208 = vmatprep.mubr.bf16.mxu0 0
      %5209 = vmatmul.mubr.bf16.gmra.mrb[0].mxu0 %v5069
      %v5210 = vpop.f32.mrb[0].mxu0
      %v5211 = vadd.f32 0.0, %v5210
      %v5212 = vpop.f32.mrb[0].mxu0
      %v5213 = vpop.f32.mrb[0].mxu0
      %v5214 = vadd.f32 0.0, %v5213
      %v5215 = vpop.f32.mrb[0].mxu0
      %5216 = vmatprep.mubr.bf16.mxu0 0
      %5217 = vmatmul.mubr.bf16.gmra.mrb[0].mxu0 %v5071
      %v5218 = vpop.f32.mrb[0].mxu0
      %v5219 = vadd.f32 0.0, %v5218
      %v5220 = vpop.f32.mrb[0].mxu0
      %v5221 = vpop.f32.mrb[0].mxu0
      %v5222 = vadd.f32 0.0, %v5221
      %v5223 = vpop.f32.mrb[0].mxu0
      %5224 = vmatprep.mubr.bf16.mxu0 0
      %5225 = vmatmul.mubr.bf16.gmra.mrb[0].mxu0 %v5073
      %v5226 = vpop.f32.mrb[0].mxu0
      %v5227 = vadd.f32 0.0, %v5226
      %v5228 = vpop.f32.mrb[0].mxu0
      %v5229 = vpop.f32.mrb[0].mxu0
      %v5230 = vadd.f32 0.0, %v5229
      %v5231 = vpop.f32.mrb[0].mxu0
      %5232 = vmatprep.mubr.bf16.mxu0 0
      %5233 = vmatmul.mubr.bf16.gmra.mrb[0].mxu0 %v5075
      %v5234 = vpop.f32.mrb[0].mxu0
      %v5235 = vadd.f32 0.0, %v5234
      %v5236 = vpop.f32.mrb[0].mxu0
      %v5237 = vpop.f32.mrb[0].mxu0
      %v5238 = vadd.f32 0.0, %v5237
      %v5239 = vpop.f32.mrb[0].mxu0
      %5240 = vdwg.mxu0
      %v5241 = vld [vmem:[%s5] sm:$0x1]
      %v5243 = vlaneseq
      %v5244 = vshrl.u32 %v5243, 7
      %v5245 = vsub.s32 0, %v5244
      %v5246 = vrot.slane %v5241, %v5245
      %v5248 = vmul.f32 %v5115, %v5246
      %v5249 = vmul.f32 %v5118, %v5246
      %v5250 = vmul.f32 %v5123, %v5246
      %v5251 = vmul.f32 %v5126, %v5246
      %v5252 = vmul.f32 %v5131, %v5246
      %v5253 = vmul.f32 %v5134, %v5246
      %v5254 = vmul.f32 %v5139, %v5246
      %v5255 = vmul.f32 %v5142, %v5246
      %v5256 = vmul.f32 %v5147, %v5246
      %v5257 = vmul.f32 %v5150, %v5246
      %v5258 = vmul.f32 %v5155, %v5246
      %v5259 = vmul.f32 %v5158, %v5246
      %v5260 = vmul.f32 %v5163, %v5246
      %v5261 = vmul.f32 %v5166, %v5246
      %v5262 = vmul.f32 %v5171, %v5246
      %v5263 = vmul.f32 %v5174, %v5246
      %v5264 = vmul.f32 %v5179, %v5246
      %v5265 = vmul.f32 %v5182, %v5246
      %v5266 = vmul.f32 %v5187, %v5246
      %v5267 = vmul.f32 %v5190, %v5246
      %v5268 = vmul.f32 %v5195, %v5246
      %v5269 = vmul.f32 %v5198, %v5246
      %v5270 = vmul.f32 %v5203, %v5246
      %v5271 = vmul.f32 %v5206, %v5246
      %v5272 = vmul.f32 %v5211, %v5246
      %v5273 = vmul.f32 %v5214, %v5246
      %v5274 = vmul.f32 %v5219, %v5246
      %v5275 = vmul.f32 %v5222, %v5246
      %v5276 = vmul.f32 %v5227, %v5246
      %v5277 = vmul.f32 %v5230, %v5246
      %v5278 = vmul.f32 %v5235, %v5246
      %v5279 = vmul.f32 %v5238, %v5246
      %v5280 = vld [vmem:[%s6] sm:$0x1]
      %v5282 = vlaneseq
      %v5283 = vshrl.u32 %v5282, 7
      %v5284 = vsub.s32 0, %v5283
      %v5285 = vrot.slane %v5280, %v5284
      %v5287 = vadd.f32 %v5248, %v5285
      %v5288 = vadd.f32 %v5249, %v5285
      %v5289 = vadd.f32 %v5250, %v5285
      %v5290 = vadd.f32 %v5251, %v5285
      %v5291 = vadd.f32 %v5252, %v5285
      %v5292 = vadd.f32 %v5253, %v5285
      %v5293 = vadd.f32 %v5254, %v5285
      %v5294 = vadd.f32 %v5255, %v5285
      %v5295 = vadd.f32 %v5256, %v5285
      %v5296 = vadd.f32 %v5257, %v5285
      %v5297 = vadd.f32 %v5258, %v5285
      %v5298 = vadd.f32 %v5259, %v5285
      %v5299 = vadd.f32 %v5260, %v5285
      %v5300 = vadd.f32 %v5261, %v5285
      %v5301 = vadd.f32 %v5262, %v5285
      %v5302 = vadd.f32 %v5263, %v5285
      %v5303 = vadd.f32 %v5264, %v5285
      %v5304 = vadd.f32 %v5265, %v5285
      %v5305 = vadd.f32 %v5266, %v5285
      %v5306 = vadd.f32 %v5267, %v5285
      %v5307 = vadd.f32 %v5268, %v5285
      %v5308 = vadd.f32 %v5269, %v5285
      %v5309 = vadd.f32 %v5270, %v5285
      %v5310 = vadd.f32 %v5271, %v5285
      %v5311 = vadd.f32 %v5272, %v5285
      %v5312 = vadd.f32 %v5273, %v5285
      %v5313 = vadd.f32 %v5274, %v5285
      %v5314 = vadd.f32 %v5275, %v5285
      %v5315 = vadd.f32 %v5276, %v5285
      %v5316 = vadd.f32 %v5277, %v5285
      %v5317 = vadd.f32 %v5278, %v5285
      %v5318 = vadd.f32 %v5279, %v5285
      %v5319 = vld [vmem:[%s273] sm:$0xff]
      %v5320 = vld [vmem:[%s273 + $0x8] sm:$0xff]
      %v5321 = vld [vmem:[%s273 + $0x10] sm:$0xff]
      %v5322 = vld [vmem:[%s273 + $0x18] sm:$0xff]
      %v5323 = vld [vmem:[%s273 + $0x20] sm:$0xff]
      %v5324 = vld [vmem:[%s273 + $0x28] sm:$0xff]
      %v5325 = vld [vmem:[%s273 + $0x30] sm:$0xff]
      %v5326 = vld [vmem:[%s273 + $0x38] sm:$0xff]
      %v5327 = vld [vmem:[%s273 + $0x40] sm:$0xff]
      %v5328 = vld [vmem:[%s273 + $0x48] sm:$0xff]
      %v5329 = vld [vmem:[%s273 + $0x50] sm:$0xff]
      %v5330 = vld [vmem:[%s273 + $0x58] sm:$0xff]
      %v5331 = vld [vmem:[%s273 + $0x60] sm:$0xff]
      %v5332 = vld [vmem:[%s273 + $0x68] sm:$0xff]
      %v5333 = vld [vmem:[%s273 + $0x70] sm:$0xff]
      %v5334 = vld [vmem:[%s273 + $0x78] sm:$0xff]
      %v5335 = vld [vmem:[%s273 + $0x80] sm:$0xff]
      %v5336 = vld [vmem:[%s273 + $0x88] sm:$0xff]
      %v5337 = vld [vmem:[%s273 + $0x90] sm:$0xff]
      %v5338 = vld [vmem:[%s273 + $0x98] sm:$0xff]
      %v5339 = vld [vmem:[%s273 + $0xa0] sm:$0xff]
      %v5340 = vld [vmem:[%s273 + $0xa8] sm:$0xff]
      %v5341 = vld [vmem:[%s273 + $0xb0] sm:$0xff]
      %v5342 = vld [vmem:[%s273 + $0xb8] sm:$0xff]
      %v5343 = vld [vmem:[%s273 + $0xc0] sm:$0xff]
      %v5344 = vld [vmem:[%s273 + $0xc8] sm:$0xff]
      %v5345 = vld [vmem:[%s273 + $0xd0] sm:$0xff]
      %v5346 = vld [vmem:[%s273 + $0xd8] sm:$0xff]
      %v5347 = vld [vmem:[%s273 + $0xe0] sm:$0xff]
      %v5348 = vld [vmem:[%s273 + $0xe8] sm:$0xff]
      %v5349 = vld [vmem:[%s273 + $0xf0] sm:$0xff]
      %v5350 = vld [vmem:[%s273 + $0xf8] sm:$0xff]
      %v5351 = vadd.f32 %v5287, %v5319
      %v5352 = vadd.f32 %v5288, %v5320
      %v5353 = vadd.f32 %v5289, %v5321
      %v5354 = vadd.f32 %v5290, %v5322
      %v5355 = vadd.f32 %v5291, %v5323
      %v5356 = vadd.f32 %v5292, %v5324
      %v5357 = vadd.f32 %v5293, %v5325
      %v5358 = vadd.f32 %v5294, %v5326
      %v5359 = vadd.f32 %v5295, %v5327
      %v5360 = vadd.f32 %v5296, %v5328
      %v5361 = vadd.f32 %v5297, %v5329
      %v5362 = vadd.f32 %v5298, %v5330
      %v5363 = vadd.f32 %v5299, %v5331
      %v5364 = vadd.f32 %v5300, %v5332
      %v5365 = vadd.f32 %v5301, %v5333
      %v5366 = vadd.f32 %v5302, %v5334
      %v5367 = vadd.f32 %v5303, %v5335
      %v5368 = vadd.f32 %v5304, %v5336
      %v5369 = vadd.f32 %v5305, %v5337
      %v5370 = vadd.f32 %v5306, %v5338
      %v5371 = vadd.f32 %v5307, %v5339
      %v5372 = vadd.f32 %v5308, %v5340
      %v5373 = vadd.f32 %v5309, %v5341
      %v5374 = vadd.f32 %v5310, %v5342
      %v5375 = vadd.f32 %v5311, %v5343
      %v5376 = vadd.f32 %v5312, %v5344
      %v5377 = vadd.f32 %v5313, %v5345
      %v5378 = vadd.f32 %v5314, %v5346
      %v5379 = vadd.f32 %v5315, %v5347
      %v5380 = vadd.f32 %v5316, %v5348
      %v5381 = vadd.f32 %v5317, %v5349
      %v5382 = vadd.f32 %v5318, %v5350
      %v5383 = vmax.f32 %v5351, 0.0
      %v5384 = vmax.f32 %v5352, 0.0
      %v5385 = vmax.f32 %v5353, 0.0
      %v5386 = vmax.f32 %v5354, 0.0
      %v5387 = vmax.f32 %v5355, 0.0
      %v5388 = vmax.f32 %v5356, 0.0
      %v5389 = vmax.f32 %v5357, 0.0
      %v5390 = vmax.f32 %v5358, 0.0
      %v5391 = vmax.f32 %v5359, 0.0
      %v5392 = vmax.f32 %v5360, 0.0
      %v5393 = vmax.f32 %v5361, 0.0
      %v5394 = vmax.f32 %v5362, 0.0
      %v5395 = vmax.f32 %v5363, 0.0
      %v5396 = vmax.f32 %v5364, 0.0
      %v5397 = vmax.f32 %v5365, 0.0
      %v5398 = vmax.f32 %v5366, 0.0
      %v5399 = vmax.f32 %v5367, 0.0
      %v5400 = vmax.f32 %v5368, 0.0
      %v5401 = vmax.f32 %v5369, 0.0
      %v5402 = vmax.f32 %v5370, 0.0
      %v5403 = vmax.f32 %v5371, 0.0
      %v5404 = vmax.f32 %v5372, 0.0
      %v5405 = vmax.f32 %v5373, 0.0
      %v5406 = vmax.f32 %v5374, 0.0
      %v5407 = vmax.f32 %v5375, 0.0
      %v5408 = vmax.f32 %v5376, 0.0
      %v5409 = vmax.f32 %v5377, 0.0
      %v5410 = vmax.f32 %v5378, 0.0
      %v5411 = vmax.f32 %v5379, 0.0
      %v5412 = vmax.f32 %v5380, 0.0
      %v5413 = vmax.f32 %v5381, 0.0
      %v5414 = vmax.f32 %v5382, 0.0
      %5415 = vst.msk [vmem:[%s278] sm:$0xff] %vm2248, %v5383
      %5416 = vst.msk [vmem:[%s278 + $0x8] sm:$0xff] %vm2248, %v5384
      %5417 = vst.msk [vmem:[%s278 + $0x10] sm:$0xff] %vm2248, %v5385
      %5418 = vst.msk [vmem:[%s278 + $0x18] sm:$0xff] %vm2248, %v5386
      %5419 = vst.msk [vmem:[%s278 + $0x20] sm:$0xff] %vm2248, %v5387
      %5420 = vst.msk [vmem:[%s278 + $0x28] sm:$0xff] %vm2248, %v5388
      %5421 = vst.msk [vmem:[%s278 + $0x30] sm:$0xff] %vm2248, %v5389
      %5422 = vst.msk [vmem:[%s278 + $0x38] sm:$0xff] %vm2248, %v5390
      %5423 = vst.msk [vmem:[%s278 + $0x40] sm:$0xff] %vm2248, %v5391
      %5424 = vst.msk [vmem:[%s278 + $0x48] sm:$0xff] %vm2248, %v5392
      %5425 = vst.msk [vmem:[%s278 + $0x50] sm:$0xff] %vm2248, %v5393
      %5426 = vst.msk [vmem:[%s278 + $0x58] sm:$0xff] %vm2248, %v5394
      %5427 = vst.msk [vmem:[%s278 + $0x60] sm:$0xff] %vm2248, %v5395
      %5428 = vst.msk [vmem:[%s278 + $0x68] sm:$0xff] %vm2248, %v5396
      %5429 = vst.msk [vmem:[%s278 + $0x70] sm:$0xff] %vm2248, %v5397
      %5430 = vst.msk [vmem:[%s278 + $0x78] sm:$0xff] %vm2248, %v5398
      %5431 = vst.msk [vmem:[%s278 + $0x80] sm:$0xff] %vm2248, %v5399
      %5432 = vst.msk [vmem:[%s278 + $0x88] sm:$0xff] %vm2248, %v5400
      %5433 = vst.msk [vmem:[%s278 + $0x90] sm:$0xff] %vm2248, %v5401
      %5434 = vst.msk [vmem:[%s278 + $0x98] sm:$0xff] %vm2248, %v5402
      %5435 = vst.msk [vmem:[%s278 + $0xa0] sm:$0xff] %vm2248, %v5403
      %5436 = vst.msk [vmem:[%s278 + $0xa8] sm:$0xff] %vm2248, %v5404
      %5437 = vst.msk [vmem:[%s278 + $0xb0] sm:$0xff] %vm2248, %v5405
      %5438 = vst.msk [vmem:[%s278 + $0xb8] sm:$0xff] %vm2248, %v5406
      %5439 = vst.msk [vmem:[%s278 + $0xc0] sm:$0xff] %vm2248, %v5407
      %5440 = vst.msk [vmem:[%s278 + $0xc8] sm:$0xff] %vm2248, %v5408
      %5441 = vst.msk [vmem:[%s278 + $0xd0] sm:$0xff] %vm2248, %v5409
      %5442 = vst.msk [vmem:[%s278 + $0xd8] sm:$0xff] %vm2248, %v5410
      %5443 = vst.msk [vmem:[%s278 + $0xe0] sm:$0xff] %vm2248, %v5411
      %5444 = vst.msk [vmem:[%s278 + $0xe8] sm:$0xff] %vm2248, %v5412
      %5445 = vst.msk [vmem:[%s278 + $0xf0] sm:$0xff] %vm2248, %v5413
      %5446 = vst.msk [vmem:[%s278 + $0xf8] sm:$0xff] %vm2248, %v5414
      %p5447 = scmp.lt.s32.totalorder %s18, 1
      %s5448 = scalar_select %p5447, %s18, 1
      %s5449 = smul.addr %s5448, 32
      %s5450 = smul.addr %s5449, 8
      %s5451 = scalar_lea.vmem %s7, %s5450
      // Predicated region
      $region49: #{tpu_custom_call.1} parent=47 // pred_check
        %p5452 = pneg %p188
      $region50: #{tpu_custom_call.1} parent=47 // pred_check_branch
        %5454 = sbr.rel (%p5452) target = $region52
      $region51: #{tpu_custom_call.1} parent=47 // pred_region
        _
      $region52: #{tpu_custom_call.1} parent=47 // pred_fallthru
        _
    $region48: #{tpu_custom_call.1} parent=5 // pred_fallthru
      _
    %p5455 = scmp.le.s32.totalorder 2, %s13
    // Predicated region
    $region53: #{tpu_custom_call.1} parent=5 // pred_check
      %p5456 = pneg %p5455
    $region54: #{tpu_custom_call.1} parent=5 // pred_check_branch
      %5458 = sbr.rel (%p5456) target = $region56
    $region55: #{tpu_custom_call.1} parent=5 // pred_region
      %s5459 = ssub.s32 %s13, 2
      // Predicated region
      $region57: #{tpu_custom_call.1} parent=55 // pred_check
        %p5460 = pneg %p194
      $region58: #{tpu_custom_call.1} parent=55 // pred_check_branch
        %5462 = sbr.rel (%p5460) target = $region60
      $region59: #{tpu_custom_call.1} parent=55 // pred_region
        %p5463 = scmp.lt.s32.totalorder %s19, 1
        %s5464 = scalar_select %p5463, %s19, 1
        %s5465 = smul.addr %s5464, 32
        %s5466 = smul.addr %s5465, 8
        %s5467 = scalar_lea.vmem %s7, %s5466
      $region60: #{tpu_custom_call.1} parent=55 // pred_fallthru
        _
    $region56: #{tpu_custom_call.1} parent=5 // pred_fallthru
      _
  $region6: #{tpu_custom_call.1} parent=0 // loop_footer
    %s17 = sadd.s32 1, %s13
  $region7: #{tpu_custom_call.1} parent=0 // loop_footer_branch
    %12 = sbr.rel target = $region3
  $region8: #{tpu_custom_call.1} parent=0 // loop_exit
    _

</llo_original>
